<compile_context>
chip_gen: v5e
topology: v5e:2x2
jax: 0.10.0
libtpu: 0.0.40
codegen_flags: <defaults>
</compile_context>

<pallas_src>
import functools

import jax
import jax.numpy as jnp
from jax.experimental import pallas as pl
from jax.experimental.pallas import tpu as pltpu


def _lane_roll(x, s):
    """Circular roll along the last axis: out[..., k] = x[..., (k - s) mod L]."""
    L = x.shape[-1]
    s = s % L
    if s == 0:
        return x
    return jnp.concatenate([x[:, L - s:], x[:, :L - s]], axis=-1)


def _regression_kernel(rand_ref, target_ref,
                       x_ref, xx_ref, xy_ref, y_ref,
                       *, H, win_size, bandwidth):
    r = win_size // 2
    inv_two_bw2 = 1.0 / (2.0 * bandwidth * bandwidth)

    # Packed padded slabs: (Hp, L) with L = G * Wp; plane g occupies lanes
    # [g*Wp, (g+1)*Wp), its interior at lanes [g*Wp + r, g*Wp + r + W).
    rp = rand_ref[0]     # (Hp, L) float32
    tp = target_ref[0]   # (Hp, L) float32

    rc = rp[r:r + H, :]  # centre guide values, aligned with the output slab

    acc_x = jnp.zeros_like(rc)
    acc_xx = jnp.zeros_like(rc)
    acc_xy = jnp.zeros_like(rc)
    acc_y = jnp.zeros_like(rc)

    # dj outer: one lane roll per dj (hoisted); di inner: sublane row slices only.
    for dj in range(win_size):
        s = r - dj
        rpj = _lane_roll(rp, s)
        tpj = _lane_roll(tp, s)
        for di in range(win_size):
            rn = rpj[di:di + H, :]
            tn = tpj[di:di + H, :]
            d = rn - rc
            w = jnp.exp(-(d * d) * inv_two_bw2)
            wrn = w * rn
            acc_x = acc_x + wrn
            acc_xx = acc_xx + wrn * rn
            acc_xy = acc_xy + wrn * tn
            acc_y = acc_y + w * tn

    x_ref[0] = acc_x
    xx_ref[0] = acc_xx
    xy_ref[0] = acc_xy
    y_ref[0] = acc_y


def regression_forward(rand, target, win_size, bandwidth):
    """rand, target: (N, C, H, W) float32. Returns (x, xx, xy, y), each (N, C, H, W)."""
    assert rand.shape == target.shape
    N, C, H, W = rand.shape
    r = win_size // 2
    Hp, Wp = H + 2 * r, W + 2 * r
    P = N * C

    # Number of planes packed side-by-side along the lane axis (>=128 lanes when possible).
    G = max(1, min(P, -(-128 // Wp)))
    NG = -(-P // G)
    P_pad = NG * G
    L = G * Wp

    def pack(a):
        a = a.reshape(P, H, W).astype(jnp.float32)
        a = jnp.pad(a, ((0, P_pad - P), (r, r), (r, r)))          # zero halo + plane pad
        a = a.reshape(NG, G, Hp, Wp).transpose(0, 2, 1, 3)        # (NG, Hp, G, Wp)
        return a.reshape(NG, Hp, L)

    rand_p = pack(rand)
    target_p = pack(target)

    kernel = functools.partial(_regression_kernel, H=H,
                               win_size=win_size, bandwidth=float(bandwidth))

    in_spec = pl.BlockSpec((1, Hp, L), lambda n: (n, 0, 0))
    out_spec = pl.BlockSpec((1, H, L), lambda n: (n, 0, 0))
    out_sds = jax.ShapeDtypeStruct((NG, H, L), jnp.float32)

    x, xx, xy, y = pl.pallas_call(
        kernel,
        out_shape=(out_sds, out_sds, out_sds, out_sds),
        grid=(NG,),
        in_specs=[in_spec, in_spec],
        out_specs=(out_spec, out_spec, out_spec, out_spec),
        compiler_params=pltpu.CompilerParams(
            dimension_semantics=("parallel",)),
    )(rand_p, target_p)

    def unpack(a):
        a = a.reshape(NG, H, G, Wp)[:, :, :, r:r + W]             # drop halo lanes
        a = a.transpose(0, 2, 1, 3).reshape(P_pad, H, W)[:P]
        return a.reshape(N, C, H, W)

    return unpack(x), unpack(xx), unpack(xy), unpack(y)


class Regression:
    """JAX/Pallas counterpart of the PyTorch Regression module (forward only)."""

    def __init__(self, win_size, bandwidth):
        self.winSize = win_size
        self.bandwidth = bandwidth

    def __call__(self, rand, target):
        return regression_forward(rand, target, self.winSize, self.bandwidth)


def _reference(rand, target, win_size, bandwidth):
    # Pure-JAX reference for a sanity check (same assumed semantics).
    N, C, H, W = rand.shape
    r = win_size // 2
    rp = jnp.pad(rand, ((0, 0), (0, 0), (r, r), (r, r)))
    tp = jnp.pad(target, ((0, 0), (0, 0), (r, r), (r, r)))
    mp = jnp.pad(jnp.ones_like(rand), ((0, 0), (0, 0), (r, r), (r, r)))
    rc = rand
    acc = [jnp.zeros_like(rand) for _ in range(4)]
    for di in range(win_size):
        for dj in range(win_size):
            rn = rp[:, :, di:di + H, dj:dj + W]
            tn = tp[:, :, di:di + H, dj:dj + W]
            mn = mp[:, :, di:di + H, dj:dj + W]
            w = mn * jnp.exp(-(rn - rc) ** 2 / (2.0 * bandwidth ** 2))
            acc[0] = acc[0] + w * rn
            acc[1] = acc[1] + w * rn * rn
            acc[2] = acc[2] + w * rn * tn
            acc[3] = acc[3] + w * tn
    return tuple(acc)


if __name__ == "__main__":
    key = jax.random.PRNGKey(0)
    k1, k2 = jax.random.split(key)

    N, C, H, W = 2, 4, 16, 16
    win_size, bandwidth = 5, 0.5

    rand = jax.random.normal(k1, (N, C, H, W), dtype=jnp.float32)
    target = jax.random.normal(k2, (N, C, H, W), dtype=jnp.float32)

    model = Regression(win_size, bandwidth)
    x, xx, xy, y = model(rand, target)
    jax.block_until_ready((x, xx, xy, y))

    # Sanity check against the pure-JAX reference.
    rx, rxx, rxy, ry = _reference(rand, target, win_size, bandwidth)
    for got, ref in ((x, rx), (xx, rxx), (xy, rxy), (y, ry)):
        assert jnp.allclose(got, ref, atol=1e-4, rtol=1e-4), "mismatch vs reference"

    print("KERNEL_OK")
</pallas_src>

<mosaic_0001>
module attributes {stable_mosaic.version = 11 : i64} {
  func.func @_regression_kernel(%arg0: i32, %arg1: memref<1x20x140xf32, #tpu.memory_space<vmem>>, %arg2: memref<1x20x140xf32, #tpu.memory_space<vmem>>, %arg3: memref<1x16x140xf32, #tpu.memory_space<vmem>>, %arg4: memref<1x16x140xf32, #tpu.memory_space<vmem>>, %arg5: memref<1x16x140xf32, #tpu.memory_space<vmem>>, %arg6: memref<1x16x140xf32, #tpu.memory_space<vmem>>) attributes {dimension_semantics = [#tpu.dimension_semantics<parallel>], iteration_bounds = array<i64: 2>, scalar_prefetch = 0 : i64, scratch_operands = 0 : i64, tpu.core_type = #tpu.core_type<tc>, window_params = [{transform_indices = @transform_0, window_bounds = array<i64: 1, 20, 140>}, {transform_indices = @transform_1, window_bounds = array<i64: 1, 20, 140>}, {transform_indices = @transform_2, window_bounds = array<i64: 1, 16, 140>}, {transform_indices = @transform_3, window_bounds = array<i64: 1, 16, 140>}, {transform_indices = @transform_4, window_bounds = array<i64: 1, 16, 140>}, {transform_indices = @transform_5, window_bounds = array<i64: 1, 16, 140>}]} {
    %c0 = arith.constant 0 : index
    %c0_0 = arith.constant 0 : index
    %c0_1 = arith.constant 0 : index
    %0 = vector.load %arg1[%c0, %c0_0, %c0_1] : memref<1x20x140xf32, #tpu.memory_space<vmem>>, vector<1x20x140xf32>
    %1 = vector.shape_cast %0 : vector<1x20x140xf32> to vector<20x140xf32>
    %c0_2 = arith.constant 0 : index
    %c0_3 = arith.constant 0 : index
    %c0_4 = arith.constant 0 : index
    %2 = vector.load %arg2[%c0_2, %c0_3, %c0_4] : memref<1x20x140xf32, #tpu.memory_space<vmem>>, vector<1x20x140xf32>
    %3 = vector.shape_cast %2 : vector<1x20x140xf32> to vector<20x140xf32>
    %4 = vector.extract_strided_slice %1 {offsets = [2, 0], sizes = [16, 140], strides = [1, 1]} : vector<20x140xf32> to vector<16x140xf32>
    %cst = arith.constant 0.000000e+00 : f32
    %5 = vector.broadcast %cst : f32 to vector<16x140xf32>
    %cst_5 = arith.constant 0.000000e+00 : f32
    %6 = vector.broadcast %cst_5 : f32 to vector<16x140xf32>
    %cst_6 = arith.constant 0.000000e+00 : f32
    %7 = vector.broadcast %cst_6 : f32 to vector<16x140xf32>
    %cst_7 = arith.constant 0.000000e+00 : f32
    %8 = vector.broadcast %cst_7 : f32 to vector<16x140xf32>
    %9 = vector.extract_strided_slice %1 {offsets = [0, 138], sizes = [20, 2], strides = [1, 1]} : vector<20x140xf32> to vector<20x2xf32>
    %10 = vector.extract_strided_slice %1 {offsets = [0, 0], sizes = [20, 138], strides = [1, 1]} : vector<20x140xf32> to vector<20x138xf32>
    %11 = tpu.concatenate %9, %10 in 1 : vector<20x2xf32>, vector<20x138xf32> -> vector<20x140xf32>
    %12 = vector.extract_strided_slice %3 {offsets = [0, 138], sizes = [20, 2], strides = [1, 1]} : vector<20x140xf32> to vector<20x2xf32>
    %13 = vector.extract_strided_slice %3 {offsets = [0, 0], sizes = [20, 138], strides = [1, 1]} : vector<20x140xf32> to vector<20x138xf32>
    %14 = tpu.concatenate %12, %13 in 1 : vector<20x2xf32>, vector<20x138xf32> -> vector<20x140xf32>
    %15 = vector.extract_strided_slice %11 {offsets = [0, 0], sizes = [16, 140], strides = [1, 1]} : vector<20x140xf32> to vector<16x140xf32>
    %16 = vector.extract_strided_slice %14 {offsets = [0, 0], sizes = [16, 140], strides = [1, 1]} : vector<20x140xf32> to vector<16x140xf32>
    %17 = arith.subf %15, %4 : vector<16x140xf32>
    %18 = arith.mulf %17, %17 : vector<16x140xf32>
    %cst_8 = arith.constant 0.000000e+00 : f32
    %19 = vector.broadcast %cst_8 : f32 to vector<16x140xf32>
    %20 = arith.subf %19, %18 : vector<16x140xf32>
    %cst_9 = arith.constant 2.000000e+00 : f32
    %21 = vector.broadcast %cst_9 : f32 to vector<16x140xf32>
    %22 = arith.mulf %20, %21 : vector<16x140xf32>
    %23 = math.exp %22 : vector<16x140xf32>
    %24 = arith.mulf %23, %15 : vector<16x140xf32>
    %25 = arith.addf %5, %24 : vector<16x140xf32>
    %26 = arith.mulf %24, %15 : vector<16x140xf32>
    %27 = arith.addf %6, %26 : vector<16x140xf32>
    %28 = arith.mulf %24, %16 : vector<16x140xf32>
    %29 = arith.addf %7, %28 : vector<16x140xf32>
    %30 = arith.mulf %23, %16 : vector<16x140xf32>
    %31 = arith.addf %8, %30 : vector<16x140xf32>
    %32 = vector.extract_strided_slice %11 {offsets = [1, 0], sizes = [16, 140], strides = [1, 1]} : vector<20x140xf32> to vector<16x140xf32>
    %33 = vector.extract_strided_slice %14 {offsets = [1, 0], sizes = [16, 140], strides = [1, 1]} : vector<20x140xf32> to vector<16x140xf32>
    %34 = arith.subf %32, %4 : vector<16x140xf32>
    %35 = arith.mulf %34, %34 : vector<16x140xf32>
    %cst_10 = arith.constant 0.000000e+00 : f32
    %36 = vector.broadcast %cst_10 : f32 to vector<16x140xf32>
    %37 = arith.subf %36, %35 : vector<16x140xf32>
    %cst_11 = arith.constant 2.000000e+00 : f32
    %38 = vector.broadcast %cst_11 : f32 to vector<16x140xf32>
    %39 = arith.mulf %37, %38 : vector<16x140xf32>
    %40 = math.exp %39 : vector<16x140xf32>
    %41 = arith.mulf %40, %32 : vector<16x140xf32>
    %42 = arith.addf %25, %41 : vector<16x140xf32>
    %43 = arith.mulf %41, %32 : vector<16x140xf32>
    %44 = arith.addf %27, %43 : vector<16x140xf32>
    %45 = arith.mulf %41, %33 : vector<16x140xf32>
    %46 = arith.addf %29, %45 : vector<16x140xf32>
    %47 = arith.mulf %40, %33 : vector<16x140xf32>
    %48 = arith.addf %31, %47 : vector<16x140xf32>
    %49 = vector.extract_strided_slice %11 {offsets = [2, 0], sizes = [16, 140], strides = [1, 1]} : vector<20x140xf32> to vector<16x140xf32>
    %50 = vector.extract_strided_slice %14 {offsets = [2, 0], sizes = [16, 140], strides = [1, 1]} : vector<20x140xf32> to vector<16x140xf32>
    %51 = arith.subf %49, %4 : vector<16x140xf32>
    %52 = arith.mulf %51, %51 : vector<16x140xf32>
    %cst_12 = arith.constant 0.000000e+00 : f32
    %53 = vector.broadcast %cst_12 : f32 to vector<16x140xf32>
    %54 = arith.subf %53, %52 : vector<16x140xf32>
    %cst_13 = arith.constant 2.000000e+00 : f32
    %55 = vector.broadcast %cst_13 : f32 to vector<16x140xf32>
    %56 = arith.mulf %54, %55 : vector<16x140xf32>
    %57 = math.exp %56 : vector<16x140xf32>
    %58 = arith.mulf %57, %49 : vector<16x140xf32>
    %59 = arith.addf %42, %58 : vector<16x140xf32>
    %60 = arith.mulf %58, %49 : vector<16x140xf32>
    %61 = arith.addf %44, %60 : vector<16x140xf32>
    %62 = arith.mulf %58, %50 : vector<16x140xf32>
    %63 = arith.addf %46, %62 : vector<16x140xf32>
    %64 = arith.mulf %57, %50 : vector<16x140xf32>
    %65 = arith.addf %48, %64 : vector<16x140xf32>
    %66 = vector.extract_strided_slice %11 {offsets = [3, 0], sizes = [16, 140], strides = [1, 1]} : vector<20x140xf32> to vector<16x140xf32>
    %67 = vector.extract_strided_slice %14 {offsets = [3, 0], sizes = [16, 140], strides = [1, 1]} : vector<20x140xf32> to vector<16x140xf32>
    %68 = arith.subf %66, %4 : vector<16x140xf32>
    %69 = arith.mulf %68, %68 : vector<16x140xf32>
    %cst_14 = arith.constant 0.000000e+00 : f32
    %70 = vector.broadcast %cst_14 : f32 to vector<16x140xf32>
    %71 = arith.subf %70, %69 : vector<16x140xf32>
    %cst_15 = arith.constant 2.000000e+00 : f32
    %72 = vector.broadcast %cst_15 : f32 to vector<16x140xf32>
    %73 = arith.mulf %71, %72 : vector<16x140xf32>
    %74 = math.exp %73 : vector<16x140xf32>
    %75 = arith.mulf %74, %66 : vector<16x140xf32>
    %76 = arith.addf %59, %75 : vector<16x140xf32>
    %77 = arith.mulf %75, %66 : vector<16x140xf32>
    %78 = arith.addf %61, %77 : vector<16x140xf32>
    %79 = arith.mulf %75, %67 : vector<16x140xf32>
    %80 = arith.addf %63, %79 : vector<16x140xf32>
    %81 = arith.mulf %74, %67 : vector<16x140xf32>
    %82 = arith.addf %65, %81 : vector<16x140xf32>
    %83 = vector.extract_strided_slice %11 {offsets = [4, 0], sizes = [16, 140], strides = [1, 1]} : vector<20x140xf32> to vector<16x140xf32>
    %84 = vector.extract_strided_slice %14 {offsets = [4, 0], sizes = [16, 140], strides = [1, 1]} : vector<20x140xf32> to vector<16x140xf32>
    %85 = arith.subf %83, %4 : vector<16x140xf32>
    %86 = arith.mulf %85, %85 : vector<16x140xf32>
    %cst_16 = arith.constant 0.000000e+00 : f32
    %87 = vector.broadcast %cst_16 : f32 to vector<16x140xf32>
    %88 = arith.subf %87, %86 : vector<16x140xf32>
    %cst_17 = arith.constant 2.000000e+00 : f32
    %89 = vector.broadcast %cst_17 : f32 to vector<16x140xf32>
    %90 = arith.mulf %88, %89 : vector<16x140xf32>
    %91 = math.exp %90 : vector<16x140xf32>
    %92 = arith.mulf %91, %83 : vector<16x140xf32>
    %93 = arith.addf %76, %92 : vector<16x140xf32>
    %94 = arith.mulf %92, %83 : vector<16x140xf32>
    %95 = arith.addf %78, %94 : vector<16x140xf32>
    %96 = arith.mulf %92, %84 : vector<16x140xf32>
    %97 = arith.addf %80, %96 : vector<16x140xf32>
    %98 = arith.mulf %91, %84 : vector<16x140xf32>
    %99 = arith.addf %82, %98 : vector<16x140xf32>
    %100 = vector.extract_strided_slice %1 {offsets = [0, 139], sizes = [20, 1], strides = [1, 1]} : vector<20x140xf32> to vector<20x1xf32>
    %101 = vector.extract_strided_slice %1 {offsets = [0, 0], sizes = [20, 139], strides = [1, 1]} : vector<20x140xf32> to vector<20x139xf32>
    %102 = tpu.concatenate %100, %101 in 1 : vector<20x1xf32>, vector<20x139xf32> -> vector<20x140xf32>
    %103 = vector.extract_strided_slice %3 {offsets = [0, 139], sizes = [20, 1], strides = [1, 1]} : vector<20x140xf32> to vector<20x1xf32>
    %104 = vector.extract_strided_slice %3 {offsets = [0, 0], sizes = [20, 139], strides = [1, 1]} : vector<20x140xf32> to vector<20x139xf32>
    %105 = tpu.concatenate %103, %104 in 1 : vector<20x1xf32>, vector<20x139xf32> -> vector<20x140xf32>
    %106 = vector.extract_strided_slice %102 {offsets = [0, 0], sizes = [16, 140], strides = [1, 1]} : vector<20x140xf32> to vector<16x140xf32>
    %107 = vector.extract_strided_slice %105 {offsets = [0, 0], sizes = [16, 140], strides = [1, 1]} : vector<20x140xf32> to vector<16x140xf32>
    %108 = arith.subf %106, %4 : vector<16x140xf32>
    %109 = arith.mulf %108, %108 : vector<16x140xf32>
    %cst_18 = arith.constant 0.000000e+00 : f32
    %110 = vector.broadcast %cst_18 : f32 to vector<16x140xf32>
    %111 = arith.subf %110, %109 : vector<16x140xf32>
    %cst_19 = arith.constant 2.000000e+00 : f32
    %112 = vector.broadcast %cst_19 : f32 to vector<16x140xf32>
    %113 = arith.mulf %111, %112 : vector<16x140xf32>
    %114 = math.exp %113 : vector<16x140xf32>
    %115 = arith.mulf %114, %106 : vector<16x140xf32>
    %116 = arith.addf %93, %115 : vector<16x140xf32>
    %117 = arith.mulf %115, %106 : vector<16x140xf32>
    %118 = arith.addf %95, %117 : vector<16x140xf32>
    %119 = arith.mulf %115, %107 : vector<16x140xf32>
    %120 = arith.addf %97, %119 : vector<16x140xf32>
    %121 = arith.mulf %114, %107 : vector<16x140xf32>
    %122 = arith.addf %99, %121 : vector<16x140xf32>
    %123 = vector.extract_strided_slice %102 {offsets = [1, 0], sizes = [16, 140], strides = [1, 1]} : vector<20x140xf32> to vector<16x140xf32>
    %124 = vector.extract_strided_slice %105 {offsets = [1, 0], sizes = [16, 140], strides = [1, 1]} : vector<20x140xf32> to vector<16x140xf32>
    %125 = arith.subf %123, %4 : vector<16x140xf32>
    %126 = arith.mulf %125, %125 : vector<16x140xf32>
    %cst_20 = arith.constant 0.000000e+00 : f32
    %127 = vector.broadcast %cst_20 : f32 to vector<16x140xf32>
    %128 = arith.subf %127, %126 : vector<16x140xf32>
    %cst_21 = arith.constant 2.000000e+00 : f32
    %129 = vector.broadcast %cst_21 : f32 to vector<16x140xf32>
    %130 = arith.mulf %128, %129 : vector<16x140xf32>
    %131 = math.exp %130 : vector<16x140xf32>
    %132 = arith.mulf %131, %123 : vector<16x140xf32>
    %133 = arith.addf %116, %132 : vector<16x140xf32>
    %134 = arith.mulf %132, %123 : vector<16x140xf32>
    %135 = arith.addf %118, %134 : vector<16x140xf32>
    %136 = arith.mulf %132, %124 : vector<16x140xf32>
    %137 = arith.addf %120, %136 : vector<16x140xf32>
    %138 = arith.mulf %131, %124 : vector<16x140xf32>
    %139 = arith.addf %122, %138 : vector<16x140xf32>
    %140 = vector.extract_strided_slice %102 {offsets = [2, 0], sizes = [16, 140], strides = [1, 1]} : vector<20x140xf32> to vector<16x140xf32>
    %141 = vector.extract_strided_slice %105 {offsets = [2, 0], sizes = [16, 140], strides = [1, 1]} : vector<20x140xf32> to vector<16x140xf32>
    %142 = arith.subf %140, %4 : vector<16x140xf32>
    %143 = arith.mulf %142, %142 : vector<16x140xf32>
    %cst_22 = arith.constant 0.000000e+00 : f32
    %144 = vector.broadcast %cst_22 : f32 to vector<16x140xf32>
    %145 = arith.subf %144, %143 : vector<16x140xf32>
    %cst_23 = arith.constant 2.000000e+00 : f32
    %146 = vector.broadcast %cst_23 : f32 to vector<16x140xf32>
    %147 = arith.mulf %145, %146 : vector<16x140xf32>
    %148 = math.exp %147 : vector<16x140xf32>
    %149 = arith.mulf %148, %140 : vector<16x140xf32>
    %150 = arith.addf %133, %149 : vector<16x140xf32>
    %151 = arith.mulf %149, %140 : vector<16x140xf32>
    %152 = arith.addf %135, %151 : vector<16x140xf32>
    %153 = arith.mulf %149, %141 : vector<16x140xf32>
    %154 = arith.addf %137, %153 : vector<16x140xf32>
    %155 = arith.mulf %148, %141 : vector<16x140xf32>
    %156 = arith.addf %139, %155 : vector<16x140xf32>
    %157 = vector.extract_strided_slice %102 {offsets = [3, 0], sizes = [16, 140], strides = [1, 1]} : vector<20x140xf32> to vector<16x140xf32>
    %158 = vector.extract_strided_slice %105 {offsets = [3, 0], sizes = [16, 140], strides = [1, 1]} : vector<20x140xf32> to vector<16x140xf32>
    %159 = arith.subf %157, %4 : vector<16x140xf32>
    %160 = arith.mulf %159, %159 : vector<16x140xf32>
    %cst_24 = arith.constant 0.000000e+00 : f32
    %161 = vector.broadcast %cst_24 : f32 to vector<16x140xf32>
    %162 = arith.subf %161, %160 : vector<16x140xf32>
    %cst_25 = arith.constant 2.000000e+00 : f32
    %163 = vector.broadcast %cst_25 : f32 to vector<16x140xf32>
    %164 = arith.mulf %162, %163 : vector<16x140xf32>
    %165 = math.exp %164 : vector<16x140xf32>
    %166 = arith.mulf %165, %157 : vector<16x140xf32>
    %167 = arith.addf %150, %166 : vector<16x140xf32>
    %168 = arith.mulf %166, %157 : vector<16x140xf32>
    %169 = arith.addf %152, %168 : vector<16x140xf32>
    %170 = arith.mulf %166, %158 : vector<16x140xf32>
    %171 = arith.addf %154, %170 : vector<16x140xf32>
    %172 = arith.mulf %165, %158 : vector<16x140xf32>
    %173 = arith.addf %156, %172 : vector<16x140xf32>
    %174 = vector.extract_strided_slice %102 {offsets = [4, 0], sizes = [16, 140], strides = [1, 1]} : vector<20x140xf32> to vector<16x140xf32>
    %175 = vector.extract_strided_slice %105 {offsets = [4, 0], sizes = [16, 140], strides = [1, 1]} : vector<20x140xf32> to vector<16x140xf32>
    %176 = arith.subf %174, %4 : vector<16x140xf32>
    %177 = arith.mulf %176, %176 : vector<16x140xf32>
    %cst_26 = arith.constant 0.000000e+00 : f32
    %178 = vector.broadcast %cst_26 : f32 to vector<16x140xf32>
    %179 = arith.subf %178, %177 : vector<16x140xf32>
    %cst_27 = arith.constant 2.000000e+00 : f32
    %180 = vector.broadcast %cst_27 : f32 to vector<16x140xf32>
    %181 = arith.mulf %179, %180 : vector<16x140xf32>
    %182 = math.exp %181 : vector<16x140xf32>
    %183 = arith.mulf %182, %174 : vector<16x140xf32>
    %184 = arith.addf %167, %183 : vector<16x140xf32>
    %185 = arith.mulf %183, %174 : vector<16x140xf32>
    %186 = arith.addf %169, %185 : vector<16x140xf32>
    %187 = arith.mulf %183, %175 : vector<16x140xf32>
    %188 = arith.addf %171, %187 : vector<16x140xf32>
    %189 = arith.mulf %182, %175 : vector<16x140xf32>
    %190 = arith.addf %173, %189 : vector<16x140xf32>
    %191 = vector.extract_strided_slice %1 {offsets = [0, 0], sizes = [16, 140], strides = [1, 1]} : vector<20x140xf32> to vector<16x140xf32>
    %192 = vector.extract_strided_slice %3 {offsets = [0, 0], sizes = [16, 140], strides = [1, 1]} : vector<20x140xf32> to vector<16x140xf32>
    %193 = arith.subf %191, %4 : vector<16x140xf32>
    %194 = arith.mulf %193, %193 : vector<16x140xf32>
    %cst_28 = arith.constant 0.000000e+00 : f32
    %195 = vector.broadcast %cst_28 : f32 to vector<16x140xf32>
    %196 = arith.subf %195, %194 : vector<16x140xf32>
    %cst_29 = arith.constant 2.000000e+00 : f32
    %197 = vector.broadcast %cst_29 : f32 to vector<16x140xf32>
    %198 = arith.mulf %196, %197 : vector<16x140xf32>
    %199 = math.exp %198 : vector<16x140xf32>
    %200 = arith.mulf %199, %191 : vector<16x140xf32>
    %201 = arith.addf %184, %200 : vector<16x140xf32>
    %202 = arith.mulf %200, %191 : vector<16x140xf32>
    %203 = arith.addf %186, %202 : vector<16x140xf32>
    %204 = arith.mulf %200, %192 : vector<16x140xf32>
    %205 = arith.addf %188, %204 : vector<16x140xf32>
    %206 = arith.mulf %199, %192 : vector<16x140xf32>
    %207 = arith.addf %190, %206 : vector<16x140xf32>
    %208 = vector.extract_strided_slice %1 {offsets = [1, 0], sizes = [16, 140], strides = [1, 1]} : vector<20x140xf32> to vector<16x140xf32>
    %209 = vector.extract_strided_slice %3 {offsets = [1, 0], sizes = [16, 140], strides = [1, 1]} : vector<20x140xf32> to vector<16x140xf32>
    %210 = arith.subf %208, %4 : vector<16x140xf32>
    %211 = arith.mulf %210, %210 : vector<16x140xf32>
    %cst_30 = arith.constant 0.000000e+00 : f32
    %212 = vector.broadcast %cst_30 : f32 to vector<16x140xf32>
    %213 = arith.subf %212, %211 : vector<16x140xf32>
    %cst_31 = arith.constant 2.000000e+00 : f32
    %214 = vector.broadcast %cst_31 : f32 to vector<16x140xf32>
    %215 = arith.mulf %213, %214 : vector<16x140xf32>
    %216 = math.exp %215 : vector<16x140xf32>
    %217 = arith.mulf %216, %208 : vector<16x140xf32>
    %218 = arith.addf %201, %217 : vector<16x140xf32>
    %219 = arith.mulf %217, %208 : vector<16x140xf32>
    %220 = arith.addf %203, %219 : vector<16x140xf32>
    %221 = arith.mulf %217, %209 : vector<16x140xf32>
    %222 = arith.addf %205, %221 : vector<16x140xf32>
    %223 = arith.mulf %216, %209 : vector<16x140xf32>
    %224 = arith.addf %207, %223 : vector<16x140xf32>
    %225 = vector.extract_strided_slice %1 {offsets = [2, 0], sizes = [16, 140], strides = [1, 1]} : vector<20x140xf32> to vector<16x140xf32>
    %226 = vector.extract_strided_slice %3 {offsets = [2, 0], sizes = [16, 140], strides = [1, 1]} : vector<20x140xf32> to vector<16x140xf32>
    %227 = arith.subf %225, %4 : vector<16x140xf32>
    %228 = arith.mulf %227, %227 : vector<16x140xf32>
    %cst_32 = arith.constant 0.000000e+00 : f32
    %229 = vector.broadcast %cst_32 : f32 to vector<16x140xf32>
    %230 = arith.subf %229, %228 : vector<16x140xf32>
    %cst_33 = arith.constant 2.000000e+00 : f32
    %231 = vector.broadcast %cst_33 : f32 to vector<16x140xf32>
    %232 = arith.mulf %230, %231 : vector<16x140xf32>
    %233 = math.exp %232 : vector<16x140xf32>
    %234 = arith.mulf %233, %225 : vector<16x140xf32>
    %235 = arith.addf %218, %234 : vector<16x140xf32>
    %236 = arith.mulf %234, %225 : vector<16x140xf32>
    %237 = arith.addf %220, %236 : vector<16x140xf32>
    %238 = arith.mulf %234, %226 : vector<16x140xf32>
    %239 = arith.addf %222, %238 : vector<16x140xf32>
    %240 = arith.mulf %233, %226 : vector<16x140xf32>
    %241 = arith.addf %224, %240 : vector<16x140xf32>
    %242 = vector.extract_strided_slice %1 {offsets = [3, 0], sizes = [16, 140], strides = [1, 1]} : vector<20x140xf32> to vector<16x140xf32>
    %243 = vector.extract_strided_slice %3 {offsets = [3, 0], sizes = [16, 140], strides = [1, 1]} : vector<20x140xf32> to vector<16x140xf32>
    %244 = arith.subf %242, %4 : vector<16x140xf32>
    %245 = arith.mulf %244, %244 : vector<16x140xf32>
    %cst_34 = arith.constant 0.000000e+00 : f32
    %246 = vector.broadcast %cst_34 : f32 to vector<16x140xf32>
    %247 = arith.subf %246, %245 : vector<16x140xf32>
    %cst_35 = arith.constant 2.000000e+00 : f32
    %248 = vector.broadcast %cst_35 : f32 to vector<16x140xf32>
    %249 = arith.mulf %247, %248 : vector<16x140xf32>
    %250 = math.exp %249 : vector<16x140xf32>
    %251 = arith.mulf %250, %242 : vector<16x140xf32>
    %252 = arith.addf %235, %251 : vector<16x140xf32>
    %253 = arith.mulf %251, %242 : vector<16x140xf32>
    %254 = arith.addf %237, %253 : vector<16x140xf32>
    %255 = arith.mulf %251, %243 : vector<16x140xf32>
    %256 = arith.addf %239, %255 : vector<16x140xf32>
    %257 = arith.mulf %250, %243 : vector<16x140xf32>
    %258 = arith.addf %241, %257 : vector<16x140xf32>
    %259 = vector.extract_strided_slice %1 {offsets = [4, 0], sizes = [16, 140], strides = [1, 1]} : vector<20x140xf32> to vector<16x140xf32>
    %260 = vector.extract_strided_slice %3 {offsets = [4, 0], sizes = [16, 140], strides = [1, 1]} : vector<20x140xf32> to vector<16x140xf32>
    %261 = arith.subf %259, %4 : vector<16x140xf32>
    %262 = arith.mulf %261, %261 : vector<16x140xf32>
    %cst_36 = arith.constant 0.000000e+00 : f32
    %263 = vector.broadcast %cst_36 : f32 to vector<16x140xf32>
    %264 = arith.subf %263, %262 : vector<16x140xf32>
    %cst_37 = arith.constant 2.000000e+00 : f32
    %265 = vector.broadcast %cst_37 : f32 to vector<16x140xf32>
    %266 = arith.mulf %264, %265 : vector<16x140xf32>
    %267 = math.exp %266 : vector<16x140xf32>
    %268 = arith.mulf %267, %259 : vector<16x140xf32>
    %269 = arith.addf %252, %268 : vector<16x140xf32>
    %270 = arith.mulf %268, %259 : vector<16x140xf32>
    %271 = arith.addf %254, %270 : vector<16x140xf32>
    %272 = arith.mulf %268, %260 : vector<16x140xf32>
    %273 = arith.addf %256, %272 : vector<16x140xf32>
    %274 = arith.mulf %267, %260 : vector<16x140xf32>
    %275 = arith.addf %258, %274 : vector<16x140xf32>
    %276 = vector.extract_strided_slice %1 {offsets = [0, 1], sizes = [20, 139], strides = [1, 1]} : vector<20x140xf32> to vector<20x139xf32>
    %277 = vector.extract_strided_slice %1 {offsets = [0, 0], sizes = [20, 1], strides = [1, 1]} : vector<20x140xf32> to vector<20x1xf32>
    %278 = tpu.concatenate %276, %277 in 1 : vector<20x139xf32>, vector<20x1xf32> -> vector<20x140xf32>
    %279 = vector.extract_strided_slice %3 {offsets = [0, 1], sizes = [20, 139], strides = [1, 1]} : vector<20x140xf32> to vector<20x139xf32>
    %280 = vector.extract_strided_slice %3 {offsets = [0, 0], sizes = [20, 1], strides = [1, 1]} : vector<20x140xf32> to vector<20x1xf32>
    %281 = tpu.concatenate %279, %280 in 1 : vector<20x139xf32>, vector<20x1xf32> -> vector<20x140xf32>
    %282 = vector.extract_strided_slice %278 {offsets = [0, 0], sizes = [16, 140], strides = [1, 1]} : vector<20x140xf32> to vector<16x140xf32>
    %283 = vector.extract_strided_slice %281 {offsets = [0, 0], sizes = [16, 140], strides = [1, 1]} : vector<20x140xf32> to vector<16x140xf32>
    %284 = arith.subf %282, %4 : vector<16x140xf32>
    %285 = arith.mulf %284, %284 : vector<16x140xf32>
    %cst_38 = arith.constant 0.000000e+00 : f32
    %286 = vector.broadcast %cst_38 : f32 to vector<16x140xf32>
    %287 = arith.subf %286, %285 : vector<16x140xf32>
    %cst_39 = arith.constant 2.000000e+00 : f32
    %288 = vector.broadcast %cst_39 : f32 to vector<16x140xf32>
    %289 = arith.mulf %287, %288 : vector<16x140xf32>
    %290 = math.exp %289 : vector<16x140xf32>
    %291 = arith.mulf %290, %282 : vector<16x140xf32>
    %292 = arith.addf %269, %291 : vector<16x140xf32>
    %293 = arith.mulf %291, %282 : vector<16x140xf32>
    %294 = arith.addf %271, %293 : vector<16x140xf32>
    %295 = arith.mulf %291, %283 : vector<16x140xf32>
    %296 = arith.addf %273, %295 : vector<16x140xf32>
    %297 = arith.mulf %290, %283 : vector<16x140xf32>
    %298 = arith.addf %275, %297 : vector<16x140xf32>
    %299 = vector.extract_strided_slice %278 {offsets = [1, 0], sizes = [16, 140], strides = [1, 1]} : vector<20x140xf32> to vector<16x140xf32>
    %300 = vector.extract_strided_slice %281 {offsets = [1, 0], sizes = [16, 140], strides = [1, 1]} : vector<20x140xf32> to vector<16x140xf32>
    %301 = arith.subf %299, %4 : vector<16x140xf32>
    %302 = arith.mulf %301, %301 : vector<16x140xf32>
    %cst_40 = arith.constant 0.000000e+00 : f32
    %303 = vector.broadcast %cst_40 : f32 to vector<16x140xf32>
    %304 = arith.subf %303, %302 : vector<16x140xf32>
    %cst_41 = arith.constant 2.000000e+00 : f32
    %305 = vector.broadcast %cst_41 : f32 to vector<16x140xf32>
    %306 = arith.mulf %304, %305 : vector<16x140xf32>
    %307 = math.exp %306 : vector<16x140xf32>
    %308 = arith.mulf %307, %299 : vector<16x140xf32>
    %309 = arith.addf %292, %308 : vector<16x140xf32>
    %310 = arith.mulf %308, %299 : vector<16x140xf32>
    %311 = arith.addf %294, %310 : vector<16x140xf32>
    %312 = arith.mulf %308, %300 : vector<16x140xf32>
    %313 = arith.addf %296, %312 : vector<16x140xf32>
    %314 = arith.mulf %307, %300 : vector<16x140xf32>
    %315 = arith.addf %298, %314 : vector<16x140xf32>
    %316 = vector.extract_strided_slice %278 {offsets = [2, 0], sizes = [16, 140], strides = [1, 1]} : vector<20x140xf32> to vector<16x140xf32>
    %317 = vector.extract_strided_slice %281 {offsets = [2, 0], sizes = [16, 140], strides = [1, 1]} : vector<20x140xf32> to vector<16x140xf32>
    %318 = arith.subf %316, %4 : vector<16x140xf32>
    %319 = arith.mulf %318, %318 : vector<16x140xf32>
    %cst_42 = arith.constant 0.000000e+00 : f32
    %320 = vector.broadcast %cst_42 : f32 to vector<16x140xf32>
    %321 = arith.subf %320, %319 : vector<16x140xf32>
    %cst_43 = arith.constant 2.000000e+00 : f32
    %322 = vector.broadcast %cst_43 : f32 to vector<16x140xf32>
    %323 = arith.mulf %321, %322 : vector<16x140xf32>
    %324 = math.exp %323 : vector<16x140xf32>
    %325 = arith.mulf %324, %316 : vector<16x140xf32>
    %326 = arith.addf %309, %325 : vector<16x140xf32>
    %327 = arith.mulf %325, %316 : vector<16x140xf32>
    %328 = arith.addf %311, %327 : vector<16x140xf32>
    %329 = arith.mulf %325, %317 : vector<16x140xf32>
    %330 = arith.addf %313, %329 : vector<16x140xf32>
    %331 = arith.mulf %324, %317 : vector<16x140xf32>
    %332 = arith.addf %315, %331 : vector<16x140xf32>
    %333 = vector.extract_strided_slice %278 {offsets = [3, 0], sizes = [16, 140], strides = [1, 1]} : vector<20x140xf32> to vector<16x140xf32>
    %334 = vector.extract_strided_slice %281 {offsets = [3, 0], sizes = [16, 140], strides = [1, 1]} : vector<20x140xf32> to vector<16x140xf32>
    %335 = arith.subf %333, %4 : vector<16x140xf32>
    %336 = arith.mulf %335, %335 : vector<16x140xf32>
    %cst_44 = arith.constant 0.000000e+00 : f32
    %337 = vector.broadcast %cst_44 : f32 to vector<16x140xf32>
    %338 = arith.subf %337, %336 : vector<16x140xf32>
    %cst_45 = arith.constant 2.000000e+00 : f32
    %339 = vector.broadcast %cst_45 : f32 to vector<16x140xf32>
    %340 = arith.mulf %338, %339 : vector<16x140xf32>
    %341 = math.exp %340 : vector<16x140xf32>
    %342 = arith.mulf %341, %333 : vector<16x140xf32>
    %343 = arith.addf %326, %342 : vector<16x140xf32>
    %344 = arith.mulf %342, %333 : vector<16x140xf32>
    %345 = arith.addf %328, %344 : vector<16x140xf32>
    %346 = arith.mulf %342, %334 : vector<16x140xf32>
    %347 = arith.addf %330, %346 : vector<16x140xf32>
    %348 = arith.mulf %341, %334 : vector<16x140xf32>
    %349 = arith.addf %332, %348 : vector<16x140xf32>
    %350 = vector.extract_strided_slice %278 {offsets = [4, 0], sizes = [16, 140], strides = [1, 1]} : vector<20x140xf32> to vector<16x140xf32>
    %351 = vector.extract_strided_slice %281 {offsets = [4, 0], sizes = [16, 140], strides = [1, 1]} : vector<20x140xf32> to vector<16x140xf32>
    %352 = arith.subf %350, %4 : vector<16x140xf32>
    %353 = arith.mulf %352, %352 : vector<16x140xf32>
    %cst_46 = arith.constant 0.000000e+00 : f32
    %354 = vector.broadcast %cst_46 : f32 to vector<16x140xf32>
    %355 = arith.subf %354, %353 : vector<16x140xf32>
    %cst_47 = arith.constant 2.000000e+00 : f32
    %356 = vector.broadcast %cst_47 : f32 to vector<16x140xf32>
    %357 = arith.mulf %355, %356 : vector<16x140xf32>
    %358 = math.exp %357 : vector<16x140xf32>
    %359 = arith.mulf %358, %350 : vector<16x140xf32>
    %360 = arith.addf %343, %359 : vector<16x140xf32>
    %361 = arith.mulf %359, %350 : vector<16x140xf32>
    %362 = arith.addf %345, %361 : vector<16x140xf32>
    %363 = arith.mulf %359, %351 : vector<16x140xf32>
    %364 = arith.addf %347, %363 : vector<16x140xf32>
    %365 = arith.mulf %358, %351 : vector<16x140xf32>
    %366 = arith.addf %349, %365 : vector<16x140xf32>
    %367 = vector.extract_strided_slice %1 {offsets = [0, 2], sizes = [20, 138], strides = [1, 1]} : vector<20x140xf32> to vector<20x138xf32>
    %368 = vector.extract_strided_slice %1 {offsets = [0, 0], sizes = [20, 2], strides = [1, 1]} : vector<20x140xf32> to vector<20x2xf32>
    %369 = tpu.concatenate %367, %368 in 1 : vector<20x138xf32>, vector<20x2xf32> -> vector<20x140xf32>
    %370 = vector.extract_strided_slice %3 {offsets = [0, 2], sizes = [20, 138], strides = [1, 1]} : vector<20x140xf32> to vector<20x138xf32>
    %371 = vector.extract_strided_slice %3 {offsets = [0, 0], sizes = [20, 2], strides = [1, 1]} : vector<20x140xf32> to vector<20x2xf32>
    %372 = tpu.concatenate %370, %371 in 1 : vector<20x138xf32>, vector<20x2xf32> -> vector<20x140xf32>
    %373 = vector.extract_strided_slice %369 {offsets = [0, 0], sizes = [16, 140], strides = [1, 1]} : vector<20x140xf32> to vector<16x140xf32>
    %374 = vector.extract_strided_slice %372 {offsets = [0, 0], sizes = [16, 140], strides = [1, 1]} : vector<20x140xf32> to vector<16x140xf32>
    %375 = arith.subf %373, %4 : vector<16x140xf32>
    %376 = arith.mulf %375, %375 : vector<16x140xf32>
    %cst_48 = arith.constant 0.000000e+00 : f32
    %377 = vector.broadcast %cst_48 : f32 to vector<16x140xf32>
    %378 = arith.subf %377, %376 : vector<16x140xf32>
    %cst_49 = arith.constant 2.000000e+00 : f32
    %379 = vector.broadcast %cst_49 : f32 to vector<16x140xf32>
    %380 = arith.mulf %378, %379 : vector<16x140xf32>
    %381 = math.exp %380 : vector<16x140xf32>
    %382 = arith.mulf %381, %373 : vector<16x140xf32>
    %383 = arith.addf %360, %382 : vector<16x140xf32>
    %384 = arith.mulf %382, %373 : vector<16x140xf32>
    %385 = arith.addf %362, %384 : vector<16x140xf32>
    %386 = arith.mulf %382, %374 : vector<16x140xf32>
    %387 = arith.addf %364, %386 : vector<16x140xf32>
    %388 = arith.mulf %381, %374 : vector<16x140xf32>
    %389 = arith.addf %366, %388 : vector<16x140xf32>
    %390 = vector.extract_strided_slice %369 {offsets = [1, 0], sizes = [16, 140], strides = [1, 1]} : vector<20x140xf32> to vector<16x140xf32>
    %391 = vector.extract_strided_slice %372 {offsets = [1, 0], sizes = [16, 140], strides = [1, 1]} : vector<20x140xf32> to vector<16x140xf32>
    %392 = arith.subf %390, %4 : vector<16x140xf32>
    %393 = arith.mulf %392, %392 : vector<16x140xf32>
    %cst_50 = arith.constant 0.000000e+00 : f32
    %394 = vector.broadcast %cst_50 : f32 to vector<16x140xf32>
    %395 = arith.subf %394, %393 : vector<16x140xf32>
    %cst_51 = arith.constant 2.000000e+00 : f32
    %396 = vector.broadcast %cst_51 : f32 to vector<16x140xf32>
    %397 = arith.mulf %395, %396 : vector<16x140xf32>
    %398 = math.exp %397 : vector<16x140xf32>
    %399 = arith.mulf %398, %390 : vector<16x140xf32>
    %400 = arith.addf %383, %399 : vector<16x140xf32>
    %401 = arith.mulf %399, %390 : vector<16x140xf32>
    %402 = arith.addf %385, %401 : vector<16x140xf32>
    %403 = arith.mulf %399, %391 : vector<16x140xf32>
    %404 = arith.addf %387, %403 : vector<16x140xf32>
    %405 = arith.mulf %398, %391 : vector<16x140xf32>
    %406 = arith.addf %389, %405 : vector<16x140xf32>
    %407 = vector.extract_strided_slice %369 {offsets = [2, 0], sizes = [16, 140], strides = [1, 1]} : vector<20x140xf32> to vector<16x140xf32>
    %408 = vector.extract_strided_slice %372 {offsets = [2, 0], sizes = [16, 140], strides = [1, 1]} : vector<20x140xf32> to vector<16x140xf32>
    %409 = arith.subf %407, %4 : vector<16x140xf32>
    %410 = arith.mulf %409, %409 : vector<16x140xf32>
    %cst_52 = arith.constant 0.000000e+00 : f32
    %411 = vector.broadcast %cst_52 : f32 to vector<16x140xf32>
    %412 = arith.subf %411, %410 : vector<16x140xf32>
    %cst_53 = arith.constant 2.000000e+00 : f32
    %413 = vector.broadcast %cst_53 : f32 to vector<16x140xf32>
    %414 = arith.mulf %412, %413 : vector<16x140xf32>
    %415 = math.exp %414 : vector<16x140xf32>
    %416 = arith.mulf %415, %407 : vector<16x140xf32>
    %417 = arith.addf %400, %416 : vector<16x140xf32>
    %418 = arith.mulf %416, %407 : vector<16x140xf32>
    %419 = arith.addf %402, %418 : vector<16x140xf32>
    %420 = arith.mulf %416, %408 : vector<16x140xf32>
    %421 = arith.addf %404, %420 : vector<16x140xf32>
    %422 = arith.mulf %415, %408 : vector<16x140xf32>
    %423 = arith.addf %406, %422 : vector<16x140xf32>
    %424 = vector.extract_strided_slice %369 {offsets = [3, 0], sizes = [16, 140], strides = [1, 1]} : vector<20x140xf32> to vector<16x140xf32>
    %425 = vector.extract_strided_slice %372 {offsets = [3, 0], sizes = [16, 140], strides = [1, 1]} : vector<20x140xf32> to vector<16x140xf32>
    %426 = arith.subf %424, %4 : vector<16x140xf32>
    %427 = arith.mulf %426, %426 : vector<16x140xf32>
    %cst_54 = arith.constant 0.000000e+00 : f32
    %428 = vector.broadcast %cst_54 : f32 to vector<16x140xf32>
    %429 = arith.subf %428, %427 : vector<16x140xf32>
    %cst_55 = arith.constant 2.000000e+00 : f32
    %430 = vector.broadcast %cst_55 : f32 to vector<16x140xf32>
    %431 = arith.mulf %429, %430 : vector<16x140xf32>
    %432 = math.exp %431 : vector<16x140xf32>
    %433 = arith.mulf %432, %424 : vector<16x140xf32>
    %434 = arith.addf %417, %433 : vector<16x140xf32>
    %435 = arith.mulf %433, %424 : vector<16x140xf32>
    %436 = arith.addf %419, %435 : vector<16x140xf32>
    %437 = arith.mulf %433, %425 : vector<16x140xf32>
    %438 = arith.addf %421, %437 : vector<16x140xf32>
    %439 = arith.mulf %432, %425 : vector<16x140xf32>
    %440 = arith.addf %423, %439 : vector<16x140xf32>
    %441 = vector.extract_strided_slice %369 {offsets = [4, 0], sizes = [16, 140], strides = [1, 1]} : vector<20x140xf32> to vector<16x140xf32>
    %442 = vector.extract_strided_slice %372 {offsets = [4, 0], sizes = [16, 140], strides = [1, 1]} : vector<20x140xf32> to vector<16x140xf32>
    %443 = arith.subf %441, %4 : vector<16x140xf32>
    %444 = arith.mulf %443, %443 : vector<16x140xf32>
    %cst_56 = arith.constant 0.000000e+00 : f32
    %445 = vector.broadcast %cst_56 : f32 to vector<16x140xf32>
    %446 = arith.subf %445, %444 : vector<16x140xf32>
    %cst_57 = arith.constant 2.000000e+00 : f32
    %447 = vector.broadcast %cst_57 : f32 to vector<16x140xf32>
    %448 = arith.mulf %446, %447 : vector<16x140xf32>
    %449 = math.exp %448 : vector<16x140xf32>
    %450 = arith.mulf %449, %441 : vector<16x140xf32>
    %451 = arith.addf %434, %450 : vector<16x140xf32>
    %452 = arith.mulf %450, %441 : vector<16x140xf32>
    %453 = arith.addf %436, %452 : vector<16x140xf32>
    %454 = arith.mulf %450, %442 : vector<16x140xf32>
    %455 = arith.addf %438, %454 : vector<16x140xf32>
    %456 = arith.mulf %449, %442 : vector<16x140xf32>
    %457 = arith.addf %440, %456 : vector<16x140xf32>
    %c0_58 = arith.constant 0 : index
    %c0_59 = arith.constant 0 : index
    %c0_60 = arith.constant 0 : index
    %458 = vector.load %arg3[%c0_58, %c0_59, %c0_60] : memref<1x16x140xf32, #tpu.memory_space<vmem>>, vector<1x16x140xf32>
    %459 = vector.shape_cast %458 : vector<1x16x140xf32> to vector<16x140xf32>
    %460 = vector.shape_cast %451 : vector<16x140xf32> to vector<1x16x140xf32>
    tpu.vector_store %arg3[%c0_58, %c0_59, %c0_60], %460 {strides = array<i32>} : memref<1x16x140xf32, #tpu.memory_space<vmem>>, vector<1x16x140xf32>,
    %c0_61 = arith.constant 0 : index
    %c0_62 = arith.constant 0 : index
    %c0_63 = arith.constant 0 : index
    %461 = vector.load %arg4[%c0_61, %c0_62, %c0_63] : memref<1x16x140xf32, #tpu.memory_space<vmem>>, vector<1x16x140xf32>
    %462 = vector.shape_cast %461 : vector<1x16x140xf32> to vector<16x140xf32>
    %463 = vector.shape_cast %453 : vector<16x140xf32> to vector<1x16x140xf32>
    tpu.vector_store %arg4[%c0_61, %c0_62, %c0_63], %463 {strides = array<i32>} : memref<1x16x140xf32, #tpu.memory_space<vmem>>, vector<1x16x140xf32>,
    %c0_64 = arith.constant 0 : index
    %c0_65 = arith.constant 0 : index
    %c0_66 = arith.constant 0 : index
    %464 = vector.load %arg5[%c0_64, %c0_65, %c0_66] : memref<1x16x140xf32, #tpu.memory_space<vmem>>, vector<1x16x140xf32>
    %465 = vector.shape_cast %464 : vector<1x16x140xf32> to vector<16x140xf32>
    %466 = vector.shape_cast %455 : vector<16x140xf32> to vector<1x16x140xf32>
    tpu.vector_store %arg5[%c0_64, %c0_65, %c0_66], %466 {strides = array<i32>} : memref<1x16x140xf32, #tpu.memory_space<vmem>>, vector<1x16x140xf32>,
    %c0_67 = arith.constant 0 : index
    %c0_68 = arith.constant 0 : index
    %c0_69 = arith.constant 0 : index
    %467 = vector.load %arg6[%c0_67, %c0_68, %c0_69] : memref<1x16x140xf32, #tpu.memory_space<vmem>>, vector<1x16x140xf32>
    %468 = vector.shape_cast %467 : vector<1x16x140xf32> to vector<16x140xf32>
    %469 = vector.shape_cast %457 : vector<16x140xf32> to vector<1x16x140xf32>
    tpu.vector_store %arg6[%c0_67, %c0_68, %c0_69], %469 {strides = array<i32>} : memref<1x16x140xf32, #tpu.memory_space<vmem>>, vector<1x16x140xf32>,
    return
  }
  func.func @transform_0(%arg0: i32) -> (i32, i32, i32) {
    %c0_i32 = arith.constant 0 : i32
    %c0_i32_0 = arith.constant 0 : i32
    %c0_i32_1 = arith.constant 0 : i32
    return %arg0, %c0_i32, %c0_i32_0 : i32, i32, i32
  }
  func.func @transform_1(%arg0: i32) -> (i32, i32, i32) {
    %c0_i32 = arith.constant 0 : i32
    %c0_i32_0 = arith.constant 0 : i32
    %c0_i32_1 = arith.constant 0 : i32
    return %arg0, %c0_i32, %c0_i32_0 : i32, i32, i32
  }
  func.func @transform_2(%arg0: i32) -> (i32, i32, i32) {
    %c0_i32 = arith.constant 0 : i32
    %c0_i32_0 = arith.constant 0 : i32
    %c0_i32_1 = arith.constant 0 : i32
    return %arg0, %c0_i32, %c0_i32_0 : i32, i32, i32
  }
  func.func @transform_3(%arg0: i32) -> (i32, i32, i32) {
    %c0_i32 = arith.constant 0 : i32
    %c0_i32_0 = arith.constant 0 : i32
    %c0_i32_1 = arith.constant 0 : i32
    return %arg0, %c0_i32, %c0_i32_0 : i32, i32, i32
  }
  func.func @transform_4(%arg0: i32) -> (i32, i32, i32) {
    %c0_i32 = arith.constant 0 : i32
    %c0_i32_0 = arith.constant 0 : i32
    %c0_i32_1 = arith.constant 0 : i32
    return %arg0, %c0_i32, %c0_i32_0 : i32, i32, i32
  }
  func.func @transform_5(%arg0: i32) -> (i32, i32, i32) {
    %c0_i32 = arith.constant 0 : i32
    %c0_i32_0 = arith.constant 0 : i32
    %c0_i32_1 = arith.constant 0 : i32
    return %arg0, %c0_i32, %c0_i32_0 : i32, i32, i32
  }
}

</mosaic_0001>

<llo_original>
// kernel: tpu_custom_call.1
$region0: #{tpu_custom_call.1}
  #allocation0 [shape = 'u32[]', space=smem, size = 0x4, offset = 0x4, fixed_abs, tag = 'smem constant byte address 0x4 - core index']
  #allocation1 [shape = 'u32[72,128]{1,0:T(1,128)}', space=vmem, size = 0x9000, scoped, tag = 'internal scratch']
  %s0 = inlined_call_operand.vmem [shape: f32[2,20,140], index: 0, kind: input, shape index: {}]
  %s1 = inlined_call_operand.vmem [shape: f32[2,20,140], index: 1, kind: input, shape index: {}]
  %s2 = inlined_call_operand.hbm [shape: f32[2,16,140], index: 2, kind: output, shape index: {0}]
  %s3 = inlined_call_operand.hbm [shape: f32[2,16,140], index: 3, kind: output, shape index: {1}]
  %s4 = inlined_call_operand.hbm [shape: f32[2,16,140], index: 4, kind: output, shape index: {2}]
  %s5 = inlined_call_operand.hbm [shape: f32[2,16,140], index: 5, kind: output, shape index: {3}]
  %6 = xla_tuple %s2, %s3, %s4, %s5
  %s7 = sld [smem:[#allocation0]]
  $region65: #{tpu_custom_call.1} parent=0
    _
  %s9 = ssub.s32 1, %s7
  %s10 = scalar_select 0, %s9, %s7
  $region1: #{tpu_custom_call.1} parent=0
    #allocation2 [shape = 'u8[32768]{0}', space=vmem, size = 0x8000, scoped, tag = 'output window, operand 0']
    #allocation3 [shape = 's32[2]{0}', space=sflag, size = 0x8, scoped, tag = 'scoped memory for tpu_custom_call.1']
    #allocation4 [shape = 'u8[32768]{0}', space=vmem, size = 0x8000, scoped, tag = 'output window, operand 1']
    #allocation5 [shape = 's32[2]{0}', space=sflag, size = 0x8, scoped, tag = 'scoped memory for tpu_custom_call.1']
    #allocation6 [shape = 'u8[32768]{0}', space=vmem, size = 0x8000, scoped, tag = 'output window, operand 2']
    #allocation7 [shape = 'u8[32768]{0}', space=vmem, size = 0x8000, scoped, tag = 'output window, operand 3']
    #allocation8 [shape = 's32[2]{0}', space=sflag, size = 0x8, scoped, tag = 'scoped memory for tpu_custom_call.1']
    %11 = vsyncpa [#allocation3], 0
    %s12 = scalar_lea.sflag [#allocation3], 1
    %13 = vsyncpa %s12, 0
    %14 = vsyncpa [#allocation5], 0
    %s15 = scalar_lea.sflag [#allocation5], 1
    %16 = vsyncpa %s15, 0
    %17 = vsyncpa [#allocation8], 0
    %s18 = scalar_lea.sflag [#allocation8], 1
    %19 = vsyncpa %s18, 0
    loop: start=0, step=1, limit=4
    $region2: #{tpu_custom_call.1} parent=1 // loop_pre_header
      _
    $region3: #{tpu_custom_call.1} parent=1 // loop_header
      %s21 = sphi 0, %s25
      %p22 = scmp.ge.s32.totalorder %s21, 4
      %s31 = sphi 0, %s33
      %s34 = sphi 0, %s31
      %s35 = sphi 0, %s34
      %s51 = sphi 0, %s35
      %s57 = sphi 0, %s59
      %s60 = sphi 0, %s57
      %s61 = sphi 0, %s60
      %s77 = sphi 0, %s61
      %s83 = sphi 0, %s85
      %s86 = sphi 0, %s83
      %s87 = sphi 0, %s86
      %s103 = sphi 0, %s87
      %s109 = sphi 0, %s111
      %s112 = sphi 0, %s109
      %s113 = sphi 0, %s112
      %s129 = sphi 0, %s113
      %s135 = sphi 0, %s137
      %s138 = sphi 0, %s135
      %s139 = sphi 0, %s138
      %s155 = sphi 0, %s139
      %s161 = sphi 0, %s163
      %s164 = sphi 0, %s161
      %s165 = sphi 0, %s164
      %s181 = sphi 0, %s165
    $region4: #{tpu_custom_call.1} parent=1 // loop_header_branch
      %24 = sbr.rel (%p22) target = $region8
    $region5: #{tpu_custom_call.1} parent=1 // loop_body
      %s26 = ssub.s32 %s21, 1
      %s27 = ssub.s32 %s21, 2
      %s28 = sadd.s32 %s21, 1
      %s29 = ssub.s32 %s21, %s28
      %p30 = scmp.eq.s32.totalorder %s29, 0
      %s32 = sadd.s32 %s31, 1
      %s33 = scalar_select %p30, %s31, %s32
      %p36 = pneg %p30
      %p37 = scmp.eq.s32.totalorder %s21, 1
      %p38 = por %p36, %p37
      %p39 = scmp.ne.s32.totalorder %s31, %s34
      %p40 = scmp.eq.s32.totalorder %s21, 0
      %p41 = por %p39, %p40
      %p42 = scmp.ne.s32.totalorder %s31, %s34
      %p43 = scmp.eq.s32.totalorder %s26, 1
      %p44 = por %p42, %p43
      %p45 = scmp.ne.s32.totalorder %s34, %s35
      %p46 = scmp.eq.s32.totalorder %s26, 0
      %p47 = por %p45, %p46
      %p48 = scmp.ne.s32.totalorder %s34, %s35
      %p49 = scmp.eq.s32.totalorder %s27, 1
      %p50 = por %p48, %p49
      %p52 = scmp.ne.s32.totalorder %s35, %s51
      %p53 = scmp.eq.s32.totalorder %s27, 0
      %p54 = por %p52, %p53
      %s55 = ssub.s32 %s21, %s28
      %p56 = scmp.eq.s32.totalorder %s55, 0
      %s58 = sadd.s32 %s57, 1
      %s59 = scalar_select %p56, %s57, %s58
      %p62 = pneg %p56
      %p63 = scmp.eq.s32.totalorder %s21, 1
      %p64 = por %p62, %p63
      %p65 = scmp.ne.s32.totalorder %s57, %s60
      %p66 = scmp.eq.s32.totalorder %s21, 0
      %p67 = por %p65, %p66
      %p68 = scmp.ne.s32.totalorder %s57, %s60
      %p69 = scmp.eq.s32.totalorder %s26, 1
      %p70 = por %p68, %p69
      %p71 = scmp.ne.s32.totalorder %s60, %s61
      %p72 = scmp.eq.s32.totalorder %s26, 0
      %p73 = por %p71, %p72
      %p74 = scmp.ne.s32.totalorder %s60, %s61
      %p75 = scmp.eq.s32.totalorder %s27, 1
      %p76 = por %p74, %p75
      %p78 = scmp.ne.s32.totalorder %s61, %s77
      %p79 = scmp.eq.s32.totalorder %s27, 0
      %p80 = por %p78, %p79
      %s81 = ssub.s32 %s21, %s28
      %p82 = scmp.eq.s32.totalorder %s81, 0
      %s84 = sadd.s32 %s83, 1
      %s85 = scalar_select %p82, %s83, %s84
      %p88 = pneg %p82
      %p89 = scmp.eq.s32.totalorder %s21, 1
      %p90 = por %p88, %p89
      %p91 = scmp.ne.s32.totalorder %s83, %s86
      %p92 = scmp.eq.s32.totalorder %s21, 0
      %p93 = por %p91, %p92
      %p94 = scmp.ne.s32.totalorder %s83, %s86
      %p95 = scmp.eq.s32.totalorder %s26, 1
      %p96 = por %p94, %p95
      %p97 = scmp.ne.s32.totalorder %s86, %s87
      %p98 = scmp.eq.s32.totalorder %s26, 0
      %p99 = por %p97, %p98
      %p100 = scmp.ne.s32.totalorder %s86, %s87
      %p101 = scmp.eq.s32.totalorder %s27, 1
      %p102 = por %p100, %p101
      %p104 = scmp.ne.s32.totalorder %s87, %s103
      %p105 = scmp.eq.s32.totalorder %s27, 0
      %p106 = por %p104, %p105
      %s107 = ssub.s32 %s21, %s28
      %p108 = scmp.eq.s32.totalorder %s107, 0
      %s110 = sadd.s32 %s109, 1
      %s111 = scalar_select %p108, %s109, %s110
      %p114 = pneg %p108
      %p115 = scmp.eq.s32.totalorder %s21, 1
      %p116 = por %p114, %p115
      %p117 = scmp.ne.s32.totalorder %s109, %s112
      %p118 = scmp.eq.s32.totalorder %s21, 0
      %p119 = por %p117, %p118
      %p120 = scmp.ne.s32.totalorder %s109, %s112
      %p121 = scmp.eq.s32.totalorder %s26, 1
      %p122 = por %p120, %p121
      %p123 = scmp.ne.s32.totalorder %s112, %s113
      %p124 = scmp.eq.s32.totalorder %s26, 0
      %p125 = por %p123, %p124
      %p126 = scmp.ne.s32.totalorder %s112, %s113
      %p127 = scmp.eq.s32.totalorder %s27, 1
      %p128 = por %p126, %p127
      %p130 = scmp.ne.s32.totalorder %s113, %s129
      %p131 = scmp.eq.s32.totalorder %s27, 0
      %p132 = por %p130, %p131
      %s133 = ssub.s32 %s21, %s28
      %p134 = scmp.eq.s32.totalorder %s133, 0
      %s136 = sadd.s32 %s135, 1
      %s137 = scalar_select %p134, %s135, %s136
      %p140 = pneg %p134
      %p141 = scmp.eq.s32.totalorder %s21, 1
      %p142 = por %p140, %p141
      %p143 = scmp.ne.s32.totalorder %s135, %s138
      %p144 = scmp.eq.s32.totalorder %s21, 0
      %p145 = por %p143, %p144
      %p146 = scmp.ne.s32.totalorder %s135, %s138
      %p147 = scmp.eq.s32.totalorder %s26, 1
      %p148 = por %p146, %p147
      %p149 = scmp.ne.s32.totalorder %s138, %s139
      %p150 = scmp.eq.s32.totalorder %s26, 0
      %p151 = por %p149, %p150
      %p152 = scmp.ne.s32.totalorder %s138, %s139
      %p153 = scmp.eq.s32.totalorder %s27, 1
      %p154 = por %p152, %p153
      %p156 = scmp.ne.s32.totalorder %s139, %s155
      %p157 = scmp.eq.s32.totalorder %s27, 0
      %p158 = por %p156, %p157
      %s159 = ssub.s32 %s21, %s28
      %p160 = scmp.eq.s32.totalorder %s159, 0
      %s162 = sadd.s32 %s161, 1
      %s163 = scalar_select %p160, %s161, %s162
      %p166 = pneg %p160
      %p167 = scmp.eq.s32.totalorder %s21, 1
      %p168 = por %p166, %p167
      %p169 = scmp.ne.s32.totalorder %s161, %s164
      %p170 = scmp.eq.s32.totalorder %s21, 0
      %p171 = por %p169, %p170
      %p172 = scmp.ne.s32.totalorder %s161, %s164
      %p173 = scmp.eq.s32.totalorder %s26, 1
      %p174 = por %p172, %p173
      %p175 = scmp.ne.s32.totalorder %s164, %s165
      %p176 = scmp.eq.s32.totalorder %s26, 0
      %p177 = por %p175, %p176
      %p178 = scmp.ne.s32.totalorder %s164, %s165
      %p179 = scmp.eq.s32.totalorder %s27, 1
      %p180 = por %p178, %p179
      %p182 = scmp.ne.s32.totalorder %s165, %s181
      %p183 = scmp.eq.s32.totalorder %s27, 0
      %p184 = por %p182, %p183
      %p185 = scmp.le.s32.totalorder 1, %s21
      %p186 = scmp.lt.s32.totalorder %s21, 3
      %p187 = pnand %p185, %p186
      %p188 = pneg %p187
      // Predicated region
      $region9: #{tpu_custom_call.1} parent=5 // pred_check
        _
      $region10: #{tpu_custom_call.1} parent=5 // pred_check_branch
        %190 = sbr.rel (%p187) target = $region12
      $region11: #{tpu_custom_call.1} parent=5 // pred_region
        %s191 = ssub.s32 %s21, 1
      $region12: #{tpu_custom_call.1} parent=5 // pred_fallthru
        _
      %p192 = scmp.lt.s32.totalorder %s21, 2
      // Predicated region
      $region13: #{tpu_custom_call.1} parent=5 // pred_check
        %p193 = pneg %p192
      $region14: #{tpu_custom_call.1} parent=5 // pred_check_branch
        %195 = sbr.rel (%p193) target = $region16
      $region15: #{tpu_custom_call.1} parent=5 // pred_region
        // Predicated region
        $region17: #{tpu_custom_call.1} parent=15 // pred_check
          %p196 = pneg %p41
        $region18: #{tpu_custom_call.1} parent=15 // pred_check_branch
          %198 = sbr.rel (%p196) target = $region20
        $region19: #{tpu_custom_call.1} parent=15 // pred_region
          %p199 = scmp.lt.s32.totalorder %s21, 1
          %s200 = scalar_select %p199, %s21, 1
          %s201 = smul.addr %s200, 6
          %s202 = smul.addr %s201, 8
          %s203 = scalar_lea.vmem %s0, %s202
        $region20: #{tpu_custom_call.1} parent=15 // pred_fallthru
          _
        // Predicated region
        $region21: #{tpu_custom_call.1} parent=15 // pred_check
          %p204 = pneg %p67
        $region22: #{tpu_custom_call.1} parent=15 // pred_check_branch
          %206 = sbr.rel (%p204) target = $region24
        $region23: #{tpu_custom_call.1} parent=15 // pred_region
          %p207 = scmp.lt.s32.totalorder %s21, 1
          %s208 = scalar_select %p207, %s21, 1
          %s209 = smul.addr %s208, 6
          %s210 = smul.addr %s209, 8
          %s211 = scalar_lea.vmem %s1, %s210
        $region24: #{tpu_custom_call.1} parent=15 // pred_fallthru
          _
      $region16: #{tpu_custom_call.1} parent=5 // pred_fallthru
        _
      %p212 = scmp.le.s32.totalorder 1, %s21
      %p213 = scmp.lt.s32.totalorder %s21, 3
      %p214 = pnand %p212, %p213
      %p215 = pneg %p214
      // Predicated region
      $region25: #{tpu_custom_call.1} parent=5 // pred_check
        _
      $region26: #{tpu_custom_call.1} parent=5 // pred_check_branch
        %217 = sbr.rel (%p214) target = $region28
      $region27: #{tpu_custom_call.1} parent=5 // pred_region
        %s218 = ssub.s32 %s21, 1
        %p219 = scmp.lt.s32.totalorder %s26, 1
        %s220 = scalar_select %p219, %s26, 1
        %s221 = smul.addr %s220, 6
        %s222 = smul.addr %s221, 8
        %s223 = scalar_lea.vmem %s0, %s222
        %p224 = pneg %p47
        %p225 = pneg %p44
        %p226 = scmp.lt.s32.totalorder %s26, 1
        %s227 = scalar_select %p226, %s26, 1
        %s228 = smul.addr %s227, 6
        %s229 = smul.addr %s228, 8
        %s230 = scalar_lea.vmem %s1, %s229
        %p231 = pneg %p73
        %p232 = pneg %p70
        %p233 = pneg %p99
        %p234 = pneg %p96
        %s235 = sand.u32 %s86, 1
        %s236 = scalar_lea.sflag [#allocation3], %s235
        %s237 = sand.u32 %s86, 1
        %s238 = smul.addr %s237, 32
        %s239 = scalar_lea.vmem [#allocation2], %s238
        %p240 = pneg %p125
        %p241 = pneg %p122
        %s242 = sand.u32 %s26, 1
        %s243 = scalar_lea.sflag [#allocation5], %s242
        %s244 = sand.u32 %s112, 1
        %s245 = smul.addr %s244, 32
        %s246 = scalar_lea.vmem [#allocation4], %s245
        %p247 = pneg %p151
        %p248 = pneg %p148
        %s249 = sand.u32 %s26, 1
        %s250 = scalar_lea.sflag [#allocation5], %s249
        %s251 = sand.u32 %s138, 1
        %s252 = smul.addr %s251, 32
        %s253 = scalar_lea.vmem [#allocation6], %s252
        %p254 = pneg %p177
        %p255 = pneg %p174
        %s256 = sand.u32 %s164, 1
        %s257 = scalar_lea.sflag [#allocation8], %s256
        %s258 = sand.u32 %s164, 1
        %s259 = smul.addr %s258, 32
        %s260 = scalar_lea.vmem [#allocation7], %s259
        %p261 = scmp.lt.s32.totalorder %s26, 1
        %s262 = scalar_select %p261, %s26, 1
        %s263 = smul.addr %s262, 6
        %s264 = smul.addr %s263, 8
        %s265 = scalar_lea.vmem %s0, %s264
        %p266 = scmp.lt.s32.totalorder %s26, 1
        %s267 = scalar_select %p266, %s26, 1
        %s268 = smul.addr %s267, 6
        %s269 = smul.addr %s268, 8
        %s270 = scalar_lea.vmem %s1, %s269
        %v271 = vld [vmem:[%s265] sm:$0xff]
        %v272 = vld [vmem:[%s265 + $0x8] sm:$0xff]
        %v273 = vld [vmem:[%s265 + $0x10] sm:$0xff]
        %v274 = vld [vmem:[%s265 + $0x18] sm:$0xff]
        %v275 = vld [vmem:[%s265 + $0x20] sm:$0xf]
        %v276 = vld [vmem:[%s265 + $0x28] sm:$0xf]
        %v277 = vld [vmem:[%s270] sm:$0xff]
        %v278 = vld [vmem:[%s270 + $0x8] sm:$0xff]
        %v279 = vld [vmem:[%s270 + $0x10] sm:$0xff]
        %v280 = vld [vmem:[%s270 + $0x18] sm:$0xff]
        %v281 = vld [vmem:[%s270 + $0x20] sm:$0xf]
        %v282 = vld [vmem:[%s270 + $0x28] sm:$0xf]
        %286 = vrot.lane.b32.xlu0 %v272, 118
        %v287 = vpop.permute.xlu0 %286
        %288 = vrot.lane.b32.xlu0 %v274, 118
        %v289 = vpop.permute.xlu0 %288
        %290 = vrot.lane.b32.xlu0 %v276, 118
        %v291 = vpop.permute.xlu0 %290
        %298 = vrot.lane.b32.xlu0 %v271, 2
        %v299 = vpop.permute.xlu0 %298
        %300 = vrot.lane.b32.xlu0 %v272, 2
        %v301 = vpop.permute.xlu0 %300
        %302 = vrot.lane.b32.xlu0 %v273, 2
        %v303 = vpop.permute.xlu0 %302
        %304 = vrot.lane.b32.xlu0 %v274, 2
        %v305 = vpop.permute.xlu0 %304
        %306 = vrot.lane.b32.xlu0 %v275, 2
        %v307 = vpop.permute.xlu0 %306
        %308 = vrot.lane.b32.xlu0 %v276, 2
        %v309 = vpop.permute.xlu0 %308
        %vm310 = vcmask 15360
        %v311 = vsel %vm310, %v299, %v301
        %v312 = vsel %vm310, %v303, %v305
        %v313 = vsel %vm310, %v307, %v309
        %v320 = vsel %vm310, %v287, %v299
        %v321 = vsel %vm310, %v289, %v303
        %v322 = vsel %vm310, %v291, %v307
        %326 = vrot.lane.b32.xlu0 %v278, 118
        %v327 = vpop.permute.xlu0 %326
        %328 = vrot.lane.b32.xlu0 %v280, 118
        %v329 = vpop.permute.xlu0 %328
        %330 = vrot.lane.b32.xlu0 %v282, 118
        %v331 = vpop.permute.xlu0 %330
        %338 = vrot.lane.b32.xlu0 %v277, 2
        %v339 = vpop.permute.xlu0 %338
        %340 = vrot.lane.b32.xlu0 %v278, 2
        %v341 = vpop.permute.xlu0 %340
        %342 = vrot.lane.b32.xlu0 %v279, 2
        %v343 = vpop.permute.xlu0 %342
        %344 = vrot.lane.b32.xlu0 %v280, 2
        %v345 = vpop.permute.xlu0 %344
        %346 = vrot.lane.b32.xlu0 %v281, 2
        %v347 = vpop.permute.xlu0 %346
        %348 = vrot.lane.b32.xlu0 %v282, 2
        %v349 = vpop.permute.xlu0 %348
        %v350 = vsel %vm310, %v339, %v341
        %v351 = vsel %vm310, %v343, %v345
        %v352 = vsel %vm310, %v347, %v349
        %v359 = vsel %vm310, %v327, %v339
        %v360 = vsel %vm310, %v329, %v343
        %v361 = vsel %vm310, %v331, %v347
        %vm362 = vcmask 1045504
        %v363 = vrot.slane %v271, 2
        %v364 = vrot.slane %v273, 2
        %v365 = vsel %vm362, %v363, %v364
        %v366 = vrot.slane %v272, 2
        %v367 = vrot.slane %v274, 2
        %v368 = vsel %vm362, %v366, %v367
        %v369 = vrot.slane %v275, 2
        %v370 = vsel %vm362, %v364, %v369
        %v371 = vrot.slane %v276, 2
        %v372 = vsel %vm362, %v367, %v371
        %v377 = vsub.f32 %v320, %v365
        %v378 = vsub.f32 %v311, %v368
        %v379 = vsub.f32 %v321, %v370
        %v380 = vsub.f32 %v312, %v372
        %v381 = vmul.f32 %v377, %v377
        %v382 = vmul.f32 %v378, %v378
        %v383 = vmul.f32 %v379, %v379
        %v384 = vmul.f32 %v380, %v380
        %v385 = vsub.f32 0.0, %v381
        %v386 = vsub.f32 0.0, %v382
        %v387 = vsub.f32 0.0, %v383
        %v388 = vsub.f32 0.0, %v384
        %v389 = vmul.f32 %v385, 2.0
        %v390 = vmul.f32 %v386, 2.0
        %v391 = vmul.f32 %v387, 2.0
        %v392 = vmul.f32 %v388, 2.0
        %v393 = vmul.f32 %v389, 1.442695
        %v394 = vpow.pop %v393
        %v395 = vmul.f32 %v390, 1.442695
        %v396 = vpow.pop %v395
        %v397 = vmul.f32 %v391, 1.442695
        %v398 = vpow.pop %v397
        %v399 = vmul.f32 %v392, 1.442695
        %v400 = vpow.pop %v399
        %v401 = vmul.f32 %v394, %v320
        %v402 = vmul.f32 %v396, %v311
        %v403 = vmul.f32 %v398, %v321
        %v404 = vmul.f32 %v400, %v312
        %v405 = vadd.f32 %v401, 0.0
        %v406 = vadd.f32 %v402, 0.0
        %v407 = vadd.f32 %v403, 0.0
        %v408 = vadd.f32 %v404, 0.0
        %v409 = vmul.f32 %v401, %v320
        %v410 = vmul.f32 %v402, %v311
        %v411 = vmul.f32 %v403, %v321
        %v412 = vmul.f32 %v404, %v312
        %v413 = vadd.f32 %v409, 0.0
        %v414 = vadd.f32 %v410, 0.0
        %v415 = vadd.f32 %v411, 0.0
        %v416 = vadd.f32 %v412, 0.0
        %v417 = vmul.f32 %v401, %v359
        %v418 = vmul.f32 %v402, %v350
        %v419 = vmul.f32 %v403, %v360
        %v420 = vmul.f32 %v404, %v351
        %v421 = vadd.f32 %v417, 0.0
        %v422 = vadd.f32 %v418, 0.0
        %v423 = vadd.f32 %v419, 0.0
        %v424 = vadd.f32 %v420, 0.0
        %v425 = vmul.f32 %v394, %v359
        %v426 = vmul.f32 %v396, %v350
        %v427 = vmul.f32 %v398, %v360
        %v428 = vmul.f32 %v400, %v351
        %v429 = vadd.f32 %v425, 0.0
        %v430 = vadd.f32 %v426, 0.0
        %v431 = vadd.f32 %v427, 0.0
        %v432 = vadd.f32 %v428, 0.0
        %vm433 = vcmask 1046528
        %v434 = vrot.slane %v271, 1
        %v435 = vrot.slane %v273, 1
        %v436 = vsel %vm433, %v434, %v435
        %v437 = vrot.slane %v272, 1
        %v438 = vrot.slane %v274, 1
        %v439 = vsel %vm433, %v437, %v438
        %v440 = vrot.slane %v275, 1
        %v441 = vsel %vm433, %v435, %v440
        %v442 = vrot.slane %v276, 1
        %v443 = vsel %vm433, %v438, %v442
        %v450 = vsub.f32 %v320, %v436
        %v451 = vsub.f32 %v311, %v439
        %v452 = vsub.f32 %v321, %v441
        %v453 = vsub.f32 %v312, %v443
        %v454 = vsub.f32 %v322, %v440
        %v455 = vsub.f32 %v313, %v442
        %v456 = vmul.f32 %v450, %v450
        %v457 = vmul.f32 %v451, %v451
        %v458 = vmul.f32 %v452, %v452
        %v459 = vmul.f32 %v453, %v453
        %v460 = vmul.f32 %v454, %v454
        %v461 = vmul.f32 %v455, %v455
        %v462 = vsub.f32 0.0, %v456
        %v463 = vsub.f32 0.0, %v457
        %v464 = vsub.f32 0.0, %v458
        %v465 = vsub.f32 0.0, %v459
        %v466 = vsub.f32 0.0, %v460
        %v467 = vsub.f32 0.0, %v461
        %v468 = vmul.f32 %v462, 2.0
        %v469 = vmul.f32 %v463, 2.0
        %v470 = vmul.f32 %v464, 2.0
        %v471 = vmul.f32 %v465, 2.0
        %v472 = vmul.f32 %v466, 2.0
        %v473 = vmul.f32 %v467, 2.0
        %v474 = vmul.f32 %v468, 1.442695
        %v475 = vpow.pop %v474
        %v476 = vmul.f32 %v469, 1.442695
        %v477 = vpow.pop %v476
        %v478 = vmul.f32 %v470, 1.442695
        %v479 = vpow.pop %v478
        %v480 = vmul.f32 %v471, 1.442695
        %v481 = vpow.pop %v480
        %v482 = vmul.f32 %v472, 1.442695
        %v483 = vpow.pop %v482
        %v484 = vmul.f32 %v473, 1.442695
        %v485 = vpow.pop %v484
        %v486 = vmul.f32 %v475, %v320
        %v487 = vmul.f32 %v477, %v311
        %v488 = vmul.f32 %v479, %v321
        %v489 = vmul.f32 %v481, %v312
        %v490 = vmul.f32 %v483, %v322
        %v491 = vmul.f32 %v485, %v313
        %v498 = vrot.slane %v486, 1
        %v499 = vrot.slane %v488, 1
        %v500 = vsel %vm433, %v498, %v499
        %v501 = vrot.slane %v487, 1
        %v502 = vrot.slane %v489, 1
        %v503 = vsel %vm433, %v501, %v502
        %v504 = vrot.slane %v490, 1
        %v505 = vsel %vm433, %v499, %v504
        %v506 = vrot.slane %v491, 1
        %v507 = vsel %vm433, %v502, %v506
        %v512 = vadd.f32 %v405, %v500
        %v513 = vadd.f32 %v406, %v503
        %v514 = vadd.f32 %v407, %v505
        %v515 = vadd.f32 %v408, %v507
        %v516 = vmul.f32 %v486, %v320
        %v517 = vmul.f32 %v487, %v311
        %v518 = vmul.f32 %v488, %v321
        %v519 = vmul.f32 %v489, %v312
        %v520 = vmul.f32 %v490, %v322
        %v521 = vmul.f32 %v491, %v313
        %v528 = vrot.slane %v516, 1
        %v529 = vrot.slane %v518, 1
        %v530 = vsel %vm433, %v528, %v529
        %v531 = vrot.slane %v517, 1
        %v532 = vrot.slane %v519, 1
        %v533 = vsel %vm433, %v531, %v532
        %v534 = vrot.slane %v520, 1
        %v535 = vsel %vm433, %v529, %v534
        %v536 = vrot.slane %v521, 1
        %v537 = vsel %vm433, %v532, %v536
        %v542 = vadd.f32 %v413, %v530
        %v543 = vadd.f32 %v414, %v533
        %v544 = vadd.f32 %v415, %v535
        %v545 = vadd.f32 %v416, %v537
        %v546 = vmul.f32 %v486, %v359
        %v547 = vmul.f32 %v487, %v350
        %v548 = vmul.f32 %v488, %v360
        %v549 = vmul.f32 %v489, %v351
        %v550 = vmul.f32 %v490, %v361
        %v551 = vmul.f32 %v491, %v352
        %v558 = vrot.slane %v546, 1
        %v559 = vrot.slane %v548, 1
        %v560 = vsel %vm433, %v558, %v559
        %v561 = vrot.slane %v547, 1
        %v562 = vrot.slane %v549, 1
        %v563 = vsel %vm433, %v561, %v562
        %v564 = vrot.slane %v550, 1
        %v565 = vsel %vm433, %v559, %v564
        %v566 = vrot.slane %v551, 1
        %v567 = vsel %vm433, %v562, %v566
        %v572 = vadd.f32 %v421, %v560
        %v573 = vadd.f32 %v422, %v563
        %v574 = vadd.f32 %v423, %v565
        %v575 = vadd.f32 %v424, %v567
        %v576 = vmul.f32 %v475, %v359
        %v577 = vmul.f32 %v477, %v350
        %v578 = vmul.f32 %v479, %v360
        %v579 = vmul.f32 %v481, %v351
        %v580 = vmul.f32 %v483, %v361
        %v581 = vmul.f32 %v485, %v352
        %v588 = vrot.slane %v576, 1
        %v589 = vrot.slane %v578, 1
        %v590 = vsel %vm433, %v588, %v589
        %v591 = vrot.slane %v577, 1
        %v592 = vrot.slane %v579, 1
        %v593 = vsel %vm433, %v591, %v592
        %v594 = vrot.slane %v580, 1
        %v595 = vsel %vm433, %v589, %v594
        %v596 = vrot.slane %v581, 1
        %v597 = vsel %vm433, %v592, %v596
        %v602 = vadd.f32 %v429, %v590
        %v603 = vadd.f32 %v430, %v593
        %v604 = vadd.f32 %v431, %v595
        %v605 = vadd.f32 %v432, %v597
        %v606 = vsub.f32 %v320, %v271
        %v607 = vsub.f32 %v311, %v272
        %v608 = vsub.f32 %v321, %v273
        %v609 = vsub.f32 %v312, %v274
        %v610 = vsub.f32 %v322, %v275
        %v611 = vsub.f32 %v313, %v276
        %v612 = vmul.f32 %v606, %v606
        %v613 = vmul.f32 %v607, %v607
        %v614 = vmul.f32 %v608, %v608
        %v615 = vmul.f32 %v609, %v609
        %v616 = vmul.f32 %v610, %v610
        %v617 = vmul.f32 %v611, %v611
        %v618 = vsub.f32 0.0, %v612
        %v619 = vsub.f32 0.0, %v613
        %v620 = vsub.f32 0.0, %v614
        %v621 = vsub.f32 0.0, %v615
        %v622 = vsub.f32 0.0, %v616
        %v623 = vsub.f32 0.0, %v617
        %v624 = vmul.f32 %v618, 2.0
        %v625 = vmul.f32 %v619, 2.0
        %v626 = vmul.f32 %v620, 2.0
        %v627 = vmul.f32 %v621, 2.0
        %v628 = vmul.f32 %v622, 2.0
        %v629 = vmul.f32 %v623, 2.0
        %v630 = vmul.f32 %v624, 1.442695
        %v631 = vpow.pop %v630
        %v632 = vmul.f32 %v625, 1.442695
        %v633 = vpow.pop %v632
        %v634 = vmul.f32 %v626, 1.442695
        %v635 = vpow.pop %v634
        %v636 = vmul.f32 %v627, 1.442695
        %v637 = vpow.pop %v636
        %v638 = vmul.f32 %v628, 1.442695
        %v639 = vpow.pop %v638
        %v640 = vmul.f32 %v629, 1.442695
        %v641 = vpow.pop %v640
        %v642 = vmul.f32 %v631, %v320
        %v643 = vmul.f32 %v633, %v311
        %v644 = vmul.f32 %v635, %v321
        %v645 = vmul.f32 %v637, %v312
        %v646 = vmul.f32 %v639, %v322
        %v647 = vmul.f32 %v641, %v313
        %v654 = vrot.slane %v642, 2
        %v655 = vrot.slane %v644, 2
        %v656 = vsel %vm362, %v654, %v655
        %v657 = vrot.slane %v643, 2
        %v658 = vrot.slane %v645, 2
        %v659 = vsel %vm362, %v657, %v658
        %v660 = vrot.slane %v646, 2
        %v661 = vsel %vm362, %v655, %v660
        %v662 = vrot.slane %v647, 2
        %v663 = vsel %vm362, %v658, %v662
        %v668 = vadd.f32 %v512, %v656
        %v669 = vadd.f32 %v513, %v659
        %v670 = vadd.f32 %v514, %v661
        %v671 = vadd.f32 %v515, %v663
        %v672 = vmul.f32 %v642, %v320
        %v673 = vmul.f32 %v643, %v311
        %v674 = vmul.f32 %v644, %v321
        %v675 = vmul.f32 %v645, %v312
        %v676 = vmul.f32 %v646, %v322
        %v677 = vmul.f32 %v647, %v313
        %v684 = vrot.slane %v672, 2
        %v685 = vrot.slane %v674, 2
        %v686 = vsel %vm362, %v684, %v685
        %v687 = vrot.slane %v673, 2
        %v688 = vrot.slane %v675, 2
        %v689 = vsel %vm362, %v687, %v688
        %v690 = vrot.slane %v676, 2
        %v691 = vsel %vm362, %v685, %v690
        %v692 = vrot.slane %v677, 2
        %v693 = vsel %vm362, %v688, %v692
        %v698 = vadd.f32 %v542, %v686
        %v699 = vadd.f32 %v543, %v689
        %v700 = vadd.f32 %v544, %v691
        %v701 = vadd.f32 %v545, %v693
        %v702 = vmul.f32 %v642, %v359
        %v703 = vmul.f32 %v643, %v350
        %v704 = vmul.f32 %v644, %v360
        %v705 = vmul.f32 %v645, %v351
        %v706 = vmul.f32 %v646, %v361
        %v707 = vmul.f32 %v647, %v352
        %v714 = vrot.slane %v702, 2
        %v715 = vrot.slane %v704, 2
        %v716 = vsel %vm362, %v714, %v715
        %v717 = vrot.slane %v703, 2
        %v718 = vrot.slane %v705, 2
        %v719 = vsel %vm362, %v717, %v718
        %v720 = vrot.slane %v706, 2
        %v721 = vsel %vm362, %v715, %v720
        %v722 = vrot.slane %v707, 2
        %v723 = vsel %vm362, %v718, %v722
        %v728 = vadd.f32 %v572, %v716
        %v729 = vadd.f32 %v573, %v719
        %v730 = vadd.f32 %v574, %v721
        %v731 = vadd.f32 %v575, %v723
        %v732 = vmul.f32 %v631, %v359
        %v733 = vmul.f32 %v633, %v350
        %v734 = vmul.f32 %v635, %v360
        %v735 = vmul.f32 %v637, %v351
        %v736 = vmul.f32 %v639, %v361
        %v737 = vmul.f32 %v641, %v352
        %v744 = vrot.slane %v732, 2
        %v745 = vrot.slane %v734, 2
        %v746 = vsel %vm362, %v744, %v745
        %v747 = vrot.slane %v733, 2
        %v748 = vrot.slane %v735, 2
        %v749 = vsel %vm362, %v747, %v748
        %v750 = vrot.slane %v736, 2
        %v751 = vsel %vm362, %v745, %v750
        %v752 = vrot.slane %v737, 2
        %v753 = vsel %vm362, %v748, %v752
        %v758 = vadd.f32 %v602, %v746
        %v759 = vadd.f32 %v603, %v749
        %v760 = vadd.f32 %v604, %v751
        %v761 = vadd.f32 %v605, %v753
        %vm762 = vcmask 1040384
        %v763 = vrot.slane %v271, 7
        %v764 = vrot.slane %v272, 7
        %v765 = vrot.slane %v273, 7
        %v766 = vsel %vm762, %v763, %v765
        %v767 = vrot.slane %v274, 7
        %v768 = vsel %vm762, %v764, %v767
        %v769 = vrot.slane %v275, 7
        %v770 = vsel %vm762, %v765, %v769
        %v771 = vrot.slane %v276, 7
        %v772 = vsel %vm762, %v767, %v771
        %v779 = vsub.f32 %v320, %v763
        %v780 = vsub.f32 %v311, %v764
        %v781 = vsub.f32 %v321, %v766
        %v782 = vsub.f32 %v312, %v768
        %v783 = vsub.f32 %v322, %v770
        %v784 = vsub.f32 %v313, %v772
        %v785 = vmul.f32 %v779, %v779
        %v786 = vmul.f32 %v780, %v780
        %v787 = vmul.f32 %v781, %v781
        %v788 = vmul.f32 %v782, %v782
        %v789 = vmul.f32 %v783, %v783
        %v790 = vmul.f32 %v784, %v784
        %v791 = vsub.f32 0.0, %v785
        %v792 = vsub.f32 0.0, %v786
        %v793 = vsub.f32 0.0, %v787
        %v794 = vsub.f32 0.0, %v788
        %v795 = vsub.f32 0.0, %v789
        %v796 = vsub.f32 0.0, %v790
        %v797 = vmul.f32 %v791, 2.0
        %v798 = vmul.f32 %v792, 2.0
        %v799 = vmul.f32 %v793, 2.0
        %v800 = vmul.f32 %v794, 2.0
        %v801 = vmul.f32 %v795, 2.0
        %v802 = vmul.f32 %v796, 2.0
        %v803 = vmul.f32 %v797, 1.442695
        %v804 = vpow.pop %v803
        %v805 = vmul.f32 %v798, 1.442695
        %v806 = vpow.pop %v805
        %v807 = vmul.f32 %v799, 1.442695
        %v808 = vpow.pop %v807
        %v809 = vmul.f32 %v800, 1.442695
        %v810 = vpow.pop %v809
        %v811 = vmul.f32 %v801, 1.442695
        %v812 = vpow.pop %v811
        %v813 = vmul.f32 %v802, 1.442695
        %v814 = vpow.pop %v813
        %v815 = vmul.f32 %v804, %v320
        %v816 = vmul.f32 %v806, %v311
        %v817 = vmul.f32 %v808, %v321
        %v818 = vmul.f32 %v810, %v312
        %v819 = vmul.f32 %v812, %v322
        %v820 = vmul.f32 %v814, %v313
        %vm827 = vcmask 1044480
        %v828 = vrot.slane %v815, 3
        %v829 = vrot.slane %v817, 3
        %v830 = vsel %vm827, %v828, %v829
        %v831 = vrot.slane %v816, 3
        %v832 = vrot.slane %v818, 3
        %v833 = vsel %vm827, %v831, %v832
        %v834 = vrot.slane %v819, 3
        %v835 = vsel %vm827, %v829, %v834
        %v836 = vrot.slane %v820, 3
        %v837 = vsel %vm827, %v832, %v836
        %v842 = vadd.f32 %v668, %v830
        %v843 = vadd.f32 %v669, %v833
        %v844 = vadd.f32 %v670, %v835
        %v845 = vadd.f32 %v671, %v837
        %v846 = vmul.f32 %v815, %v320
        %v847 = vmul.f32 %v816, %v311
        %v848 = vmul.f32 %v817, %v321
        %v849 = vmul.f32 %v818, %v312
        %v850 = vmul.f32 %v819, %v322
        %v851 = vmul.f32 %v820, %v313
        %v858 = vrot.slane %v846, 3
        %v859 = vrot.slane %v848, 3
        %v860 = vsel %vm827, %v858, %v859
        %v861 = vrot.slane %v847, 3
        %v862 = vrot.slane %v849, 3
        %v863 = vsel %vm827, %v861, %v862
        %v864 = vrot.slane %v850, 3
        %v865 = vsel %vm827, %v859, %v864
        %v866 = vrot.slane %v851, 3
        %v867 = vsel %vm827, %v862, %v866
        %v872 = vadd.f32 %v698, %v860
        %v873 = vadd.f32 %v699, %v863
        %v874 = vadd.f32 %v700, %v865
        %v875 = vadd.f32 %v701, %v867
        %v876 = vmul.f32 %v815, %v359
        %v877 = vmul.f32 %v816, %v350
        %v878 = vmul.f32 %v817, %v360
        %v879 = vmul.f32 %v818, %v351
        %v880 = vmul.f32 %v819, %v361
        %v881 = vmul.f32 %v820, %v352
        %v888 = vrot.slane %v876, 3
        %v889 = vrot.slane %v878, 3
        %v890 = vsel %vm827, %v888, %v889
        %v891 = vrot.slane %v877, 3
        %v892 = vrot.slane %v879, 3
        %v893 = vsel %vm827, %v891, %v892
        %v894 = vrot.slane %v880, 3
        %v895 = vsel %vm827, %v889, %v894
        %v896 = vrot.slane %v881, 3
        %v897 = vsel %vm827, %v892, %v896
        %v902 = vadd.f32 %v728, %v890
        %v903 = vadd.f32 %v729, %v893
        %v904 = vadd.f32 %v730, %v895
        %v905 = vadd.f32 %v731, %v897
        %v906 = vmul.f32 %v804, %v359
        %v907 = vmul.f32 %v806, %v350
        %v908 = vmul.f32 %v808, %v360
        %v909 = vmul.f32 %v810, %v351
        %v910 = vmul.f32 %v812, %v361
        %v911 = vmul.f32 %v814, %v352
        %v918 = vrot.slane %v906, 3
        %v919 = vrot.slane %v908, 3
        %v920 = vsel %vm827, %v918, %v919
        %v921 = vrot.slane %v907, 3
        %v922 = vrot.slane %v909, 3
        %v923 = vsel %vm827, %v921, %v922
        %v924 = vrot.slane %v910, 3
        %v925 = vsel %vm827, %v919, %v924
        %v926 = vrot.slane %v911, 3
        %v927 = vsel %vm827, %v922, %v926
        %v932 = vadd.f32 %v758, %v920
        %v933 = vadd.f32 %v759, %v923
        %v934 = vadd.f32 %v760, %v925
        %v935 = vadd.f32 %v761, %v927
        %vm936 = vcmask 1041408
        %v937 = vrot.slane %v271, 6
        %v938 = vrot.slane %v272, 6
        %v939 = vrot.slane %v273, 6
        %v940 = vsel %vm936, %v937, %v939
        %v941 = vrot.slane %v274, 6
        %v942 = vsel %vm936, %v938, %v941
        %v943 = vrot.slane %v275, 6
        %v944 = vsel %vm936, %v939, %v943
        %v945 = vrot.slane %v276, 6
        %v946 = vsel %vm936, %v941, %v945
        %v953 = vsub.f32 %v320, %v937
        %v954 = vsub.f32 %v311, %v938
        %v955 = vsub.f32 %v321, %v940
        %v956 = vsub.f32 %v312, %v942
        %v957 = vsub.f32 %v322, %v944
        %v958 = vsub.f32 %v313, %v946
        %v959 = vmul.f32 %v953, %v953
        %v960 = vmul.f32 %v954, %v954
        %v961 = vmul.f32 %v955, %v955
        %v962 = vmul.f32 %v956, %v956
        %v963 = vmul.f32 %v957, %v957
        %v964 = vmul.f32 %v958, %v958
        %v965 = vsub.f32 0.0, %v959
        %v966 = vsub.f32 0.0, %v960
        %v967 = vsub.f32 0.0, %v961
        %v968 = vsub.f32 0.0, %v962
        %v969 = vsub.f32 0.0, %v963
        %v970 = vsub.f32 0.0, %v964
        %v971 = vmul.f32 %v965, 2.0
        %v972 = vmul.f32 %v966, 2.0
        %v973 = vmul.f32 %v967, 2.0
        %v974 = vmul.f32 %v968, 2.0
        %v975 = vmul.f32 %v969, 2.0
        %v976 = vmul.f32 %v970, 2.0
        %v977 = vmul.f32 %v971, 1.442695
        %v978 = vpow.pop %v977
        %v979 = vmul.f32 %v972, 1.442695
        %v980 = vpow.pop %v979
        %v981 = vmul.f32 %v973, 1.442695
        %v982 = vpow.pop %v981
        %v983 = vmul.f32 %v974, 1.442695
        %v984 = vpow.pop %v983
        %v985 = vmul.f32 %v975, 1.442695
        %v986 = vpow.pop %v985
        %v987 = vmul.f32 %v976, 1.442695
        %v988 = vpow.pop %v987
        %v989 = vmul.f32 %v978, %v320
        %v990 = vmul.f32 %v980, %v311
        %v991 = vmul.f32 %v982, %v321
        %v992 = vmul.f32 %v984, %v312
        %v993 = vmul.f32 %v986, %v322
        %v994 = vmul.f32 %v988, %v313
        %vm1001 = vcmask 1043456
        %v1002 = vrot.slane %v989, 4
        %v1003 = vrot.slane %v991, 4
        %v1004 = vsel %vm1001, %v1002, %v1003
        %v1005 = vrot.slane %v990, 4
        %v1006 = vrot.slane %v992, 4
        %v1007 = vsel %vm1001, %v1005, %v1006
        %v1008 = vrot.slane %v993, 4
        %v1009 = vsel %vm1001, %v1003, %v1008
        %v1010 = vrot.slane %v994, 4
        %v1011 = vsel %vm1001, %v1006, %v1010
        %v1016 = vadd.f32 %v842, %v1004
        %v1017 = vadd.f32 %v843, %v1007
        %v1018 = vadd.f32 %v844, %v1009
        %v1019 = vadd.f32 %v845, %v1011
        %v1020 = vmul.f32 %v989, %v320
        %v1021 = vmul.f32 %v990, %v311
        %v1022 = vmul.f32 %v991, %v321
        %v1023 = vmul.f32 %v992, %v312
        %v1024 = vmul.f32 %v993, %v322
        %v1025 = vmul.f32 %v994, %v313
        %v1032 = vrot.slane %v1020, 4
        %v1033 = vrot.slane %v1022, 4
        %v1034 = vsel %vm1001, %v1032, %v1033
        %v1035 = vrot.slane %v1021, 4
        %v1036 = vrot.slane %v1023, 4
        %v1037 = vsel %vm1001, %v1035, %v1036
        %v1038 = vrot.slane %v1024, 4
        %v1039 = vsel %vm1001, %v1033, %v1038
        %v1040 = vrot.slane %v1025, 4
        %v1041 = vsel %vm1001, %v1036, %v1040
        %v1046 = vadd.f32 %v872, %v1034
        %v1047 = vadd.f32 %v873, %v1037
        %v1048 = vadd.f32 %v874, %v1039
        %v1049 = vadd.f32 %v875, %v1041
        %v1050 = vmul.f32 %v989, %v359
        %v1051 = vmul.f32 %v990, %v350
        %v1052 = vmul.f32 %v991, %v360
        %v1053 = vmul.f32 %v992, %v351
        %v1054 = vmul.f32 %v993, %v361
        %v1055 = vmul.f32 %v994, %v352
        %v1062 = vrot.slane %v1050, 4
        %v1063 = vrot.slane %v1052, 4
        %v1064 = vsel %vm1001, %v1062, %v1063
        %v1065 = vrot.slane %v1051, 4
        %v1066 = vrot.slane %v1053, 4
        %v1067 = vsel %vm1001, %v1065, %v1066
        %v1068 = vrot.slane %v1054, 4
        %v1069 = vsel %vm1001, %v1063, %v1068
        %v1070 = vrot.slane %v1055, 4
        %v1071 = vsel %vm1001, %v1066, %v1070
        %v1076 = vadd.f32 %v902, %v1064
        %v1077 = vadd.f32 %v903, %v1067
        %v1078 = vadd.f32 %v904, %v1069
        %v1079 = vadd.f32 %v905, %v1071
        %v1080 = vmul.f32 %v978, %v359
        %v1081 = vmul.f32 %v980, %v350
        %v1082 = vmul.f32 %v982, %v360
        %v1083 = vmul.f32 %v984, %v351
        %v1084 = vmul.f32 %v986, %v361
        %v1085 = vmul.f32 %v988, %v352
        %v1092 = vrot.slane %v1080, 4
        %v1093 = vrot.slane %v1082, 4
        %v1094 = vsel %vm1001, %v1092, %v1093
        %v1095 = vrot.slane %v1081, 4
        %v1096 = vrot.slane %v1083, 4
        %v1097 = vsel %vm1001, %v1095, %v1096
        %v1098 = vrot.slane %v1084, 4
        %v1099 = vsel %vm1001, %v1093, %v1098
        %v1100 = vrot.slane %v1085, 4
        %v1101 = vsel %vm1001, %v1096, %v1100
        %v1106 = vadd.f32 %v932, %v1094
        %v1107 = vadd.f32 %v933, %v1097
        %v1108 = vadd.f32 %v934, %v1099
        %v1109 = vadd.f32 %v935, %v1101
        %1110 = vrot.lane.b32.xlu0 %v272, 117
        %v1111 = vpop.permute.xlu0 %1110
        %1112 = vrot.lane.b32.xlu0 %v274, 117
        %v1113 = vpop.permute.xlu0 %1112
        %1114 = vrot.lane.b32.xlu0 %v276, 117
        %v1115 = vpop.permute.xlu0 %1114
        %1119 = vrot.lane.b32.xlu0 %v271, 1
        %v1120 = vpop.permute.xlu0 %1119
        %1121 = vrot.lane.b32.xlu0 %v272, 1
        %v1122 = vpop.permute.xlu0 %1121
        %1123 = vrot.lane.b32.xlu0 %v273, 1
        %v1124 = vpop.permute.xlu0 %1123
        %1125 = vrot.lane.b32.xlu0 %v274, 1
        %v1126 = vpop.permute.xlu0 %1125
        %1127 = vrot.lane.b32.xlu0 %v275, 1
        %v1128 = vpop.permute.xlu0 %1127
        %1129 = vrot.lane.b32.xlu0 %v276, 1
        %v1130 = vpop.permute.xlu0 %1129
        %vm1131 = vcmask 7168
        %v1132 = vsel %vm1131, %v1120, %v1122
        %v1133 = vsel %vm1131, %v1124, %v1126
        %v1134 = vsel %vm1131, %v1128, %v1130
        %v1141 = vsel %vm1131, %v1111, %v1120
        %v1142 = vsel %vm1131, %v1113, %v1124
        %v1143 = vsel %vm1131, %v1115, %v1128
        %1144 = vrot.lane.b32.xlu0 %v278, 117
        %v1145 = vpop.permute.xlu0 %1144
        %1146 = vrot.lane.b32.xlu0 %v280, 117
        %v1147 = vpop.permute.xlu0 %1146
        %1148 = vrot.lane.b32.xlu0 %v282, 117
        %v1149 = vpop.permute.xlu0 %1148
        %1153 = vrot.lane.b32.xlu0 %v277, 1
        %v1154 = vpop.permute.xlu0 %1153
        %1155 = vrot.lane.b32.xlu0 %v278, 1
        %v1156 = vpop.permute.xlu0 %1155
        %1157 = vrot.lane.b32.xlu0 %v279, 1
        %v1158 = vpop.permute.xlu0 %1157
        %1159 = vrot.lane.b32.xlu0 %v280, 1
        %v1160 = vpop.permute.xlu0 %1159
        %1161 = vrot.lane.b32.xlu0 %v281, 1
        %v1162 = vpop.permute.xlu0 %1161
        %1163 = vrot.lane.b32.xlu0 %v282, 1
        %v1164 = vpop.permute.xlu0 %1163
        %v1165 = vsel %vm1131, %v1154, %v1156
        %v1166 = vsel %vm1131, %v1158, %v1160
        %v1167 = vsel %vm1131, %v1162, %v1164
        %v1174 = vsel %vm1131, %v1145, %v1154
        %v1175 = vsel %vm1131, %v1147, %v1158
        %v1176 = vsel %vm1131, %v1149, %v1162
        %v1177 = vsub.f32 %v1141, %v365
        %v1178 = vsub.f32 %v1132, %v368
        %v1179 = vsub.f32 %v1142, %v370
        %v1180 = vsub.f32 %v1133, %v372
        %v1181 = vmul.f32 %v1177, %v1177
        %v1182 = vmul.f32 %v1178, %v1178
        %v1183 = vmul.f32 %v1179, %v1179
        %v1184 = vmul.f32 %v1180, %v1180
        %v1185 = vsub.f32 0.0, %v1181
        %v1186 = vsub.f32 0.0, %v1182
        %v1187 = vsub.f32 0.0, %v1183
        %v1188 = vsub.f32 0.0, %v1184
        %v1189 = vmul.f32 %v1185, 2.0
        %v1190 = vmul.f32 %v1186, 2.0
        %v1191 = vmul.f32 %v1187, 2.0
        %v1192 = vmul.f32 %v1188, 2.0
        %v1193 = vmul.f32 %v1189, 1.442695
        %v1194 = vpow.pop %v1193
        %v1195 = vmul.f32 %v1190, 1.442695
        %v1196 = vpow.pop %v1195
        %v1197 = vmul.f32 %v1191, 1.442695
        %v1198 = vpow.pop %v1197
        %v1199 = vmul.f32 %v1192, 1.442695
        %v1200 = vpow.pop %v1199
        %v1201 = vmul.f32 %v1194, %v1141
        %v1202 = vmul.f32 %v1196, %v1132
        %v1203 = vmul.f32 %v1198, %v1142
        %v1204 = vmul.f32 %v1200, %v1133
        %v1205 = vadd.f32 %v1016, %v1201
        %v1206 = vadd.f32 %v1017, %v1202
        %v1207 = vadd.f32 %v1018, %v1203
        %v1208 = vadd.f32 %v1019, %v1204
        %v1209 = vmul.f32 %v1201, %v1141
        %v1210 = vmul.f32 %v1202, %v1132
        %v1211 = vmul.f32 %v1203, %v1142
        %v1212 = vmul.f32 %v1204, %v1133
        %v1213 = vadd.f32 %v1046, %v1209
        %v1214 = vadd.f32 %v1047, %v1210
        %v1215 = vadd.f32 %v1048, %v1211
        %v1216 = vadd.f32 %v1049, %v1212
        %v1217 = vmul.f32 %v1201, %v1174
        %v1218 = vmul.f32 %v1202, %v1165
        %v1219 = vmul.f32 %v1203, %v1175
        %v1220 = vmul.f32 %v1204, %v1166
        %v1221 = vadd.f32 %v1076, %v1217
        %v1222 = vadd.f32 %v1077, %v1218
        %v1223 = vadd.f32 %v1078, %v1219
        %v1224 = vadd.f32 %v1079, %v1220
        %v1225 = vmul.f32 %v1194, %v1174
        %v1226 = vmul.f32 %v1196, %v1165
        %v1227 = vmul.f32 %v1198, %v1175
        %v1228 = vmul.f32 %v1200, %v1166
        %v1229 = vadd.f32 %v1106, %v1225
        %v1230 = vadd.f32 %v1107, %v1226
        %v1231 = vadd.f32 %v1108, %v1227
        %v1232 = vadd.f32 %v1109, %v1228
        %v1233 = vsub.f32 %v1141, %v436
        %v1234 = vsub.f32 %v1132, %v439
        %v1235 = vsub.f32 %v1142, %v441
        %v1236 = vsub.f32 %v1133, %v443
        %v1237 = vsub.f32 %v1143, %v440
        %v1238 = vsub.f32 %v1134, %v442
        %v1239 = vmul.f32 %v1233, %v1233
        %v1240 = vmul.f32 %v1234, %v1234
        %v1241 = vmul.f32 %v1235, %v1235
        %v1242 = vmul.f32 %v1236, %v1236
        %v1243 = vmul.f32 %v1237, %v1237
        %v1244 = vmul.f32 %v1238, %v1238
        %v1245 = vsub.f32 0.0, %v1239
        %v1246 = vsub.f32 0.0, %v1240
        %v1247 = vsub.f32 0.0, %v1241
        %v1248 = vsub.f32 0.0, %v1242
        %v1249 = vsub.f32 0.0, %v1243
        %v1250 = vsub.f32 0.0, %v1244
        %v1251 = vmul.f32 %v1245, 2.0
        %v1252 = vmul.f32 %v1246, 2.0
        %v1253 = vmul.f32 %v1247, 2.0
        %v1254 = vmul.f32 %v1248, 2.0
        %v1255 = vmul.f32 %v1249, 2.0
        %v1256 = vmul.f32 %v1250, 2.0
        %v1257 = vmul.f32 %v1251, 1.442695
        %v1258 = vpow.pop %v1257
        %v1259 = vmul.f32 %v1252, 1.442695
        %v1260 = vpow.pop %v1259
        %v1261 = vmul.f32 %v1253, 1.442695
        %v1262 = vpow.pop %v1261
        %v1263 = vmul.f32 %v1254, 1.442695
        %v1264 = vpow.pop %v1263
        %v1265 = vmul.f32 %v1255, 1.442695
        %v1266 = vpow.pop %v1265
        %v1267 = vmul.f32 %v1256, 1.442695
        %v1268 = vpow.pop %v1267
        %v1269 = vmul.f32 %v1258, %v1141
        %v1270 = vmul.f32 %v1260, %v1132
        %v1271 = vmul.f32 %v1262, %v1142
        %v1272 = vmul.f32 %v1264, %v1133
        %v1273 = vmul.f32 %v1266, %v1143
        %v1274 = vmul.f32 %v1268, %v1134
        %v1281 = vrot.slane %v1269, 1
        %v1282 = vrot.slane %v1271, 1
        %v1283 = vsel %vm433, %v1281, %v1282
        %v1284 = vrot.slane %v1270, 1
        %v1285 = vrot.slane %v1272, 1
        %v1286 = vsel %vm433, %v1284, %v1285
        %v1287 = vrot.slane %v1273, 1
        %v1288 = vsel %vm433, %v1282, %v1287
        %v1289 = vrot.slane %v1274, 1
        %v1290 = vsel %vm433, %v1285, %v1289
        %v1295 = vadd.f32 %v1205, %v1283
        %v1296 = vadd.f32 %v1206, %v1286
        %v1297 = vadd.f32 %v1207, %v1288
        %v1298 = vadd.f32 %v1208, %v1290
        %v1299 = vmul.f32 %v1269, %v1141
        %v1300 = vmul.f32 %v1270, %v1132
        %v1301 = vmul.f32 %v1271, %v1142
        %v1302 = vmul.f32 %v1272, %v1133
        %v1303 = vmul.f32 %v1273, %v1143
        %v1304 = vmul.f32 %v1274, %v1134
        %v1311 = vrot.slane %v1299, 1
        %v1312 = vrot.slane %v1301, 1
        %v1313 = vsel %vm433, %v1311, %v1312
        %v1314 = vrot.slane %v1300, 1
        %v1315 = vrot.slane %v1302, 1
        %v1316 = vsel %vm433, %v1314, %v1315
        %v1317 = vrot.slane %v1303, 1
        %v1318 = vsel %vm433, %v1312, %v1317
        %v1319 = vrot.slane %v1304, 1
        %v1320 = vsel %vm433, %v1315, %v1319
        %v1325 = vadd.f32 %v1213, %v1313
        %v1326 = vadd.f32 %v1214, %v1316
        %v1327 = vadd.f32 %v1215, %v1318
        %v1328 = vadd.f32 %v1216, %v1320
        %v1329 = vmul.f32 %v1269, %v1174
        %v1330 = vmul.f32 %v1270, %v1165
        %v1331 = vmul.f32 %v1271, %v1175
        %v1332 = vmul.f32 %v1272, %v1166
        %v1333 = vmul.f32 %v1273, %v1176
        %v1334 = vmul.f32 %v1274, %v1167
        %v1341 = vrot.slane %v1329, 1
        %v1342 = vrot.slane %v1331, 1
        %v1343 = vsel %vm433, %v1341, %v1342
        %v1344 = vrot.slane %v1330, 1
        %v1345 = vrot.slane %v1332, 1
        %v1346 = vsel %vm433, %v1344, %v1345
        %v1347 = vrot.slane %v1333, 1
        %v1348 = vsel %vm433, %v1342, %v1347
        %v1349 = vrot.slane %v1334, 1
        %v1350 = vsel %vm433, %v1345, %v1349
        %v1355 = vadd.f32 %v1221, %v1343
        %v1356 = vadd.f32 %v1222, %v1346
        %v1357 = vadd.f32 %v1223, %v1348
        %v1358 = vadd.f32 %v1224, %v1350
        %v1359 = vmul.f32 %v1258, %v1174
        %v1360 = vmul.f32 %v1260, %v1165
        %v1361 = vmul.f32 %v1262, %v1175
        %v1362 = vmul.f32 %v1264, %v1166
        %v1363 = vmul.f32 %v1266, %v1176
        %v1364 = vmul.f32 %v1268, %v1167
        %v1371 = vrot.slane %v1359, 1
        %v1372 = vrot.slane %v1361, 1
        %v1373 = vsel %vm433, %v1371, %v1372
        %v1374 = vrot.slane %v1360, 1
        %v1375 = vrot.slane %v1362, 1
        %v1376 = vsel %vm433, %v1374, %v1375
        %v1377 = vrot.slane %v1363, 1
        %v1378 = vsel %vm433, %v1372, %v1377
        %v1379 = vrot.slane %v1364, 1
        %v1380 = vsel %vm433, %v1375, %v1379
        %v1385 = vadd.f32 %v1229, %v1373
        %v1386 = vadd.f32 %v1230, %v1376
        %v1387 = vadd.f32 %v1231, %v1378
        %v1388 = vadd.f32 %v1232, %v1380
        %v1389 = vsub.f32 %v1141, %v271
        %v1390 = vsub.f32 %v1132, %v272
        %v1391 = vsub.f32 %v1142, %v273
        %v1392 = vsub.f32 %v1133, %v274
        %v1393 = vsub.f32 %v1143, %v275
        %v1394 = vsub.f32 %v1134, %v276
        %v1395 = vmul.f32 %v1389, %v1389
        %v1396 = vmul.f32 %v1390, %v1390
        %v1397 = vmul.f32 %v1391, %v1391
        %v1398 = vmul.f32 %v1392, %v1392
        %v1399 = vmul.f32 %v1393, %v1393
        %v1400 = vmul.f32 %v1394, %v1394
        %v1401 = vsub.f32 0.0, %v1395
        %v1402 = vsub.f32 0.0, %v1396
        %v1403 = vsub.f32 0.0, %v1397
        %v1404 = vsub.f32 0.0, %v1398
        %v1405 = vsub.f32 0.0, %v1399
        %v1406 = vsub.f32 0.0, %v1400
        %v1407 = vmul.f32 %v1401, 2.0
        %v1408 = vmul.f32 %v1402, 2.0
        %v1409 = vmul.f32 %v1403, 2.0
        %v1410 = vmul.f32 %v1404, 2.0
        %v1411 = vmul.f32 %v1405, 2.0
        %v1412 = vmul.f32 %v1406, 2.0
        %v1413 = vmul.f32 %v1407, 1.442695
        %v1414 = vpow.pop %v1413
        %v1415 = vmul.f32 %v1408, 1.442695
        %v1416 = vpow.pop %v1415
        %v1417 = vmul.f32 %v1409, 1.442695
        %v1418 = vpow.pop %v1417
        %v1419 = vmul.f32 %v1410, 1.442695
        %v1420 = vpow.pop %v1419
        %v1421 = vmul.f32 %v1411, 1.442695
        %v1422 = vpow.pop %v1421
        %v1423 = vmul.f32 %v1412, 1.442695
        %v1424 = vpow.pop %v1423
        %v1425 = vmul.f32 %v1414, %v1141
        %v1426 = vmul.f32 %v1416, %v1132
        %v1427 = vmul.f32 %v1418, %v1142
        %v1428 = vmul.f32 %v1420, %v1133
        %v1429 = vmul.f32 %v1422, %v1143
        %v1430 = vmul.f32 %v1424, %v1134
        %v1437 = vrot.slane %v1425, 2
        %v1438 = vrot.slane %v1427, 2
        %v1439 = vsel %vm362, %v1437, %v1438
        %v1440 = vrot.slane %v1426, 2
        %v1441 = vrot.slane %v1428, 2
        %v1442 = vsel %vm362, %v1440, %v1441
        %v1443 = vrot.slane %v1429, 2
        %v1444 = vsel %vm362, %v1438, %v1443
        %v1445 = vrot.slane %v1430, 2
        %v1446 = vsel %vm362, %v1441, %v1445
        %v1451 = vadd.f32 %v1295, %v1439
        %v1452 = vadd.f32 %v1296, %v1442
        %v1453 = vadd.f32 %v1297, %v1444
        %v1454 = vadd.f32 %v1298, %v1446
        %v1455 = vmul.f32 %v1425, %v1141
        %v1456 = vmul.f32 %v1426, %v1132
        %v1457 = vmul.f32 %v1427, %v1142
        %v1458 = vmul.f32 %v1428, %v1133
        %v1459 = vmul.f32 %v1429, %v1143
        %v1460 = vmul.f32 %v1430, %v1134
        %v1467 = vrot.slane %v1455, 2
        %v1468 = vrot.slane %v1457, 2
        %v1469 = vsel %vm362, %v1467, %v1468
        %v1470 = vrot.slane %v1456, 2
        %v1471 = vrot.slane %v1458, 2
        %v1472 = vsel %vm362, %v1470, %v1471
        %v1473 = vrot.slane %v1459, 2
        %v1474 = vsel %vm362, %v1468, %v1473
        %v1475 = vrot.slane %v1460, 2
        %v1476 = vsel %vm362, %v1471, %v1475
        %v1481 = vadd.f32 %v1325, %v1469
        %v1482 = vadd.f32 %v1326, %v1472
        %v1483 = vadd.f32 %v1327, %v1474
        %v1484 = vadd.f32 %v1328, %v1476
        %v1485 = vmul.f32 %v1425, %v1174
        %v1486 = vmul.f32 %v1426, %v1165
        %v1487 = vmul.f32 %v1427, %v1175
        %v1488 = vmul.f32 %v1428, %v1166
        %v1489 = vmul.f32 %v1429, %v1176
        %v1490 = vmul.f32 %v1430, %v1167
        %v1497 = vrot.slane %v1485, 2
        %v1498 = vrot.slane %v1487, 2
        %v1499 = vsel %vm362, %v1497, %v1498
        %v1500 = vrot.slane %v1486, 2
        %v1501 = vrot.slane %v1488, 2
        %v1502 = vsel %vm362, %v1500, %v1501
        %v1503 = vrot.slane %v1489, 2
        %v1504 = vsel %vm362, %v1498, %v1503
        %v1505 = vrot.slane %v1490, 2
        %v1506 = vsel %vm362, %v1501, %v1505
        %v1511 = vadd.f32 %v1355, %v1499
        %v1512 = vadd.f32 %v1356, %v1502
        %v1513 = vadd.f32 %v1357, %v1504
        %v1514 = vadd.f32 %v1358, %v1506
        %v1515 = vmul.f32 %v1414, %v1174
        %v1516 = vmul.f32 %v1416, %v1165
        %v1517 = vmul.f32 %v1418, %v1175
        %v1518 = vmul.f32 %v1420, %v1166
        %v1519 = vmul.f32 %v1422, %v1176
        %v1520 = vmul.f32 %v1424, %v1167
        %v1527 = vrot.slane %v1515, 2
        %v1528 = vrot.slane %v1517, 2
        %v1529 = vsel %vm362, %v1527, %v1528
        %v1530 = vrot.slane %v1516, 2
        %v1531 = vrot.slane %v1518, 2
        %v1532 = vsel %vm362, %v1530, %v1531
        %v1533 = vrot.slane %v1519, 2
        %v1534 = vsel %vm362, %v1528, %v1533
        %v1535 = vrot.slane %v1520, 2
        %v1536 = vsel %vm362, %v1531, %v1535
        %v1541 = vadd.f32 %v1385, %v1529
        %v1542 = vadd.f32 %v1386, %v1532
        %v1543 = vadd.f32 %v1387, %v1534
        %v1544 = vadd.f32 %v1388, %v1536
        %v1545 = vsub.f32 %v1141, %v763
        %v1546 = vsub.f32 %v1132, %v764
        %v1547 = vsub.f32 %v1142, %v766
        %v1548 = vsub.f32 %v1133, %v768
        %v1549 = vsub.f32 %v1143, %v770
        %v1550 = vsub.f32 %v1134, %v772
        %v1551 = vmul.f32 %v1545, %v1545
        %v1552 = vmul.f32 %v1546, %v1546
        %v1553 = vmul.f32 %v1547, %v1547
        %v1554 = vmul.f32 %v1548, %v1548
        %v1555 = vmul.f32 %v1549, %v1549
        %v1556 = vmul.f32 %v1550, %v1550
        %v1557 = vsub.f32 0.0, %v1551
        %v1558 = vsub.f32 0.0, %v1552
        %v1559 = vsub.f32 0.0, %v1553
        %v1560 = vsub.f32 0.0, %v1554
        %v1561 = vsub.f32 0.0, %v1555
        %v1562 = vsub.f32 0.0, %v1556
        %v1563 = vmul.f32 %v1557, 2.0
        %v1564 = vmul.f32 %v1558, 2.0
        %v1565 = vmul.f32 %v1559, 2.0
        %v1566 = vmul.f32 %v1560, 2.0
        %v1567 = vmul.f32 %v1561, 2.0
        %v1568 = vmul.f32 %v1562, 2.0
        %v1569 = vmul.f32 %v1563, 1.442695
        %v1570 = vpow.pop %v1569
        %v1571 = vmul.f32 %v1564, 1.442695
        %v1572 = vpow.pop %v1571
        %v1573 = vmul.f32 %v1565, 1.442695
        %v1574 = vpow.pop %v1573
        %v1575 = vmul.f32 %v1566, 1.442695
        %v1576 = vpow.pop %v1575
        %v1577 = vmul.f32 %v1567, 1.442695
        %v1578 = vpow.pop %v1577
        %v1579 = vmul.f32 %v1568, 1.442695
        %v1580 = vpow.pop %v1579
        %v1581 = vmul.f32 %v1570, %v1141
        %v1582 = vmul.f32 %v1572, %v1132
        %v1583 = vmul.f32 %v1574, %v1142
        %v1584 = vmul.f32 %v1576, %v1133
        %v1585 = vmul.f32 %v1578, %v1143
        %v1586 = vmul.f32 %v1580, %v1134
        %v1593 = vrot.slane %v1581, 3
        %v1594 = vrot.slane %v1583, 3
        %v1595 = vsel %vm827, %v1593, %v1594
        %v1596 = vrot.slane %v1582, 3
        %v1597 = vrot.slane %v1584, 3
        %v1598 = vsel %vm827, %v1596, %v1597
        %v1599 = vrot.slane %v1585, 3
        %v1600 = vsel %vm827, %v1594, %v1599
        %v1601 = vrot.slane %v1586, 3
        %v1602 = vsel %vm827, %v1597, %v1601
        %v1607 = vadd.f32 %v1451, %v1595
        %v1608 = vadd.f32 %v1452, %v1598
        %v1609 = vadd.f32 %v1453, %v1600
        %v1610 = vadd.f32 %v1454, %v1602
        %v1611 = vmul.f32 %v1581, %v1141
        %v1612 = vmul.f32 %v1582, %v1132
        %v1613 = vmul.f32 %v1583, %v1142
        %v1614 = vmul.f32 %v1584, %v1133
        %v1615 = vmul.f32 %v1585, %v1143
        %v1616 = vmul.f32 %v1586, %v1134
        %v1623 = vrot.slane %v1611, 3
        %v1624 = vrot.slane %v1613, 3
        %v1625 = vsel %vm827, %v1623, %v1624
        %v1626 = vrot.slane %v1612, 3
        %v1627 = vrot.slane %v1614, 3
        %v1628 = vsel %vm827, %v1626, %v1627
        %v1629 = vrot.slane %v1615, 3
        %v1630 = vsel %vm827, %v1624, %v1629
        %v1631 = vrot.slane %v1616, 3
        %v1632 = vsel %vm827, %v1627, %v1631
        %v1637 = vadd.f32 %v1481, %v1625
        %v1638 = vadd.f32 %v1482, %v1628
        %v1639 = vadd.f32 %v1483, %v1630
        %v1640 = vadd.f32 %v1484, %v1632
        %v1641 = vmul.f32 %v1581, %v1174
        %v1642 = vmul.f32 %v1582, %v1165
        %v1643 = vmul.f32 %v1583, %v1175
        %v1644 = vmul.f32 %v1584, %v1166
        %v1645 = vmul.f32 %v1585, %v1176
        %v1646 = vmul.f32 %v1586, %v1167
        %v1653 = vrot.slane %v1641, 3
        %v1654 = vrot.slane %v1643, 3
        %v1655 = vsel %vm827, %v1653, %v1654
        %v1656 = vrot.slane %v1642, 3
        %v1657 = vrot.slane %v1644, 3
        %v1658 = vsel %vm827, %v1656, %v1657
        %v1659 = vrot.slane %v1645, 3
        %v1660 = vsel %vm827, %v1654, %v1659
        %v1661 = vrot.slane %v1646, 3
        %v1662 = vsel %vm827, %v1657, %v1661
        %v1667 = vadd.f32 %v1511, %v1655
        %v1668 = vadd.f32 %v1512, %v1658
        %v1669 = vadd.f32 %v1513, %v1660
        %v1670 = vadd.f32 %v1514, %v1662
        %v1671 = vmul.f32 %v1570, %v1174
        %v1672 = vmul.f32 %v1572, %v1165
        %v1673 = vmul.f32 %v1574, %v1175
        %v1674 = vmul.f32 %v1576, %v1166
        %v1675 = vmul.f32 %v1578, %v1176
        %v1676 = vmul.f32 %v1580, %v1167
        %v1683 = vrot.slane %v1671, 3
        %v1684 = vrot.slane %v1673, 3
        %v1685 = vsel %vm827, %v1683, %v1684
        %v1686 = vrot.slane %v1672, 3
        %v1687 = vrot.slane %v1674, 3
        %v1688 = vsel %vm827, %v1686, %v1687
        %v1689 = vrot.slane %v1675, 3
        %v1690 = vsel %vm827, %v1684, %v1689
        %v1691 = vrot.slane %v1676, 3
        %v1692 = vsel %vm827, %v1687, %v1691
        %v1697 = vadd.f32 %v1541, %v1685
        %v1698 = vadd.f32 %v1542, %v1688
        %v1699 = vadd.f32 %v1543, %v1690
        %v1700 = vadd.f32 %v1544, %v1692
        %v1701 = vsub.f32 %v1141, %v937
        %v1702 = vsub.f32 %v1132, %v938
        %v1703 = vsub.f32 %v1142, %v940
        %v1704 = vsub.f32 %v1133, %v942
        %v1705 = vsub.f32 %v1143, %v944
        %v1706 = vsub.f32 %v1134, %v946
        %v1707 = vmul.f32 %v1701, %v1701
        %v1708 = vmul.f32 %v1702, %v1702
        %v1709 = vmul.f32 %v1703, %v1703
        %v1710 = vmul.f32 %v1704, %v1704
        %v1711 = vmul.f32 %v1705, %v1705
        %v1712 = vmul.f32 %v1706, %v1706
        %v1713 = vsub.f32 0.0, %v1707
        %v1714 = vsub.f32 0.0, %v1708
        %v1715 = vsub.f32 0.0, %v1709
        %v1716 = vsub.f32 0.0, %v1710
        %v1717 = vsub.f32 0.0, %v1711
        %v1718 = vsub.f32 0.0, %v1712
        %v1719 = vmul.f32 %v1713, 2.0
        %v1720 = vmul.f32 %v1714, 2.0
        %v1721 = vmul.f32 %v1715, 2.0
        %v1722 = vmul.f32 %v1716, 2.0
        %v1723 = vmul.f32 %v1717, 2.0
        %v1724 = vmul.f32 %v1718, 2.0
        %v1725 = vmul.f32 %v1719, 1.442695
        %v1726 = vpow.pop %v1725
        %v1727 = vmul.f32 %v1720, 1.442695
        %v1728 = vpow.pop %v1727
        %v1729 = vmul.f32 %v1721, 1.442695
        %v1730 = vpow.pop %v1729
        %v1731 = vmul.f32 %v1722, 1.442695
        %v1732 = vpow.pop %v1731
        %v1733 = vmul.f32 %v1723, 1.442695
        %v1734 = vpow.pop %v1733
        %v1735 = vmul.f32 %v1724, 1.442695
        %v1736 = vpow.pop %v1735
        %v1737 = vmul.f32 %v1726, %v1141
        %v1738 = vmul.f32 %v1728, %v1132
        %v1739 = vmul.f32 %v1730, %v1142
        %v1740 = vmul.f32 %v1732, %v1133
        %v1741 = vmul.f32 %v1734, %v1143
        %v1742 = vmul.f32 %v1736, %v1134
        %v1749 = vrot.slane %v1737, 4
        %v1750 = vrot.slane %v1739, 4
        %v1751 = vsel %vm1001, %v1749, %v1750
        %v1752 = vrot.slane %v1738, 4
        %v1753 = vrot.slane %v1740, 4
        %v1754 = vsel %vm1001, %v1752, %v1753
        %v1755 = vrot.slane %v1741, 4
        %v1756 = vsel %vm1001, %v1750, %v1755
        %v1757 = vrot.slane %v1742, 4
        %v1758 = vsel %vm1001, %v1753, %v1757
        %v1763 = vadd.f32 %v1607, %v1751
        %v1764 = vadd.f32 %v1608, %v1754
        %v1765 = vadd.f32 %v1609, %v1756
        %v1766 = vadd.f32 %v1610, %v1758
        %v1767 = vmul.f32 %v1737, %v1141
        %v1768 = vmul.f32 %v1738, %v1132
        %v1769 = vmul.f32 %v1739, %v1142
        %v1770 = vmul.f32 %v1740, %v1133
        %v1771 = vmul.f32 %v1741, %v1143
        %v1772 = vmul.f32 %v1742, %v1134
        %v1779 = vrot.slane %v1767, 4
        %v1780 = vrot.slane %v1769, 4
        %v1781 = vsel %vm1001, %v1779, %v1780
        %v1782 = vrot.slane %v1768, 4
        %v1783 = vrot.slane %v1770, 4
        %v1784 = vsel %vm1001, %v1782, %v1783
        %v1785 = vrot.slane %v1771, 4
        %v1786 = vsel %vm1001, %v1780, %v1785
        %v1787 = vrot.slane %v1772, 4
        %v1788 = vsel %vm1001, %v1783, %v1787
        %v1793 = vadd.f32 %v1637, %v1781
        %v1794 = vadd.f32 %v1638, %v1784
        %v1795 = vadd.f32 %v1639, %v1786
        %v1796 = vadd.f32 %v1640, %v1788
        %v1797 = vmul.f32 %v1737, %v1174
        %v1798 = vmul.f32 %v1738, %v1165
        %v1799 = vmul.f32 %v1739, %v1175
        %v1800 = vmul.f32 %v1740, %v1166
        %v1801 = vmul.f32 %v1741, %v1176
        %v1802 = vmul.f32 %v1742, %v1167
        %v1809 = vrot.slane %v1797, 4
        %v1810 = vrot.slane %v1799, 4
        %v1811 = vsel %vm1001, %v1809, %v1810
        %v1812 = vrot.slane %v1798, 4
        %v1813 = vrot.slane %v1800, 4
        %v1814 = vsel %vm1001, %v1812, %v1813
        %v1815 = vrot.slane %v1801, 4
        %v1816 = vsel %vm1001, %v1810, %v1815
        %v1817 = vrot.slane %v1802, 4
        %v1818 = vsel %vm1001, %v1813, %v1817
        %v1823 = vadd.f32 %v1667, %v1811
        %v1824 = vadd.f32 %v1668, %v1814
        %v1825 = vadd.f32 %v1669, %v1816
        %v1826 = vadd.f32 %v1670, %v1818
        %v1827 = vmul.f32 %v1726, %v1174
        %v1828 = vmul.f32 %v1728, %v1165
        %v1829 = vmul.f32 %v1730, %v1175
        %v1830 = vmul.f32 %v1732, %v1166
        %v1831 = vmul.f32 %v1734, %v1176
        %v1832 = vmul.f32 %v1736, %v1167
        %v1839 = vrot.slane %v1827, 4
        %v1840 = vrot.slane %v1829, 4
        %v1841 = vsel %vm1001, %v1839, %v1840
        %v1842 = vrot.slane %v1828, 4
        %v1843 = vrot.slane %v1830, 4
        %v1844 = vsel %vm1001, %v1842, %v1843
        %v1845 = vrot.slane %v1831, 4
        %v1846 = vsel %vm1001, %v1840, %v1845
        %v1847 = vrot.slane %v1832, 4
        %v1848 = vsel %vm1001, %v1843, %v1847
        %v1853 = vadd.f32 %v1697, %v1841
        %v1854 = vadd.f32 %v1698, %v1844
        %v1855 = vadd.f32 %v1699, %v1846
        %v1856 = vadd.f32 %v1700, %v1848
        %v1857 = vsub.f32 %v271, %v365
        %v1858 = vsub.f32 %v272, %v368
        %v1859 = vsub.f32 %v273, %v370
        %v1860 = vsub.f32 %v274, %v372
        %v1861 = vmul.f32 %v1857, %v1857
        %v1862 = vmul.f32 %v1858, %v1858
        %v1863 = vmul.f32 %v1859, %v1859
        %v1864 = vmul.f32 %v1860, %v1860
        %v1865 = vsub.f32 0.0, %v1861
        %v1866 = vsub.f32 0.0, %v1862
        %v1867 = vsub.f32 0.0, %v1863
        %v1868 = vsub.f32 0.0, %v1864
        %v1869 = vmul.f32 %v1865, 2.0
        %v1870 = vmul.f32 %v1866, 2.0
        %v1871 = vmul.f32 %v1867, 2.0
        %v1872 = vmul.f32 %v1868, 2.0
        %v1873 = vmul.f32 %v1869, 1.442695
        %v1874 = vpow.pop %v1873
        %v1875 = vmul.f32 %v1870, 1.442695
        %v1876 = vpow.pop %v1875
        %v1877 = vmul.f32 %v1871, 1.442695
        %v1878 = vpow.pop %v1877
        %v1879 = vmul.f32 %v1872, 1.442695
        %v1880 = vpow.pop %v1879
        %v1881 = vmul.f32 %v1874, %v271
        %v1882 = vmul.f32 %v1876, %v272
        %v1883 = vmul.f32 %v1878, %v273
        %v1884 = vmul.f32 %v1880, %v274
        %v1885 = vadd.f32 %v1763, %v1881
        %v1886 = vadd.f32 %v1764, %v1882
        %v1887 = vadd.f32 %v1765, %v1883
        %v1888 = vadd.f32 %v1766, %v1884
        %v1889 = vmul.f32 %v1881, %v271
        %v1890 = vmul.f32 %v1882, %v272
        %v1891 = vmul.f32 %v1883, %v273
        %v1892 = vmul.f32 %v1884, %v274
        %v1893 = vadd.f32 %v1793, %v1889
        %v1894 = vadd.f32 %v1794, %v1890
        %v1895 = vadd.f32 %v1795, %v1891
        %v1896 = vadd.f32 %v1796, %v1892
        %v1897 = vmul.f32 %v1881, %v277
        %v1898 = vmul.f32 %v1882, %v278
        %v1899 = vmul.f32 %v1883, %v279
        %v1900 = vmul.f32 %v1884, %v280
        %v1901 = vadd.f32 %v1823, %v1897
        %v1902 = vadd.f32 %v1824, %v1898
        %v1903 = vadd.f32 %v1825, %v1899
        %v1904 = vadd.f32 %v1826, %v1900
        %v1905 = vmul.f32 %v1874, %v277
        %v1906 = vmul.f32 %v1876, %v278
        %v1907 = vmul.f32 %v1878, %v279
        %v1908 = vmul.f32 %v1880, %v280
        %v1909 = vadd.f32 %v1853, %v1905
        %v1910 = vadd.f32 %v1854, %v1906
        %v1911 = vadd.f32 %v1855, %v1907
        %v1912 = vadd.f32 %v1856, %v1908
        %v1913 = vsub.f32 %v271, %v436
        %v1914 = vsub.f32 %v272, %v439
        %v1915 = vsub.f32 %v273, %v441
        %v1916 = vsub.f32 %v274, %v443
        %v1917 = vsub.f32 %v275, %v440
        %v1918 = vsub.f32 %v276, %v442
        %v1919 = vmul.f32 %v1913, %v1913
        %v1920 = vmul.f32 %v1914, %v1914
        %v1921 = vmul.f32 %v1915, %v1915
        %v1922 = vmul.f32 %v1916, %v1916
        %v1923 = vmul.f32 %v1917, %v1917
        %v1924 = vmul.f32 %v1918, %v1918
        %v1925 = vsub.f32 0.0, %v1919
        %v1926 = vsub.f32 0.0, %v1920
        %v1927 = vsub.f32 0.0, %v1921
        %v1928 = vsub.f32 0.0, %v1922
        %v1929 = vsub.f32 0.0, %v1923
        %v1930 = vsub.f32 0.0, %v1924
        %v1931 = vmul.f32 %v1925, 2.0
        %v1932 = vmul.f32 %v1926, 2.0
        %v1933 = vmul.f32 %v1927, 2.0
        %v1934 = vmul.f32 %v1928, 2.0
        %v1935 = vmul.f32 %v1929, 2.0
        %v1936 = vmul.f32 %v1930, 2.0
        %v1937 = vmul.f32 %v1931, 1.442695
        %v1938 = vpow.pop %v1937
        %v1939 = vmul.f32 %v1932, 1.442695
        %v1940 = vpow.pop %v1939
        %v1941 = vmul.f32 %v1933, 1.442695
        %v1942 = vpow.pop %v1941
        %v1943 = vmul.f32 %v1934, 1.442695
        %v1944 = vpow.pop %v1943
        %v1945 = vmul.f32 %v1935, 1.442695
        %v1946 = vpow.pop %v1945
        %v1947 = vmul.f32 %v1936, 1.442695
        %v1948 = vpow.pop %v1947
        %v1949 = vmul.f32 %v1938, %v271
        %v1950 = vmul.f32 %v1940, %v272
        %v1951 = vmul.f32 %v1942, %v273
        %v1952 = vmul.f32 %v1944, %v274
        %v1953 = vmul.f32 %v1946, %v275
        %v1954 = vmul.f32 %v1948, %v276
        %v1961 = vrot.slane %v1949, 1
        %v1962 = vrot.slane %v1951, 1
        %v1963 = vsel %vm433, %v1961, %v1962
        %v1964 = vrot.slane %v1950, 1
        %v1965 = vrot.slane %v1952, 1
        %v1966 = vsel %vm433, %v1964, %v1965
        %v1967 = vrot.slane %v1953, 1
        %v1968 = vsel %vm433, %v1962, %v1967
        %v1969 = vrot.slane %v1954, 1
        %v1970 = vsel %vm433, %v1965, %v1969
        %v1975 = vadd.f32 %v1885, %v1963
        %v1976 = vadd.f32 %v1886, %v1966
        %v1977 = vadd.f32 %v1887, %v1968
        %v1978 = vadd.f32 %v1888, %v1970
        %v1979 = vmul.f32 %v1949, %v271
        %v1980 = vmul.f32 %v1950, %v272
        %v1981 = vmul.f32 %v1951, %v273
        %v1982 = vmul.f32 %v1952, %v274
        %v1983 = vmul.f32 %v1953, %v275
        %v1984 = vmul.f32 %v1954, %v276
        %v1991 = vrot.slane %v1979, 1
        %v1992 = vrot.slane %v1981, 1
        %v1993 = vsel %vm433, %v1991, %v1992
        %v1994 = vrot.slane %v1980, 1
        %v1995 = vrot.slane %v1982, 1
        %v1996 = vsel %vm433, %v1994, %v1995
        %v1997 = vrot.slane %v1983, 1
        %v1998 = vsel %vm433, %v1992, %v1997
        %v1999 = vrot.slane %v1984, 1
        %v2000 = vsel %vm433, %v1995, %v1999
        %v2005 = vadd.f32 %v1893, %v1993
        %v2006 = vadd.f32 %v1894, %v1996
        %v2007 = vadd.f32 %v1895, %v1998
        %v2008 = vadd.f32 %v1896, %v2000
        %v2009 = vmul.f32 %v1949, %v277
        %v2010 = vmul.f32 %v1950, %v278
        %v2011 = vmul.f32 %v1951, %v279
        %v2012 = vmul.f32 %v1952, %v280
        %v2013 = vmul.f32 %v1953, %v281
        %v2014 = vmul.f32 %v1954, %v282
        %v2021 = vrot.slane %v2009, 1
        %v2022 = vrot.slane %v2011, 1
        %v2023 = vsel %vm433, %v2021, %v2022
        %v2024 = vrot.slane %v2010, 1
        %v2025 = vrot.slane %v2012, 1
        %v2026 = vsel %vm433, %v2024, %v2025
        %v2027 = vrot.slane %v2013, 1
        %v2028 = vsel %vm433, %v2022, %v2027
        %v2029 = vrot.slane %v2014, 1
        %v2030 = vsel %vm433, %v2025, %v2029
        %v2035 = vadd.f32 %v1901, %v2023
        %v2036 = vadd.f32 %v1902, %v2026
        %v2037 = vadd.f32 %v1903, %v2028
        %v2038 = vadd.f32 %v1904, %v2030
        %v2039 = vmul.f32 %v1938, %v277
        %v2040 = vmul.f32 %v1940, %v278
        %v2041 = vmul.f32 %v1942, %v279
        %v2042 = vmul.f32 %v1944, %v280
        %v2043 = vmul.f32 %v1946, %v281
        %v2044 = vmul.f32 %v1948, %v282
        %v2051 = vrot.slane %v2039, 1
        %v2052 = vrot.slane %v2041, 1
        %v2053 = vsel %vm433, %v2051, %v2052
        %v2054 = vrot.slane %v2040, 1
        %v2055 = vrot.slane %v2042, 1
        %v2056 = vsel %vm433, %v2054, %v2055
        %v2057 = vrot.slane %v2043, 1
        %v2058 = vsel %vm433, %v2052, %v2057
        %v2059 = vrot.slane %v2044, 1
        %v2060 = vsel %vm433, %v2055, %v2059
        %v2065 = vadd.f32 %v1909, %v2053
        %v2066 = vadd.f32 %v1910, %v2056
        %v2067 = vadd.f32 %v1911, %v2058
        %v2068 = vadd.f32 %v1912, %v2060
        %v2069 = vsub.f32 %v271, %v271
        %v2070 = vsub.f32 %v272, %v272
        %v2071 = vsub.f32 %v273, %v273
        %v2072 = vsub.f32 %v274, %v274
        %v2073 = vsub.f32 %v275, %v275
        %v2074 = vsub.f32 %v276, %v276
        %v2075 = vmul.f32 %v2069, %v2069
        %v2076 = vmul.f32 %v2070, %v2070
        %v2077 = vmul.f32 %v2071, %v2071
        %v2078 = vmul.f32 %v2072, %v2072
        %v2079 = vmul.f32 %v2073, %v2073
        %v2080 = vmul.f32 %v2074, %v2074
        %v2081 = vsub.f32 0.0, %v2075
        %v2082 = vsub.f32 0.0, %v2076
        %v2083 = vsub.f32 0.0, %v2077
        %v2084 = vsub.f32 0.0, %v2078
        %v2085 = vsub.f32 0.0, %v2079
        %v2086 = vsub.f32 0.0, %v2080
        %v2087 = vmul.f32 %v2081, 2.0
        %v2088 = vmul.f32 %v2082, 2.0
        %v2089 = vmul.f32 %v2083, 2.0
        %v2090 = vmul.f32 %v2084, 2.0
        %v2091 = vmul.f32 %v2085, 2.0
        %v2092 = vmul.f32 %v2086, 2.0
        %v2093 = vmul.f32 %v2087, 1.442695
        %v2094 = vpow.pop %v2093
        %v2095 = vmul.f32 %v2088, 1.442695
        %v2096 = vpow.pop %v2095
        %v2097 = vmul.f32 %v2089, 1.442695
        %v2098 = vpow.pop %v2097
        %v2099 = vmul.f32 %v2090, 1.442695
        %v2100 = vpow.pop %v2099
        %v2101 = vmul.f32 %v2091, 1.442695
        %v2102 = vpow.pop %v2101
        %v2103 = vmul.f32 %v2092, 1.442695
        %v2104 = vpow.pop %v2103
        %v2105 = vmul.f32 %v2094, %v271
        %v2106 = vmul.f32 %v2096, %v272
        %v2107 = vmul.f32 %v2098, %v273
        %v2108 = vmul.f32 %v2100, %v274
        %v2109 = vmul.f32 %v2102, %v275
        %v2110 = vmul.f32 %v2104, %v276
        %v2117 = vrot.slane %v2105, 2
        %v2118 = vrot.slane %v2107, 2
        %v2119 = vsel %vm362, %v2117, %v2118
        %v2120 = vrot.slane %v2106, 2
        %v2121 = vrot.slane %v2108, 2
        %v2122 = vsel %vm362, %v2120, %v2121
        %v2123 = vrot.slane %v2109, 2
        %v2124 = vsel %vm362, %v2118, %v2123
        %v2125 = vrot.slane %v2110, 2
        %v2126 = vsel %vm362, %v2121, %v2125
        %v2131 = vadd.f32 %v1975, %v2119
        %v2132 = vadd.f32 %v1976, %v2122
        %v2133 = vadd.f32 %v1977, %v2124
        %v2134 = vadd.f32 %v1978, %v2126
        %v2135 = vmul.f32 %v2105, %v271
        %v2136 = vmul.f32 %v2106, %v272
        %v2137 = vmul.f32 %v2107, %v273
        %v2138 = vmul.f32 %v2108, %v274
        %v2139 = vmul.f32 %v2109, %v275
        %v2140 = vmul.f32 %v2110, %v276
        %v2147 = vrot.slane %v2135, 2
        %v2148 = vrot.slane %v2137, 2
        %v2149 = vsel %vm362, %v2147, %v2148
        %v2150 = vrot.slane %v2136, 2
        %v2151 = vrot.slane %v2138, 2
        %v2152 = vsel %vm362, %v2150, %v2151
        %v2153 = vrot.slane %v2139, 2
        %v2154 = vsel %vm362, %v2148, %v2153
        %v2155 = vrot.slane %v2140, 2
        %v2156 = vsel %vm362, %v2151, %v2155
        %v2161 = vadd.f32 %v2005, %v2149
        %v2162 = vadd.f32 %v2006, %v2152
        %v2163 = vadd.f32 %v2007, %v2154
        %v2164 = vadd.f32 %v2008, %v2156
        %v2165 = vmul.f32 %v2105, %v277
        %v2166 = vmul.f32 %v2106, %v278
        %v2167 = vmul.f32 %v2107, %v279
        %v2168 = vmul.f32 %v2108, %v280
        %v2169 = vmul.f32 %v2109, %v281
        %v2170 = vmul.f32 %v2110, %v282
        %v2177 = vrot.slane %v2165, 2
        %v2178 = vrot.slane %v2167, 2
        %v2179 = vsel %vm362, %v2177, %v2178
        %v2180 = vrot.slane %v2166, 2
        %v2181 = vrot.slane %v2168, 2
        %v2182 = vsel %vm362, %v2180, %v2181
        %v2183 = vrot.slane %v2169, 2
        %v2184 = vsel %vm362, %v2178, %v2183
        %v2185 = vrot.slane %v2170, 2
        %v2186 = vsel %vm362, %v2181, %v2185
        %v2191 = vadd.f32 %v2035, %v2179
        %v2192 = vadd.f32 %v2036, %v2182
        %v2193 = vadd.f32 %v2037, %v2184
        %v2194 = vadd.f32 %v2038, %v2186
        %v2195 = vmul.f32 %v2094, %v277
        %v2196 = vmul.f32 %v2096, %v278
        %v2197 = vmul.f32 %v2098, %v279
        %v2198 = vmul.f32 %v2100, %v280
        %v2199 = vmul.f32 %v2102, %v281
        %v2200 = vmul.f32 %v2104, %v282
        %v2207 = vrot.slane %v2195, 2
        %v2208 = vrot.slane %v2197, 2
        %v2209 = vsel %vm362, %v2207, %v2208
        %v2210 = vrot.slane %v2196, 2
        %v2211 = vrot.slane %v2198, 2
        %v2212 = vsel %vm362, %v2210, %v2211
        %v2213 = vrot.slane %v2199, 2
        %v2214 = vsel %vm362, %v2208, %v2213
        %v2215 = vrot.slane %v2200, 2
        %v2216 = vsel %vm362, %v2211, %v2215
        %v2221 = vadd.f32 %v2065, %v2209
        %v2222 = vadd.f32 %v2066, %v2212
        %v2223 = vadd.f32 %v2067, %v2214
        %v2224 = vadd.f32 %v2068, %v2216
        %v2225 = vsub.f32 %v271, %v763
        %v2226 = vsub.f32 %v272, %v764
        %v2227 = vsub.f32 %v273, %v766
        %v2228 = vsub.f32 %v274, %v768
        %v2229 = vsub.f32 %v275, %v770
        %v2230 = vsub.f32 %v276, %v772
        %v2231 = vmul.f32 %v2225, %v2225
        %v2232 = vmul.f32 %v2226, %v2226
        %v2233 = vmul.f32 %v2227, %v2227
        %v2234 = vmul.f32 %v2228, %v2228
        %v2235 = vmul.f32 %v2229, %v2229
        %v2236 = vmul.f32 %v2230, %v2230
        %v2237 = vsub.f32 0.0, %v2231
        %v2238 = vsub.f32 0.0, %v2232
        %v2239 = vsub.f32 0.0, %v2233
        %v2240 = vsub.f32 0.0, %v2234
        %v2241 = vsub.f32 0.0, %v2235
        %v2242 = vsub.f32 0.0, %v2236
        %v2243 = vmul.f32 %v2237, 2.0
        %v2244 = vmul.f32 %v2238, 2.0
        %v2245 = vmul.f32 %v2239, 2.0
        %v2246 = vmul.f32 %v2240, 2.0
        %v2247 = vmul.f32 %v2241, 2.0
        %v2248 = vmul.f32 %v2242, 2.0
        %v2249 = vmul.f32 %v2243, 1.442695
        %v2250 = vpow.pop %v2249
        %v2251 = vmul.f32 %v2244, 1.442695
        %v2252 = vpow.pop %v2251
        %v2253 = vmul.f32 %v2245, 1.442695
        %v2254 = vpow.pop %v2253
        %v2255 = vmul.f32 %v2246, 1.442695
        %v2256 = vpow.pop %v2255
        %v2257 = vmul.f32 %v2247, 1.442695
        %v2258 = vpow.pop %v2257
        %v2259 = vmul.f32 %v2248, 1.442695
        %v2260 = vpow.pop %v2259
        %v2261 = vmul.f32 %v2250, %v271
        %v2262 = vmul.f32 %v2252, %v272
        %v2263 = vmul.f32 %v2254, %v273
        %v2264 = vmul.f32 %v2256, %v274
        %v2265 = vmul.f32 %v2258, %v275
        %v2266 = vmul.f32 %v2260, %v276
        %v2273 = vrot.slane %v2261, 3
        %v2274 = vrot.slane %v2263, 3
        %v2275 = vsel %vm827, %v2273, %v2274
        %v2276 = vrot.slane %v2262, 3
        %v2277 = vrot.slane %v2264, 3
        %v2278 = vsel %vm827, %v2276, %v2277
        %v2279 = vrot.slane %v2265, 3
        %v2280 = vsel %vm827, %v2274, %v2279
        %v2281 = vrot.slane %v2266, 3
        %v2282 = vsel %vm827, %v2277, %v2281
        %v2287 = vadd.f32 %v2131, %v2275
        %v2288 = vadd.f32 %v2132, %v2278
        %v2289 = vadd.f32 %v2133, %v2280
        %v2290 = vadd.f32 %v2134, %v2282
        %v2291 = vmul.f32 %v2261, %v271
        %v2292 = vmul.f32 %v2262, %v272
        %v2293 = vmul.f32 %v2263, %v273
        %v2294 = vmul.f32 %v2264, %v274
        %v2295 = vmul.f32 %v2265, %v275
        %v2296 = vmul.f32 %v2266, %v276
        %v2303 = vrot.slane %v2291, 3
        %v2304 = vrot.slane %v2293, 3
        %v2305 = vsel %vm827, %v2303, %v2304
        %v2306 = vrot.slane %v2292, 3
        %v2307 = vrot.slane %v2294, 3
        %v2308 = vsel %vm827, %v2306, %v2307
        %v2309 = vrot.slane %v2295, 3
        %v2310 = vsel %vm827, %v2304, %v2309
        %v2311 = vrot.slane %v2296, 3
        %v2312 = vsel %vm827, %v2307, %v2311
        %v2317 = vadd.f32 %v2161, %v2305
        %v2318 = vadd.f32 %v2162, %v2308
        %v2319 = vadd.f32 %v2163, %v2310
        %v2320 = vadd.f32 %v2164, %v2312
        %v2321 = vmul.f32 %v2261, %v277
        %v2322 = vmul.f32 %v2262, %v278
        %v2323 = vmul.f32 %v2263, %v279
        %v2324 = vmul.f32 %v2264, %v280
        %v2325 = vmul.f32 %v2265, %v281
        %v2326 = vmul.f32 %v2266, %v282
        %v2333 = vrot.slane %v2321, 3
        %v2334 = vrot.slane %v2323, 3
        %v2335 = vsel %vm827, %v2333, %v2334
        %v2336 = vrot.slane %v2322, 3
        %v2337 = vrot.slane %v2324, 3
        %v2338 = vsel %vm827, %v2336, %v2337
        %v2339 = vrot.slane %v2325, 3
        %v2340 = vsel %vm827, %v2334, %v2339
        %v2341 = vrot.slane %v2326, 3
        %v2342 = vsel %vm827, %v2337, %v2341
        %v2347 = vadd.f32 %v2191, %v2335
        %v2348 = vadd.f32 %v2192, %v2338
        %v2349 = vadd.f32 %v2193, %v2340
        %v2350 = vadd.f32 %v2194, %v2342
        %v2351 = vmul.f32 %v2250, %v277
        %v2352 = vmul.f32 %v2252, %v278
        %v2353 = vmul.f32 %v2254, %v279
        %v2354 = vmul.f32 %v2256, %v280
        %v2355 = vmul.f32 %v2258, %v281
        %v2356 = vmul.f32 %v2260, %v282
        %v2363 = vrot.slane %v2351, 3
        %v2364 = vrot.slane %v2353, 3
        %v2365 = vsel %vm827, %v2363, %v2364
        %v2366 = vrot.slane %v2352, 3
        %v2367 = vrot.slane %v2354, 3
        %v2368 = vsel %vm827, %v2366, %v2367
        %v2369 = vrot.slane %v2355, 3
        %v2370 = vsel %vm827, %v2364, %v2369
        %v2371 = vrot.slane %v2356, 3
        %v2372 = vsel %vm827, %v2367, %v2371
        %v2377 = vadd.f32 %v2221, %v2365
        %v2378 = vadd.f32 %v2222, %v2368
        %v2379 = vadd.f32 %v2223, %v2370
        %v2380 = vadd.f32 %v2224, %v2372
        %v2381 = vsub.f32 %v271, %v937
        %v2382 = vsub.f32 %v272, %v938
        %v2383 = vsub.f32 %v273, %v940
        %v2384 = vsub.f32 %v274, %v942
        %v2385 = vsub.f32 %v275, %v944
        %v2386 = vsub.f32 %v276, %v946
        %v2387 = vmul.f32 %v2381, %v2381
        %v2388 = vmul.f32 %v2382, %v2382
        %v2389 = vmul.f32 %v2383, %v2383
        %v2390 = vmul.f32 %v2384, %v2384
        %v2391 = vmul.f32 %v2385, %v2385
        %v2392 = vmul.f32 %v2386, %v2386
        %v2393 = vsub.f32 0.0, %v2387
        %v2394 = vsub.f32 0.0, %v2388
        %v2395 = vsub.f32 0.0, %v2389
        %v2396 = vsub.f32 0.0, %v2390
        %v2397 = vsub.f32 0.0, %v2391
        %v2398 = vsub.f32 0.0, %v2392
        %v2399 = vmul.f32 %v2393, 2.0
        %v2400 = vmul.f32 %v2394, 2.0
        %v2401 = vmul.f32 %v2395, 2.0
        %v2402 = vmul.f32 %v2396, 2.0
        %v2403 = vmul.f32 %v2397, 2.0
        %v2404 = vmul.f32 %v2398, 2.0
        %v2405 = vmul.f32 %v2399, 1.442695
        %v2406 = vpow.pop %v2405
        %v2407 = vmul.f32 %v2400, 1.442695
        %v2408 = vpow.pop %v2407
        %v2409 = vmul.f32 %v2401, 1.442695
        %v2410 = vpow.pop %v2409
        %v2411 = vmul.f32 %v2402, 1.442695
        %v2412 = vpow.pop %v2411
        %v2413 = vmul.f32 %v2403, 1.442695
        %v2414 = vpow.pop %v2413
        %v2415 = vmul.f32 %v2404, 1.442695
        %v2416 = vpow.pop %v2415
        %v2417 = vmul.f32 %v2406, %v271
        %v2418 = vmul.f32 %v2408, %v272
        %v2419 = vmul.f32 %v2410, %v273
        %v2420 = vmul.f32 %v2412, %v274
        %v2421 = vmul.f32 %v2414, %v275
        %v2422 = vmul.f32 %v2416, %v276
        %v2429 = vrot.slane %v2417, 4
        %v2430 = vrot.slane %v2419, 4
        %v2431 = vsel %vm1001, %v2429, %v2430
        %v2432 = vrot.slane %v2418, 4
        %v2433 = vrot.slane %v2420, 4
        %v2434 = vsel %vm1001, %v2432, %v2433
        %v2435 = vrot.slane %v2421, 4
        %v2436 = vsel %vm1001, %v2430, %v2435
        %v2437 = vrot.slane %v2422, 4
        %v2438 = vsel %vm1001, %v2433, %v2437
        %v2443 = vadd.f32 %v2287, %v2431
        %v2444 = vadd.f32 %v2288, %v2434
        %v2445 = vadd.f32 %v2289, %v2436
        %v2446 = vadd.f32 %v2290, %v2438
        %v2447 = vmul.f32 %v2417, %v271
        %v2448 = vmul.f32 %v2418, %v272
        %v2449 = vmul.f32 %v2419, %v273
        %v2450 = vmul.f32 %v2420, %v274
        %v2451 = vmul.f32 %v2421, %v275
        %v2452 = vmul.f32 %v2422, %v276
        %v2459 = vrot.slane %v2447, 4
        %v2460 = vrot.slane %v2449, 4
        %v2461 = vsel %vm1001, %v2459, %v2460
        %v2462 = vrot.slane %v2448, 4
        %v2463 = vrot.slane %v2450, 4
        %v2464 = vsel %vm1001, %v2462, %v2463
        %v2465 = vrot.slane %v2451, 4
        %v2466 = vsel %vm1001, %v2460, %v2465
        %v2467 = vrot.slane %v2452, 4
        %v2468 = vsel %vm1001, %v2463, %v2467
        %v2473 = vadd.f32 %v2317, %v2461
        %v2474 = vadd.f32 %v2318, %v2464
        %v2475 = vadd.f32 %v2319, %v2466
        %v2476 = vadd.f32 %v2320, %v2468
        %v2477 = vmul.f32 %v2417, %v277
        %v2478 = vmul.f32 %v2418, %v278
        %v2479 = vmul.f32 %v2419, %v279
        %v2480 = vmul.f32 %v2420, %v280
        %v2481 = vmul.f32 %v2421, %v281
        %v2482 = vmul.f32 %v2422, %v282
        %v2489 = vrot.slane %v2477, 4
        %v2490 = vrot.slane %v2479, 4
        %v2491 = vsel %vm1001, %v2489, %v2490
        %v2492 = vrot.slane %v2478, 4
        %v2493 = vrot.slane %v2480, 4
        %v2494 = vsel %vm1001, %v2492, %v2493
        %v2495 = vrot.slane %v2481, 4
        %v2496 = vsel %vm1001, %v2490, %v2495
        %v2497 = vrot.slane %v2482, 4
        %v2498 = vsel %vm1001, %v2493, %v2497
        %v2503 = vadd.f32 %v2347, %v2491
        %v2504 = vadd.f32 %v2348, %v2494
        %v2505 = vadd.f32 %v2349, %v2496
        %v2506 = vadd.f32 %v2350, %v2498
        %v2507 = vmul.f32 %v2406, %v277
        %v2508 = vmul.f32 %v2408, %v278
        %v2509 = vmul.f32 %v2410, %v279
        %v2510 = vmul.f32 %v2412, %v280
        %v2511 = vmul.f32 %v2414, %v281
        %v2512 = vmul.f32 %v2416, %v282
        %v2519 = vrot.slane %v2507, 4
        %v2520 = vrot.slane %v2509, 4
        %v2521 = vsel %vm1001, %v2519, %v2520
        %v2522 = vrot.slane %v2508, 4
        %v2523 = vrot.slane %v2510, 4
        %v2524 = vsel %vm1001, %v2522, %v2523
        %v2525 = vrot.slane %v2511, 4
        %v2526 = vsel %vm1001, %v2520, %v2525
        %v2527 = vrot.slane %v2512, 4
        %v2528 = vsel %vm1001, %v2523, %v2527
        %v2533 = vadd.f32 %v2377, %v2521
        %v2534 = vadd.f32 %v2378, %v2524
        %v2535 = vadd.f32 %v2379, %v2526
        %v2536 = vadd.f32 %v2380, %v2528
        %2537 = vrot.lane.b32.xlu0 %v271, 127
        %v2538 = vpop.permute.xlu0 %2537
        %2539 = vrot.lane.b32.xlu0 %v272, 127
        %v2540 = vpop.permute.xlu0 %2539
        %2541 = vrot.lane.b32.xlu0 %v273, 127
        %v2542 = vpop.permute.xlu0 %2541
        %2543 = vrot.lane.b32.xlu0 %v274, 127
        %v2544 = vpop.permute.xlu0 %2543
        %2545 = vrot.lane.b32.xlu0 %v275, 127
        %v2546 = vpop.permute.xlu0 %2545
        %2547 = vrot.lane.b32.xlu0 %v276, 127
        %v2548 = vpop.permute.xlu0 %2547
        %vm2549 = vcmask 1039360
        %v2550 = vsel %vm2549, %v2538, %v2540
        %v2551 = vsel %vm2549, %v2542, %v2544
        %v2552 = vsel %vm2549, %v2546, %v2548
        %2559 = vrot.lane.b32.xlu0 %v271, 11
        %v2560 = vpop.permute.xlu0 %2559
        %2561 = vrot.lane.b32.xlu0 %v273, 11
        %v2562 = vpop.permute.xlu0 %2561
        %2563 = vrot.lane.b32.xlu0 %v275, 11
        %v2564 = vpop.permute.xlu0 %2563
        %vm2568 = vcmask 89088
        %v2569 = vsel %vm2568, %v2540, %v2560
        %v2570 = vsel %vm2568, %v2544, %v2562
        %v2571 = vsel %vm2568, %v2548, %v2564
        %2572 = vrot.lane.b32.xlu0 %v277, 127
        %v2573 = vpop.permute.xlu0 %2572
        %2574 = vrot.lane.b32.xlu0 %v278, 127
        %v2575 = vpop.permute.xlu0 %2574
        %2576 = vrot.lane.b32.xlu0 %v279, 127
        %v2577 = vpop.permute.xlu0 %2576
        %2578 = vrot.lane.b32.xlu0 %v280, 127
        %v2579 = vpop.permute.xlu0 %2578
        %2580 = vrot.lane.b32.xlu0 %v281, 127
        %v2581 = vpop.permute.xlu0 %2580
        %2582 = vrot.lane.b32.xlu0 %v282, 127
        %v2583 = vpop.permute.xlu0 %2582
        %v2584 = vsel %vm2549, %v2573, %v2575
        %v2585 = vsel %vm2549, %v2577, %v2579
        %v2586 = vsel %vm2549, %v2581, %v2583
        %2593 = vrot.lane.b32.xlu0 %v277, 11
        %v2594 = vpop.permute.xlu0 %2593
        %2595 = vrot.lane.b32.xlu0 %v279, 11
        %v2596 = vpop.permute.xlu0 %2595
        %2597 = vrot.lane.b32.xlu0 %v281, 11
        %v2598 = vpop.permute.xlu0 %2597
        %v2602 = vsel %vm2568, %v2575, %v2594
        %v2603 = vsel %vm2568, %v2579, %v2596
        %v2604 = vsel %vm2568, %v2583, %v2598
        %v2605 = vsub.f32 %v2550, %v365
        %v2606 = vsub.f32 %v2569, %v368
        %v2607 = vsub.f32 %v2551, %v370
        %v2608 = vsub.f32 %v2570, %v372
        %v2609 = vmul.f32 %v2605, %v2605
        %v2610 = vmul.f32 %v2606, %v2606
        %v2611 = vmul.f32 %v2607, %v2607
        %v2612 = vmul.f32 %v2608, %v2608
        %v2613 = vsub.f32 0.0, %v2609
        %v2614 = vsub.f32 0.0, %v2610
        %v2615 = vsub.f32 0.0, %v2611
        %v2616 = vsub.f32 0.0, %v2612
        %v2617 = vmul.f32 %v2613, 2.0
        %v2618 = vmul.f32 %v2614, 2.0
        %v2619 = vmul.f32 %v2615, 2.0
        %v2620 = vmul.f32 %v2616, 2.0
        %v2621 = vmul.f32 %v2617, 1.442695
        %v2622 = vpow.pop %v2621
        %v2623 = vmul.f32 %v2618, 1.442695
        %v2624 = vpow.pop %v2623
        %v2625 = vmul.f32 %v2619, 1.442695
        %v2626 = vpow.pop %v2625
        %v2627 = vmul.f32 %v2620, 1.442695
        %v2628 = vpow.pop %v2627
        %v2629 = vmul.f32 %v2622, %v2550
        %v2630 = vmul.f32 %v2624, %v2569
        %v2631 = vmul.f32 %v2626, %v2551
        %v2632 = vmul.f32 %v2628, %v2570
        %v2633 = vadd.f32 %v2443, %v2629
        %v2634 = vadd.f32 %v2444, %v2630
        %v2635 = vadd.f32 %v2445, %v2631
        %v2636 = vadd.f32 %v2446, %v2632
        %v2637 = vmul.f32 %v2629, %v2550
        %v2638 = vmul.f32 %v2630, %v2569
        %v2639 = vmul.f32 %v2631, %v2551
        %v2640 = vmul.f32 %v2632, %v2570
        %v2641 = vadd.f32 %v2473, %v2637
        %v2642 = vadd.f32 %v2474, %v2638
        %v2643 = vadd.f32 %v2475, %v2639
        %v2644 = vadd.f32 %v2476, %v2640
        %v2645 = vmul.f32 %v2629, %v2584
        %v2646 = vmul.f32 %v2630, %v2602
        %v2647 = vmul.f32 %v2631, %v2585
        %v2648 = vmul.f32 %v2632, %v2603
        %v2649 = vadd.f32 %v2503, %v2645
        %v2650 = vadd.f32 %v2504, %v2646
        %v2651 = vadd.f32 %v2505, %v2647
        %v2652 = vadd.f32 %v2506, %v2648
        %v2653 = vmul.f32 %v2622, %v2584
        %v2654 = vmul.f32 %v2624, %v2602
        %v2655 = vmul.f32 %v2626, %v2585
        %v2656 = vmul.f32 %v2628, %v2603
        %v2657 = vadd.f32 %v2533, %v2653
        %v2658 = vadd.f32 %v2534, %v2654
        %v2659 = vadd.f32 %v2535, %v2655
        %v2660 = vadd.f32 %v2536, %v2656
        %v2661 = vsub.f32 %v2550, %v436
        %v2662 = vsub.f32 %v2569, %v439
        %v2663 = vsub.f32 %v2551, %v441
        %v2664 = vsub.f32 %v2570, %v443
        %v2665 = vsub.f32 %v2552, %v440
        %v2666 = vsub.f32 %v2571, %v442
        %v2667 = vmul.f32 %v2661, %v2661
        %v2668 = vmul.f32 %v2662, %v2662
        %v2669 = vmul.f32 %v2663, %v2663
        %v2670 = vmul.f32 %v2664, %v2664
        %v2671 = vmul.f32 %v2665, %v2665
        %v2672 = vmul.f32 %v2666, %v2666
        %v2673 = vsub.f32 0.0, %v2667
        %v2674 = vsub.f32 0.0, %v2668
        %v2675 = vsub.f32 0.0, %v2669
        %v2676 = vsub.f32 0.0, %v2670
        %v2677 = vsub.f32 0.0, %v2671
        %v2678 = vsub.f32 0.0, %v2672
        %v2679 = vmul.f32 %v2673, 2.0
        %v2680 = vmul.f32 %v2674, 2.0
        %v2681 = vmul.f32 %v2675, 2.0
        %v2682 = vmul.f32 %v2676, 2.0
        %v2683 = vmul.f32 %v2677, 2.0
        %v2684 = vmul.f32 %v2678, 2.0
        %v2685 = vmul.f32 %v2679, 1.442695
        %v2686 = vpow.pop %v2685
        %v2687 = vmul.f32 %v2680, 1.442695
        %v2688 = vpow.pop %v2687
        %v2689 = vmul.f32 %v2681, 1.442695
        %v2690 = vpow.pop %v2689
        %v2691 = vmul.f32 %v2682, 1.442695
        %v2692 = vpow.pop %v2691
        %v2693 = vmul.f32 %v2683, 1.442695
        %v2694 = vpow.pop %v2693
        %v2695 = vmul.f32 %v2684, 1.442695
        %v2696 = vpow.pop %v2695
        %v2697 = vmul.f32 %v2686, %v2550
        %v2698 = vmul.f32 %v2688, %v2569
        %v2699 = vmul.f32 %v2690, %v2551
        %v2700 = vmul.f32 %v2692, %v2570
        %v2701 = vmul.f32 %v2694, %v2552
        %v2702 = vmul.f32 %v2696, %v2571
        %v2709 = vrot.slane %v2697, 1
        %v2710 = vrot.slane %v2699, 1
        %v2711 = vsel %vm433, %v2709, %v2710
        %v2712 = vrot.slane %v2698, 1
        %v2713 = vrot.slane %v2700, 1
        %v2714 = vsel %vm433, %v2712, %v2713
        %v2715 = vrot.slane %v2701, 1
        %v2716 = vsel %vm433, %v2710, %v2715
        %v2717 = vrot.slane %v2702, 1
        %v2718 = vsel %vm433, %v2713, %v2717
        %v2723 = vadd.f32 %v2633, %v2711
        %v2724 = vadd.f32 %v2634, %v2714
        %v2725 = vadd.f32 %v2635, %v2716
        %v2726 = vadd.f32 %v2636, %v2718
        %v2727 = vmul.f32 %v2697, %v2550
        %v2728 = vmul.f32 %v2698, %v2569
        %v2729 = vmul.f32 %v2699, %v2551
        %v2730 = vmul.f32 %v2700, %v2570
        %v2731 = vmul.f32 %v2701, %v2552
        %v2732 = vmul.f32 %v2702, %v2571
        %v2739 = vrot.slane %v2727, 1
        %v2740 = vrot.slane %v2729, 1
        %v2741 = vsel %vm433, %v2739, %v2740
        %v2742 = vrot.slane %v2728, 1
        %v2743 = vrot.slane %v2730, 1
        %v2744 = vsel %vm433, %v2742, %v2743
        %v2745 = vrot.slane %v2731, 1
        %v2746 = vsel %vm433, %v2740, %v2745
        %v2747 = vrot.slane %v2732, 1
        %v2748 = vsel %vm433, %v2743, %v2747
        %v2753 = vadd.f32 %v2641, %v2741
        %v2754 = vadd.f32 %v2642, %v2744
        %v2755 = vadd.f32 %v2643, %v2746
        %v2756 = vadd.f32 %v2644, %v2748
        %v2757 = vmul.f32 %v2697, %v2584
        %v2758 = vmul.f32 %v2698, %v2602
        %v2759 = vmul.f32 %v2699, %v2585
        %v2760 = vmul.f32 %v2700, %v2603
        %v2761 = vmul.f32 %v2701, %v2586
        %v2762 = vmul.f32 %v2702, %v2604
        %v2769 = vrot.slane %v2757, 1
        %v2770 = vrot.slane %v2759, 1
        %v2771 = vsel %vm433, %v2769, %v2770
        %v2772 = vrot.slane %v2758, 1
        %v2773 = vrot.slane %v2760, 1
        %v2774 = vsel %vm433, %v2772, %v2773
        %v2775 = vrot.slane %v2761, 1
        %v2776 = vsel %vm433, %v2770, %v2775
        %v2777 = vrot.slane %v2762, 1
        %v2778 = vsel %vm433, %v2773, %v2777
        %v2783 = vadd.f32 %v2649, %v2771
        %v2784 = vadd.f32 %v2650, %v2774
        %v2785 = vadd.f32 %v2651, %v2776
        %v2786 = vadd.f32 %v2652, %v2778
        %v2787 = vmul.f32 %v2686, %v2584
        %v2788 = vmul.f32 %v2688, %v2602
        %v2789 = vmul.f32 %v2690, %v2585
        %v2790 = vmul.f32 %v2692, %v2603
        %v2791 = vmul.f32 %v2694, %v2586
        %v2792 = vmul.f32 %v2696, %v2604
        %v2799 = vrot.slane %v2787, 1
        %v2800 = vrot.slane %v2789, 1
        %v2801 = vsel %vm433, %v2799, %v2800
        %v2802 = vrot.slane %v2788, 1
        %v2803 = vrot.slane %v2790, 1
        %v2804 = vsel %vm433, %v2802, %v2803
        %v2805 = vrot.slane %v2791, 1
        %v2806 = vsel %vm433, %v2800, %v2805
        %v2807 = vrot.slane %v2792, 1
        %v2808 = vsel %vm433, %v2803, %v2807
        %v2813 = vadd.f32 %v2657, %v2801
        %v2814 = vadd.f32 %v2658, %v2804
        %v2815 = vadd.f32 %v2659, %v2806
        %v2816 = vadd.f32 %v2660, %v2808
        %v2817 = vsub.f32 %v2550, %v271
        %v2818 = vsub.f32 %v2569, %v272
        %v2819 = vsub.f32 %v2551, %v273
        %v2820 = vsub.f32 %v2570, %v274
        %v2821 = vsub.f32 %v2552, %v275
        %v2822 = vsub.f32 %v2571, %v276
        %v2823 = vmul.f32 %v2817, %v2817
        %v2824 = vmul.f32 %v2818, %v2818
        %v2825 = vmul.f32 %v2819, %v2819
        %v2826 = vmul.f32 %v2820, %v2820
        %v2827 = vmul.f32 %v2821, %v2821
        %v2828 = vmul.f32 %v2822, %v2822
        %v2829 = vsub.f32 0.0, %v2823
        %v2830 = vsub.f32 0.0, %v2824
        %v2831 = vsub.f32 0.0, %v2825
        %v2832 = vsub.f32 0.0, %v2826
        %v2833 = vsub.f32 0.0, %v2827
        %v2834 = vsub.f32 0.0, %v2828
        %v2835 = vmul.f32 %v2829, 2.0
        %v2836 = vmul.f32 %v2830, 2.0
        %v2837 = vmul.f32 %v2831, 2.0
        %v2838 = vmul.f32 %v2832, 2.0
        %v2839 = vmul.f32 %v2833, 2.0
        %v2840 = vmul.f32 %v2834, 2.0
        %v2841 = vmul.f32 %v2835, 1.442695
        %v2842 = vpow.pop %v2841
        %v2843 = vmul.f32 %v2836, 1.442695
        %v2844 = vpow.pop %v2843
        %v2845 = vmul.f32 %v2837, 1.442695
        %v2846 = vpow.pop %v2845
        %v2847 = vmul.f32 %v2838, 1.442695
        %v2848 = vpow.pop %v2847
        %v2849 = vmul.f32 %v2839, 1.442695
        %v2850 = vpow.pop %v2849
        %v2851 = vmul.f32 %v2840, 1.442695
        %v2852 = vpow.pop %v2851
        %v2853 = vmul.f32 %v2842, %v2550
        %v2854 = vmul.f32 %v2844, %v2569
        %v2855 = vmul.f32 %v2846, %v2551
        %v2856 = vmul.f32 %v2848, %v2570
        %v2857 = vmul.f32 %v2850, %v2552
        %v2858 = vmul.f32 %v2852, %v2571
        %v2865 = vrot.slane %v2853, 2
        %v2866 = vrot.slane %v2855, 2
        %v2867 = vsel %vm362, %v2865, %v2866
        %v2868 = vrot.slane %v2854, 2
        %v2869 = vrot.slane %v2856, 2
        %v2870 = vsel %vm362, %v2868, %v2869
        %v2871 = vrot.slane %v2857, 2
        %v2872 = vsel %vm362, %v2866, %v2871
        %v2873 = vrot.slane %v2858, 2
        %v2874 = vsel %vm362, %v2869, %v2873
        %v2879 = vadd.f32 %v2723, %v2867
        %v2880 = vadd.f32 %v2724, %v2870
        %v2881 = vadd.f32 %v2725, %v2872
        %v2882 = vadd.f32 %v2726, %v2874
        %v2883 = vmul.f32 %v2853, %v2550
        %v2884 = vmul.f32 %v2854, %v2569
        %v2885 = vmul.f32 %v2855, %v2551
        %v2886 = vmul.f32 %v2856, %v2570
        %v2887 = vmul.f32 %v2857, %v2552
        %v2888 = vmul.f32 %v2858, %v2571
        %v2895 = vrot.slane %v2883, 2
        %v2896 = vrot.slane %v2885, 2
        %v2897 = vsel %vm362, %v2895, %v2896
        %v2898 = vrot.slane %v2884, 2
        %v2899 = vrot.slane %v2886, 2
        %v2900 = vsel %vm362, %v2898, %v2899
        %v2901 = vrot.slane %v2887, 2
        %v2902 = vsel %vm362, %v2896, %v2901
        %v2903 = vrot.slane %v2888, 2
        %v2904 = vsel %vm362, %v2899, %v2903
        %v2909 = vadd.f32 %v2753, %v2897
        %v2910 = vadd.f32 %v2754, %v2900
        %v2911 = vadd.f32 %v2755, %v2902
        %v2912 = vadd.f32 %v2756, %v2904
        %v2913 = vmul.f32 %v2853, %v2584
        %v2914 = vmul.f32 %v2854, %v2602
        %v2915 = vmul.f32 %v2855, %v2585
        %v2916 = vmul.f32 %v2856, %v2603
        %v2917 = vmul.f32 %v2857, %v2586
        %v2918 = vmul.f32 %v2858, %v2604
        %v2925 = vrot.slane %v2913, 2
        %v2926 = vrot.slane %v2915, 2
        %v2927 = vsel %vm362, %v2925, %v2926
        %v2928 = vrot.slane %v2914, 2
        %v2929 = vrot.slane %v2916, 2
        %v2930 = vsel %vm362, %v2928, %v2929
        %v2931 = vrot.slane %v2917, 2
        %v2932 = vsel %vm362, %v2926, %v2931
        %v2933 = vrot.slane %v2918, 2
        %v2934 = vsel %vm362, %v2929, %v2933
        %v2939 = vadd.f32 %v2783, %v2927
        %v2940 = vadd.f32 %v2784, %v2930
        %v2941 = vadd.f32 %v2785, %v2932
        %v2942 = vadd.f32 %v2786, %v2934
        %v2943 = vmul.f32 %v2842, %v2584
        %v2944 = vmul.f32 %v2844, %v2602
        %v2945 = vmul.f32 %v2846, %v2585
        %v2946 = vmul.f32 %v2848, %v2603
        %v2947 = vmul.f32 %v2850, %v2586
        %v2948 = vmul.f32 %v2852, %v2604
        %v2955 = vrot.slane %v2943, 2
        %v2956 = vrot.slane %v2945, 2
        %v2957 = vsel %vm362, %v2955, %v2956
        %v2958 = vrot.slane %v2944, 2
        %v2959 = vrot.slane %v2946, 2
        %v2960 = vsel %vm362, %v2958, %v2959
        %v2961 = vrot.slane %v2947, 2
        %v2962 = vsel %vm362, %v2956, %v2961
        %v2963 = vrot.slane %v2948, 2
        %v2964 = vsel %vm362, %v2959, %v2963
        %v2969 = vadd.f32 %v2813, %v2957
        %v2970 = vadd.f32 %v2814, %v2960
        %v2971 = vadd.f32 %v2815, %v2962
        %v2972 = vadd.f32 %v2816, %v2964
        %v2973 = vsub.f32 %v2550, %v763
        %v2974 = vsub.f32 %v2569, %v764
        %v2975 = vsub.f32 %v2551, %v766
        %v2976 = vsub.f32 %v2570, %v768
        %v2977 = vsub.f32 %v2552, %v770
        %v2978 = vsub.f32 %v2571, %v772
        %v2979 = vmul.f32 %v2973, %v2973
        %v2980 = vmul.f32 %v2974, %v2974
        %v2981 = vmul.f32 %v2975, %v2975
        %v2982 = vmul.f32 %v2976, %v2976
        %v2983 = vmul.f32 %v2977, %v2977
        %v2984 = vmul.f32 %v2978, %v2978
        %v2985 = vsub.f32 0.0, %v2979
        %v2986 = vsub.f32 0.0, %v2980
        %v2987 = vsub.f32 0.0, %v2981
        %v2988 = vsub.f32 0.0, %v2982
        %v2989 = vsub.f32 0.0, %v2983
        %v2990 = vsub.f32 0.0, %v2984
        %v2991 = vmul.f32 %v2985, 2.0
        %v2992 = vmul.f32 %v2986, 2.0
        %v2993 = vmul.f32 %v2987, 2.0
        %v2994 = vmul.f32 %v2988, 2.0
        %v2995 = vmul.f32 %v2989, 2.0
        %v2996 = vmul.f32 %v2990, 2.0
        %v2997 = vmul.f32 %v2991, 1.442695
        %v2998 = vpow.pop %v2997
        %v2999 = vmul.f32 %v2992, 1.442695
        %v3000 = vpow.pop %v2999
        %v3001 = vmul.f32 %v2993, 1.442695
        %v3002 = vpow.pop %v3001
        %v3003 = vmul.f32 %v2994, 1.442695
        %v3004 = vpow.pop %v3003
        %v3005 = vmul.f32 %v2995, 1.442695
        %v3006 = vpow.pop %v3005
        %v3007 = vmul.f32 %v2996, 1.442695
        %v3008 = vpow.pop %v3007
        %v3009 = vmul.f32 %v2998, %v2550
        %v3010 = vmul.f32 %v3000, %v2569
        %v3011 = vmul.f32 %v3002, %v2551
        %v3012 = vmul.f32 %v3004, %v2570
        %v3013 = vmul.f32 %v3006, %v2552
        %v3014 = vmul.f32 %v3008, %v2571
        %v3021 = vrot.slane %v3009, 3
        %v3022 = vrot.slane %v3011, 3
        %v3023 = vsel %vm827, %v3021, %v3022
        %v3024 = vrot.slane %v3010, 3
        %v3025 = vrot.slane %v3012, 3
        %v3026 = vsel %vm827, %v3024, %v3025
        %v3027 = vrot.slane %v3013, 3
        %v3028 = vsel %vm827, %v3022, %v3027
        %v3029 = vrot.slane %v3014, 3
        %v3030 = vsel %vm827, %v3025, %v3029
        %v3035 = vadd.f32 %v2879, %v3023
        %v3036 = vadd.f32 %v2880, %v3026
        %v3037 = vadd.f32 %v2881, %v3028
        %v3038 = vadd.f32 %v2882, %v3030
        %v3039 = vmul.f32 %v3009, %v2550
        %v3040 = vmul.f32 %v3010, %v2569
        %v3041 = vmul.f32 %v3011, %v2551
        %v3042 = vmul.f32 %v3012, %v2570
        %v3043 = vmul.f32 %v3013, %v2552
        %v3044 = vmul.f32 %v3014, %v2571
        %v3051 = vrot.slane %v3039, 3
        %v3052 = vrot.slane %v3041, 3
        %v3053 = vsel %vm827, %v3051, %v3052
        %v3054 = vrot.slane %v3040, 3
        %v3055 = vrot.slane %v3042, 3
        %v3056 = vsel %vm827, %v3054, %v3055
        %v3057 = vrot.slane %v3043, 3
        %v3058 = vsel %vm827, %v3052, %v3057
        %v3059 = vrot.slane %v3044, 3
        %v3060 = vsel %vm827, %v3055, %v3059
        %v3065 = vadd.f32 %v2909, %v3053
        %v3066 = vadd.f32 %v2910, %v3056
        %v3067 = vadd.f32 %v2911, %v3058
        %v3068 = vadd.f32 %v2912, %v3060
        %v3069 = vmul.f32 %v3009, %v2584
        %v3070 = vmul.f32 %v3010, %v2602
        %v3071 = vmul.f32 %v3011, %v2585
        %v3072 = vmul.f32 %v3012, %v2603
        %v3073 = vmul.f32 %v3013, %v2586
        %v3074 = vmul.f32 %v3014, %v2604
        %v3081 = vrot.slane %v3069, 3
        %v3082 = vrot.slane %v3071, 3
        %v3083 = vsel %vm827, %v3081, %v3082
        %v3084 = vrot.slane %v3070, 3
        %v3085 = vrot.slane %v3072, 3
        %v3086 = vsel %vm827, %v3084, %v3085
        %v3087 = vrot.slane %v3073, 3
        %v3088 = vsel %vm827, %v3082, %v3087
        %v3089 = vrot.slane %v3074, 3
        %v3090 = vsel %vm827, %v3085, %v3089
        %v3095 = vadd.f32 %v2939, %v3083
        %v3096 = vadd.f32 %v2940, %v3086
        %v3097 = vadd.f32 %v2941, %v3088
        %v3098 = vadd.f32 %v2942, %v3090
        %v3099 = vmul.f32 %v2998, %v2584
        %v3100 = vmul.f32 %v3000, %v2602
        %v3101 = vmul.f32 %v3002, %v2585
        %v3102 = vmul.f32 %v3004, %v2603
        %v3103 = vmul.f32 %v3006, %v2586
        %v3104 = vmul.f32 %v3008, %v2604
        %v3111 = vrot.slane %v3099, 3
        %v3112 = vrot.slane %v3101, 3
        %v3113 = vsel %vm827, %v3111, %v3112
        %v3114 = vrot.slane %v3100, 3
        %v3115 = vrot.slane %v3102, 3
        %v3116 = vsel %vm827, %v3114, %v3115
        %v3117 = vrot.slane %v3103, 3
        %v3118 = vsel %vm827, %v3112, %v3117
        %v3119 = vrot.slane %v3104, 3
        %v3120 = vsel %vm827, %v3115, %v3119
        %v3125 = vadd.f32 %v2969, %v3113
        %v3126 = vadd.f32 %v2970, %v3116
        %v3127 = vadd.f32 %v2971, %v3118
        %v3128 = vadd.f32 %v2972, %v3120
        %v3129 = vsub.f32 %v2550, %v937
        %v3130 = vsub.f32 %v2569, %v938
        %v3131 = vsub.f32 %v2551, %v940
        %v3132 = vsub.f32 %v2570, %v942
        %v3133 = vsub.f32 %v2552, %v944
        %v3134 = vsub.f32 %v2571, %v946
        %v3135 = vmul.f32 %v3129, %v3129
        %v3136 = vmul.f32 %v3130, %v3130
        %v3137 = vmul.f32 %v3131, %v3131
        %v3138 = vmul.f32 %v3132, %v3132
        %v3139 = vmul.f32 %v3133, %v3133
        %v3140 = vmul.f32 %v3134, %v3134
        %v3141 = vsub.f32 0.0, %v3135
        %v3142 = vsub.f32 0.0, %v3136
        %v3143 = vsub.f32 0.0, %v3137
        %v3144 = vsub.f32 0.0, %v3138
        %v3145 = vsub.f32 0.0, %v3139
        %v3146 = vsub.f32 0.0, %v3140
        %v3147 = vmul.f32 %v3141, 2.0
        %v3148 = vmul.f32 %v3142, 2.0
        %v3149 = vmul.f32 %v3143, 2.0
        %v3150 = vmul.f32 %v3144, 2.0
        %v3151 = vmul.f32 %v3145, 2.0
        %v3152 = vmul.f32 %v3146, 2.0
        %v3153 = vmul.f32 %v3147, 1.442695
        %v3154 = vpow.pop %v3153
        %v3155 = vmul.f32 %v3148, 1.442695
        %v3156 = vpow.pop %v3155
        %v3157 = vmul.f32 %v3149, 1.442695
        %v3158 = vpow.pop %v3157
        %v3159 = vmul.f32 %v3150, 1.442695
        %v3160 = vpow.pop %v3159
        %v3161 = vmul.f32 %v3151, 1.442695
        %v3162 = vpow.pop %v3161
        %v3163 = vmul.f32 %v3152, 1.442695
        %v3164 = vpow.pop %v3163
        %v3165 = vmul.f32 %v3154, %v2550
        %v3166 = vmul.f32 %v3156, %v2569
        %v3167 = vmul.f32 %v3158, %v2551
        %v3168 = vmul.f32 %v3160, %v2570
        %v3169 = vmul.f32 %v3162, %v2552
        %v3170 = vmul.f32 %v3164, %v2571
        %v3177 = vrot.slane %v3165, 4
        %v3178 = vrot.slane %v3167, 4
        %v3179 = vsel %vm1001, %v3177, %v3178
        %v3180 = vrot.slane %v3166, 4
        %v3181 = vrot.slane %v3168, 4
        %v3182 = vsel %vm1001, %v3180, %v3181
        %v3183 = vrot.slane %v3169, 4
        %v3184 = vsel %vm1001, %v3178, %v3183
        %v3185 = vrot.slane %v3170, 4
        %v3186 = vsel %vm1001, %v3181, %v3185
        %v3191 = vadd.f32 %v3035, %v3179
        %v3192 = vadd.f32 %v3036, %v3182
        %v3193 = vadd.f32 %v3037, %v3184
        %v3194 = vadd.f32 %v3038, %v3186
        %v3195 = vmul.f32 %v3165, %v2550
        %v3196 = vmul.f32 %v3166, %v2569
        %v3197 = vmul.f32 %v3167, %v2551
        %v3198 = vmul.f32 %v3168, %v2570
        %v3199 = vmul.f32 %v3169, %v2552
        %v3200 = vmul.f32 %v3170, %v2571
        %v3207 = vrot.slane %v3195, 4
        %v3208 = vrot.slane %v3197, 4
        %v3209 = vsel %vm1001, %v3207, %v3208
        %v3210 = vrot.slane %v3196, 4
        %v3211 = vrot.slane %v3198, 4
        %v3212 = vsel %vm1001, %v3210, %v3211
        %v3213 = vrot.slane %v3199, 4
        %v3214 = vsel %vm1001, %v3208, %v3213
        %v3215 = vrot.slane %v3200, 4
        %v3216 = vsel %vm1001, %v3211, %v3215
        %v3221 = vadd.f32 %v3065, %v3209
        %v3222 = vadd.f32 %v3066, %v3212
        %v3223 = vadd.f32 %v3067, %v3214
        %v3224 = vadd.f32 %v3068, %v3216
        %v3225 = vmul.f32 %v3165, %v2584
        %v3226 = vmul.f32 %v3166, %v2602
        %v3227 = vmul.f32 %v3167, %v2585
        %v3228 = vmul.f32 %v3168, %v2603
        %v3229 = vmul.f32 %v3169, %v2586
        %v3230 = vmul.f32 %v3170, %v2604
        %v3237 = vrot.slane %v3225, 4
        %v3238 = vrot.slane %v3227, 4
        %v3239 = vsel %vm1001, %v3237, %v3238
        %v3240 = vrot.slane %v3226, 4
        %v3241 = vrot.slane %v3228, 4
        %v3242 = vsel %vm1001, %v3240, %v3241
        %v3243 = vrot.slane %v3229, 4
        %v3244 = vsel %vm1001, %v3238, %v3243
        %v3245 = vrot.slane %v3230, 4
        %v3246 = vsel %vm1001, %v3241, %v3245
        %v3251 = vadd.f32 %v3095, %v3239
        %v3252 = vadd.f32 %v3096, %v3242
        %v3253 = vadd.f32 %v3097, %v3244
        %v3254 = vadd.f32 %v3098, %v3246
        %v3255 = vmul.f32 %v3154, %v2584
        %v3256 = vmul.f32 %v3156, %v2602
        %v3257 = vmul.f32 %v3158, %v2585
        %v3258 = vmul.f32 %v3160, %v2603
        %v3259 = vmul.f32 %v3162, %v2586
        %v3260 = vmul.f32 %v3164, %v2604
        %v3267 = vrot.slane %v3255, 4
        %v3268 = vrot.slane %v3257, 4
        %v3269 = vsel %vm1001, %v3267, %v3268
        %v3270 = vrot.slane %v3256, 4
        %v3271 = vrot.slane %v3258, 4
        %v3272 = vsel %vm1001, %v3270, %v3271
        %v3273 = vrot.slane %v3259, 4
        %v3274 = vsel %vm1001, %v3268, %v3273
        %v3275 = vrot.slane %v3260, 4
        %v3276 = vsel %vm1001, %v3271, %v3275
        %v3281 = vadd.f32 %v3125, %v3269
        %v3282 = vadd.f32 %v3126, %v3272
        %v3283 = vadd.f32 %v3127, %v3274
        %v3284 = vadd.f32 %v3128, %v3276
        %3285 = vrot.lane.b32.xlu0 %v271, 126
        %v3286 = vpop.permute.xlu0 %3285
        %3287 = vrot.lane.b32.xlu0 %v272, 126
        %v3288 = vpop.permute.xlu0 %3287
        %3289 = vrot.lane.b32.xlu0 %v273, 126
        %v3290 = vpop.permute.xlu0 %3289
        %3291 = vrot.lane.b32.xlu0 %v274, 126
        %v3292 = vpop.permute.xlu0 %3291
        %3293 = vrot.lane.b32.xlu0 %v275, 126
        %v3294 = vpop.permute.xlu0 %3293
        %3295 = vrot.lane.b32.xlu0 %v276, 126
        %v3296 = vpop.permute.xlu0 %3295
        %vm3297 = vcmask 1031168
        %v3298 = vsel %vm3297, %v3286, %v3288
        %v3299 = vsel %vm3297, %v3290, %v3292
        %v3300 = vsel %vm3297, %v3294, %v3296
        %3307 = vrot.lane.b32.xlu0 %v271, 10
        %v3308 = vpop.permute.xlu0 %3307
        %3309 = vrot.lane.b32.xlu0 %v273, 10
        %v3310 = vpop.permute.xlu0 %3309
        %3311 = vrot.lane.b32.xlu0 %v275, 10
        %v3312 = vpop.permute.xlu0 %3311
        %vm3316 = vcmask 80896
        %v3317 = vsel %vm3316, %v3288, %v3308
        %v3318 = vsel %vm3316, %v3292, %v3310
        %v3319 = vsel %vm3316, %v3296, %v3312
        %3320 = vrot.lane.b32.xlu0 %v277, 126
        %v3321 = vpop.permute.xlu0 %3320
        %3322 = vrot.lane.b32.xlu0 %v278, 126
        %v3323 = vpop.permute.xlu0 %3322
        %3324 = vrot.lane.b32.xlu0 %v279, 126
        %v3325 = vpop.permute.xlu0 %3324
        %3326 = vrot.lane.b32.xlu0 %v280, 126
        %v3327 = vpop.permute.xlu0 %3326
        %3328 = vrot.lane.b32.xlu0 %v281, 126
        %v3329 = vpop.permute.xlu0 %3328
        %3330 = vrot.lane.b32.xlu0 %v282, 126
        %v3331 = vpop.permute.xlu0 %3330
        %v3332 = vsel %vm3297, %v3321, %v3323
        %v3333 = vsel %vm3297, %v3325, %v3327
        %v3334 = vsel %vm3297, %v3329, %v3331
        %3341 = vrot.lane.b32.xlu0 %v277, 10
        %v3342 = vpop.permute.xlu0 %3341
        %3343 = vrot.lane.b32.xlu0 %v279, 10
        %v3344 = vpop.permute.xlu0 %3343
        %3345 = vrot.lane.b32.xlu0 %v281, 10
        %v3346 = vpop.permute.xlu0 %3345
        %v3350 = vsel %vm3316, %v3323, %v3342
        %v3351 = vsel %vm3316, %v3327, %v3344
        %v3352 = vsel %vm3316, %v3331, %v3346
        %v3353 = vsub.f32 %v3298, %v365
        %v3354 = vsub.f32 %v3317, %v368
        %v3355 = vsub.f32 %v3299, %v370
        %v3356 = vsub.f32 %v3318, %v372
        %v3357 = vmul.f32 %v3353, %v3353
        %v3358 = vmul.f32 %v3354, %v3354
        %v3359 = vmul.f32 %v3355, %v3355
        %v3360 = vmul.f32 %v3356, %v3356
        %v3361 = vsub.f32 0.0, %v3357
        %v3362 = vsub.f32 0.0, %v3358
        %v3363 = vsub.f32 0.0, %v3359
        %v3364 = vsub.f32 0.0, %v3360
        %v3365 = vmul.f32 %v3361, 2.0
        %v3366 = vmul.f32 %v3362, 2.0
        %v3367 = vmul.f32 %v3363, 2.0
        %v3368 = vmul.f32 %v3364, 2.0
        %v3369 = vmul.f32 %v3365, 1.442695
        %v3370 = vpow.pop %v3369
        %v3371 = vmul.f32 %v3366, 1.442695
        %v3372 = vpow.pop %v3371
        %v3373 = vmul.f32 %v3367, 1.442695
        %v3374 = vpow.pop %v3373
        %v3375 = vmul.f32 %v3368, 1.442695
        %v3376 = vpow.pop %v3375
        %v3377 = vmul.f32 %v3370, %v3298
        %v3378 = vmul.f32 %v3372, %v3317
        %v3379 = vmul.f32 %v3374, %v3299
        %v3380 = vmul.f32 %v3376, %v3318
        %v3381 = vadd.f32 %v3191, %v3377
        %v3382 = vadd.f32 %v3192, %v3378
        %v3383 = vadd.f32 %v3193, %v3379
        %v3384 = vadd.f32 %v3194, %v3380
        %v3385 = vmul.f32 %v3377, %v3298
        %v3386 = vmul.f32 %v3378, %v3317
        %v3387 = vmul.f32 %v3379, %v3299
        %v3388 = vmul.f32 %v3380, %v3318
        %v3389 = vadd.f32 %v3221, %v3385
        %v3390 = vadd.f32 %v3222, %v3386
        %v3391 = vadd.f32 %v3223, %v3387
        %v3392 = vadd.f32 %v3224, %v3388
        %v3393 = vmul.f32 %v3377, %v3332
        %v3394 = vmul.f32 %v3378, %v3350
        %v3395 = vmul.f32 %v3379, %v3333
        %v3396 = vmul.f32 %v3380, %v3351
        %v3397 = vadd.f32 %v3251, %v3393
        %v3398 = vadd.f32 %v3252, %v3394
        %v3399 = vadd.f32 %v3253, %v3395
        %v3400 = vadd.f32 %v3254, %v3396
        %v3401 = vmul.f32 %v3370, %v3332
        %v3402 = vmul.f32 %v3372, %v3350
        %v3403 = vmul.f32 %v3374, %v3333
        %v3404 = vmul.f32 %v3376, %v3351
        %v3405 = vadd.f32 %v3281, %v3401
        %v3406 = vadd.f32 %v3282, %v3402
        %v3407 = vadd.f32 %v3283, %v3403
        %v3408 = vadd.f32 %v3284, %v3404
        %v3409 = vsub.f32 %v3298, %v436
        %v3410 = vsub.f32 %v3317, %v439
        %v3411 = vsub.f32 %v3299, %v441
        %v3412 = vsub.f32 %v3318, %v443
        %v3413 = vsub.f32 %v3300, %v440
        %v3414 = vsub.f32 %v3319, %v442
        %v3415 = vmul.f32 %v3409, %v3409
        %v3416 = vmul.f32 %v3410, %v3410
        %v3417 = vmul.f32 %v3411, %v3411
        %v3418 = vmul.f32 %v3412, %v3412
        %v3419 = vmul.f32 %v3413, %v3413
        %v3420 = vmul.f32 %v3414, %v3414
        %v3421 = vsub.f32 0.0, %v3415
        %v3422 = vsub.f32 0.0, %v3416
        %v3423 = vsub.f32 0.0, %v3417
        %v3424 = vsub.f32 0.0, %v3418
        %v3425 = vsub.f32 0.0, %v3419
        %v3426 = vsub.f32 0.0, %v3420
        %v3427 = vmul.f32 %v3421, 2.0
        %v3428 = vmul.f32 %v3422, 2.0
        %v3429 = vmul.f32 %v3423, 2.0
        %v3430 = vmul.f32 %v3424, 2.0
        %v3431 = vmul.f32 %v3425, 2.0
        %v3432 = vmul.f32 %v3426, 2.0
        %v3433 = vmul.f32 %v3427, 1.442695
        %v3434 = vpow.pop %v3433
        %v3435 = vmul.f32 %v3428, 1.442695
        %v3436 = vpow.pop %v3435
        %v3437 = vmul.f32 %v3429, 1.442695
        %v3438 = vpow.pop %v3437
        %v3439 = vmul.f32 %v3430, 1.442695
        %v3440 = vpow.pop %v3439
        %v3441 = vmul.f32 %v3431, 1.442695
        %v3442 = vpow.pop %v3441
        %v3443 = vmul.f32 %v3432, 1.442695
        %v3444 = vpow.pop %v3443
        %v3445 = vmul.f32 %v3434, %v3298
        %v3446 = vmul.f32 %v3436, %v3317
        %v3447 = vmul.f32 %v3438, %v3299
        %v3448 = vmul.f32 %v3440, %v3318
        %v3449 = vmul.f32 %v3442, %v3300
        %v3450 = vmul.f32 %v3444, %v3319
        %v3457 = vrot.slane %v3445, 1
        %v3458 = vrot.slane %v3447, 1
        %v3459 = vsel %vm433, %v3457, %v3458
        %v3460 = vrot.slane %v3446, 1
        %v3461 = vrot.slane %v3448, 1
        %v3462 = vsel %vm433, %v3460, %v3461
        %v3463 = vrot.slane %v3449, 1
        %v3464 = vsel %vm433, %v3458, %v3463
        %v3465 = vrot.slane %v3450, 1
        %v3466 = vsel %vm433, %v3461, %v3465
        %v3471 = vadd.f32 %v3381, %v3459
        %v3472 = vadd.f32 %v3382, %v3462
        %v3473 = vadd.f32 %v3383, %v3464
        %v3474 = vadd.f32 %v3384, %v3466
        %v3475 = vmul.f32 %v3445, %v3298
        %v3476 = vmul.f32 %v3446, %v3317
        %v3477 = vmul.f32 %v3447, %v3299
        %v3478 = vmul.f32 %v3448, %v3318
        %v3479 = vmul.f32 %v3449, %v3300
        %v3480 = vmul.f32 %v3450, %v3319
        %v3487 = vrot.slane %v3475, 1
        %v3488 = vrot.slane %v3477, 1
        %v3489 = vsel %vm433, %v3487, %v3488
        %v3490 = vrot.slane %v3476, 1
        %v3491 = vrot.slane %v3478, 1
        %v3492 = vsel %vm433, %v3490, %v3491
        %v3493 = vrot.slane %v3479, 1
        %v3494 = vsel %vm433, %v3488, %v3493
        %v3495 = vrot.slane %v3480, 1
        %v3496 = vsel %vm433, %v3491, %v3495
        %v3501 = vadd.f32 %v3389, %v3489
        %v3502 = vadd.f32 %v3390, %v3492
        %v3503 = vadd.f32 %v3391, %v3494
        %v3504 = vadd.f32 %v3392, %v3496
        %v3505 = vmul.f32 %v3445, %v3332
        %v3506 = vmul.f32 %v3446, %v3350
        %v3507 = vmul.f32 %v3447, %v3333
        %v3508 = vmul.f32 %v3448, %v3351
        %v3509 = vmul.f32 %v3449, %v3334
        %v3510 = vmul.f32 %v3450, %v3352
        %v3517 = vrot.slane %v3505, 1
        %v3518 = vrot.slane %v3507, 1
        %v3519 = vsel %vm433, %v3517, %v3518
        %v3520 = vrot.slane %v3506, 1
        %v3521 = vrot.slane %v3508, 1
        %v3522 = vsel %vm433, %v3520, %v3521
        %v3523 = vrot.slane %v3509, 1
        %v3524 = vsel %vm433, %v3518, %v3523
        %v3525 = vrot.slane %v3510, 1
        %v3526 = vsel %vm433, %v3521, %v3525
        %v3531 = vadd.f32 %v3397, %v3519
        %v3532 = vadd.f32 %v3398, %v3522
        %v3533 = vadd.f32 %v3399, %v3524
        %v3534 = vadd.f32 %v3400, %v3526
        %v3535 = vmul.f32 %v3434, %v3332
        %v3536 = vmul.f32 %v3436, %v3350
        %v3537 = vmul.f32 %v3438, %v3333
        %v3538 = vmul.f32 %v3440, %v3351
        %v3539 = vmul.f32 %v3442, %v3334
        %v3540 = vmul.f32 %v3444, %v3352
        %v3547 = vrot.slane %v3535, 1
        %v3548 = vrot.slane %v3537, 1
        %v3549 = vsel %vm433, %v3547, %v3548
        %v3550 = vrot.slane %v3536, 1
        %v3551 = vrot.slane %v3538, 1
        %v3552 = vsel %vm433, %v3550, %v3551
        %v3553 = vrot.slane %v3539, 1
        %v3554 = vsel %vm433, %v3548, %v3553
        %v3555 = vrot.slane %v3540, 1
        %v3556 = vsel %vm433, %v3551, %v3555
        %v3561 = vadd.f32 %v3405, %v3549
        %v3562 = vadd.f32 %v3406, %v3552
        %v3563 = vadd.f32 %v3407, %v3554
        %v3564 = vadd.f32 %v3408, %v3556
        %v3565 = vsub.f32 %v3298, %v271
        %v3566 = vsub.f32 %v3317, %v272
        %v3567 = vsub.f32 %v3299, %v273
        %v3568 = vsub.f32 %v3318, %v274
        %v3569 = vsub.f32 %v3300, %v275
        %v3570 = vsub.f32 %v3319, %v276
        %v3571 = vmul.f32 %v3565, %v3565
        %v3572 = vmul.f32 %v3566, %v3566
        %v3573 = vmul.f32 %v3567, %v3567
        %v3574 = vmul.f32 %v3568, %v3568
        %v3575 = vmul.f32 %v3569, %v3569
        %v3576 = vmul.f32 %v3570, %v3570
        %v3577 = vsub.f32 0.0, %v3571
        %v3578 = vsub.f32 0.0, %v3572
        %v3579 = vsub.f32 0.0, %v3573
        %v3580 = vsub.f32 0.0, %v3574
        %v3581 = vsub.f32 0.0, %v3575
        %v3582 = vsub.f32 0.0, %v3576
        %v3583 = vmul.f32 %v3577, 2.0
        %v3584 = vmul.f32 %v3578, 2.0
        %v3585 = vmul.f32 %v3579, 2.0
        %v3586 = vmul.f32 %v3580, 2.0
        %v3587 = vmul.f32 %v3581, 2.0
        %v3588 = vmul.f32 %v3582, 2.0
        %v3589 = vmul.f32 %v3583, 1.442695
        %v3590 = vpow.pop %v3589
        %v3591 = vmul.f32 %v3584, 1.442695
        %v3592 = vpow.pop %v3591
        %v3593 = vmul.f32 %v3585, 1.442695
        %v3594 = vpow.pop %v3593
        %v3595 = vmul.f32 %v3586, 1.442695
        %v3596 = vpow.pop %v3595
        %v3597 = vmul.f32 %v3587, 1.442695
        %v3598 = vpow.pop %v3597
        %v3599 = vmul.f32 %v3588, 1.442695
        %v3600 = vpow.pop %v3599
        %v3601 = vmul.f32 %v3590, %v3298
        %v3602 = vmul.f32 %v3592, %v3317
        %v3603 = vmul.f32 %v3594, %v3299
        %v3604 = vmul.f32 %v3596, %v3318
        %v3605 = vmul.f32 %v3598, %v3300
        %v3606 = vmul.f32 %v3600, %v3319
        %v3613 = vrot.slane %v3601, 2
        %v3614 = vrot.slane %v3603, 2
        %v3615 = vsel %vm362, %v3613, %v3614
        %v3616 = vrot.slane %v3602, 2
        %v3617 = vrot.slane %v3604, 2
        %v3618 = vsel %vm362, %v3616, %v3617
        %v3619 = vrot.slane %v3605, 2
        %v3620 = vsel %vm362, %v3614, %v3619
        %v3621 = vrot.slane %v3606, 2
        %v3622 = vsel %vm362, %v3617, %v3621
        %v3627 = vadd.f32 %v3471, %v3615
        %v3628 = vadd.f32 %v3472, %v3618
        %v3629 = vadd.f32 %v3473, %v3620
        %v3630 = vadd.f32 %v3474, %v3622
        %v3631 = vmul.f32 %v3601, %v3298
        %v3632 = vmul.f32 %v3602, %v3317
        %v3633 = vmul.f32 %v3603, %v3299
        %v3634 = vmul.f32 %v3604, %v3318
        %v3635 = vmul.f32 %v3605, %v3300
        %v3636 = vmul.f32 %v3606, %v3319
        %v3643 = vrot.slane %v3631, 2
        %v3644 = vrot.slane %v3633, 2
        %v3645 = vsel %vm362, %v3643, %v3644
        %v3646 = vrot.slane %v3632, 2
        %v3647 = vrot.slane %v3634, 2
        %v3648 = vsel %vm362, %v3646, %v3647
        %v3649 = vrot.slane %v3635, 2
        %v3650 = vsel %vm362, %v3644, %v3649
        %v3651 = vrot.slane %v3636, 2
        %v3652 = vsel %vm362, %v3647, %v3651
        %v3657 = vadd.f32 %v3501, %v3645
        %v3658 = vadd.f32 %v3502, %v3648
        %v3659 = vadd.f32 %v3503, %v3650
        %v3660 = vadd.f32 %v3504, %v3652
        %v3661 = vmul.f32 %v3601, %v3332
        %v3662 = vmul.f32 %v3602, %v3350
        %v3663 = vmul.f32 %v3603, %v3333
        %v3664 = vmul.f32 %v3604, %v3351
        %v3665 = vmul.f32 %v3605, %v3334
        %v3666 = vmul.f32 %v3606, %v3352
        %v3673 = vrot.slane %v3661, 2
        %v3674 = vrot.slane %v3663, 2
        %v3675 = vsel %vm362, %v3673, %v3674
        %v3676 = vrot.slane %v3662, 2
        %v3677 = vrot.slane %v3664, 2
        %v3678 = vsel %vm362, %v3676, %v3677
        %v3679 = vrot.slane %v3665, 2
        %v3680 = vsel %vm362, %v3674, %v3679
        %v3681 = vrot.slane %v3666, 2
        %v3682 = vsel %vm362, %v3677, %v3681
        %v3687 = vadd.f32 %v3531, %v3675
        %v3688 = vadd.f32 %v3532, %v3678
        %v3689 = vadd.f32 %v3533, %v3680
        %v3690 = vadd.f32 %v3534, %v3682
        %v3691 = vmul.f32 %v3590, %v3332
        %v3692 = vmul.f32 %v3592, %v3350
        %v3693 = vmul.f32 %v3594, %v3333
        %v3694 = vmul.f32 %v3596, %v3351
        %v3695 = vmul.f32 %v3598, %v3334
        %v3696 = vmul.f32 %v3600, %v3352
        %v3703 = vrot.slane %v3691, 2
        %v3704 = vrot.slane %v3693, 2
        %v3705 = vsel %vm362, %v3703, %v3704
        %v3706 = vrot.slane %v3692, 2
        %v3707 = vrot.slane %v3694, 2
        %v3708 = vsel %vm362, %v3706, %v3707
        %v3709 = vrot.slane %v3695, 2
        %v3710 = vsel %vm362, %v3704, %v3709
        %v3711 = vrot.slane %v3696, 2
        %v3712 = vsel %vm362, %v3707, %v3711
        %v3717 = vadd.f32 %v3561, %v3705
        %v3718 = vadd.f32 %v3562, %v3708
        %v3719 = vadd.f32 %v3563, %v3710
        %v3720 = vadd.f32 %v3564, %v3712
        %v3721 = vsub.f32 %v3298, %v763
        %v3722 = vsub.f32 %v3317, %v764
        %v3723 = vsub.f32 %v3299, %v766
        %v3724 = vsub.f32 %v3318, %v768
        %v3725 = vsub.f32 %v3300, %v770
        %v3726 = vsub.f32 %v3319, %v772
        %v3727 = vmul.f32 %v3721, %v3721
        %v3728 = vmul.f32 %v3722, %v3722
        %v3729 = vmul.f32 %v3723, %v3723
        %v3730 = vmul.f32 %v3724, %v3724
        %v3731 = vmul.f32 %v3725, %v3725
        %v3732 = vmul.f32 %v3726, %v3726
        %v3733 = vsub.f32 0.0, %v3727
        %v3734 = vsub.f32 0.0, %v3728
        %v3735 = vsub.f32 0.0, %v3729
        %v3736 = vsub.f32 0.0, %v3730
        %v3737 = vsub.f32 0.0, %v3731
        %v3738 = vsub.f32 0.0, %v3732
        %v3739 = vmul.f32 %v3733, 2.0
        %v3740 = vmul.f32 %v3734, 2.0
        %v3741 = vmul.f32 %v3735, 2.0
        %v3742 = vmul.f32 %v3736, 2.0
        %v3743 = vmul.f32 %v3737, 2.0
        %v3744 = vmul.f32 %v3738, 2.0
        %v3745 = vmul.f32 %v3739, 1.442695
        %v3746 = vpow.pop %v3745
        %v3747 = vmul.f32 %v3740, 1.442695
        %v3748 = vpow.pop %v3747
        %v3749 = vmul.f32 %v3741, 1.442695
        %v3750 = vpow.pop %v3749
        %v3751 = vmul.f32 %v3742, 1.442695
        %v3752 = vpow.pop %v3751
        %v3753 = vmul.f32 %v3743, 1.442695
        %v3754 = vpow.pop %v3753
        %v3755 = vmul.f32 %v3744, 1.442695
        %v3756 = vpow.pop %v3755
        %v3757 = vmul.f32 %v3746, %v3298
        %v3758 = vmul.f32 %v3748, %v3317
        %v3759 = vmul.f32 %v3750, %v3299
        %v3760 = vmul.f32 %v3752, %v3318
        %v3761 = vmul.f32 %v3754, %v3300
        %v3762 = vmul.f32 %v3756, %v3319
        %v3769 = vrot.slane %v3757, 3
        %v3770 = vrot.slane %v3759, 3
        %v3771 = vsel %vm827, %v3769, %v3770
        %v3772 = vrot.slane %v3758, 3
        %v3773 = vrot.slane %v3760, 3
        %v3774 = vsel %vm827, %v3772, %v3773
        %v3775 = vrot.slane %v3761, 3
        %v3776 = vsel %vm827, %v3770, %v3775
        %v3777 = vrot.slane %v3762, 3
        %v3778 = vsel %vm827, %v3773, %v3777
        %v3783 = vadd.f32 %v3627, %v3771
        %v3784 = vadd.f32 %v3628, %v3774
        %v3785 = vadd.f32 %v3629, %v3776
        %v3786 = vadd.f32 %v3630, %v3778
        %v3787 = vmul.f32 %v3757, %v3298
        %v3788 = vmul.f32 %v3758, %v3317
        %v3789 = vmul.f32 %v3759, %v3299
        %v3790 = vmul.f32 %v3760, %v3318
        %v3791 = vmul.f32 %v3761, %v3300
        %v3792 = vmul.f32 %v3762, %v3319
        %v3799 = vrot.slane %v3787, 3
        %v3800 = vrot.slane %v3789, 3
        %v3801 = vsel %vm827, %v3799, %v3800
        %v3802 = vrot.slane %v3788, 3
        %v3803 = vrot.slane %v3790, 3
        %v3804 = vsel %vm827, %v3802, %v3803
        %v3805 = vrot.slane %v3791, 3
        %v3806 = vsel %vm827, %v3800, %v3805
        %v3807 = vrot.slane %v3792, 3
        %v3808 = vsel %vm827, %v3803, %v3807
        %v3813 = vadd.f32 %v3657, %v3801
        %v3814 = vadd.f32 %v3658, %v3804
        %v3815 = vadd.f32 %v3659, %v3806
        %v3816 = vadd.f32 %v3660, %v3808
        %v3817 = vmul.f32 %v3757, %v3332
        %v3818 = vmul.f32 %v3758, %v3350
        %v3819 = vmul.f32 %v3759, %v3333
        %v3820 = vmul.f32 %v3760, %v3351
        %v3821 = vmul.f32 %v3761, %v3334
        %v3822 = vmul.f32 %v3762, %v3352
        %v3829 = vrot.slane %v3817, 3
        %v3830 = vrot.slane %v3819, 3
        %v3831 = vsel %vm827, %v3829, %v3830
        %v3832 = vrot.slane %v3818, 3
        %v3833 = vrot.slane %v3820, 3
        %v3834 = vsel %vm827, %v3832, %v3833
        %v3835 = vrot.slane %v3821, 3
        %v3836 = vsel %vm827, %v3830, %v3835
        %v3837 = vrot.slane %v3822, 3
        %v3838 = vsel %vm827, %v3833, %v3837
        %v3843 = vadd.f32 %v3687, %v3831
        %v3844 = vadd.f32 %v3688, %v3834
        %v3845 = vadd.f32 %v3689, %v3836
        %v3846 = vadd.f32 %v3690, %v3838
        %v3847 = vmul.f32 %v3746, %v3332
        %v3848 = vmul.f32 %v3748, %v3350
        %v3849 = vmul.f32 %v3750, %v3333
        %v3850 = vmul.f32 %v3752, %v3351
        %v3851 = vmul.f32 %v3754, %v3334
        %v3852 = vmul.f32 %v3756, %v3352
        %v3859 = vrot.slane %v3847, 3
        %v3860 = vrot.slane %v3849, 3
        %v3861 = vsel %vm827, %v3859, %v3860
        %v3862 = vrot.slane %v3848, 3
        %v3863 = vrot.slane %v3850, 3
        %v3864 = vsel %vm827, %v3862, %v3863
        %v3865 = vrot.slane %v3851, 3
        %v3866 = vsel %vm827, %v3860, %v3865
        %v3867 = vrot.slane %v3852, 3
        %v3868 = vsel %vm827, %v3863, %v3867
        %v3873 = vadd.f32 %v3717, %v3861
        %v3874 = vadd.f32 %v3718, %v3864
        %v3875 = vadd.f32 %v3719, %v3866
        %v3876 = vadd.f32 %v3720, %v3868
        %v3877 = vsub.f32 %v3298, %v937
        %v3878 = vsub.f32 %v3317, %v938
        %v3879 = vsub.f32 %v3299, %v940
        %v3880 = vsub.f32 %v3318, %v942
        %v3881 = vsub.f32 %v3300, %v944
        %v3882 = vsub.f32 %v3319, %v946
        %v3883 = vmul.f32 %v3877, %v3877
        %v3884 = vmul.f32 %v3878, %v3878
        %v3885 = vmul.f32 %v3879, %v3879
        %v3886 = vmul.f32 %v3880, %v3880
        %v3887 = vmul.f32 %v3881, %v3881
        %v3888 = vmul.f32 %v3882, %v3882
        %v3889 = vsub.f32 0.0, %v3883
        %v3890 = vsub.f32 0.0, %v3884
        %v3891 = vsub.f32 0.0, %v3885
        %v3892 = vsub.f32 0.0, %v3886
        %v3893 = vsub.f32 0.0, %v3887
        %v3894 = vsub.f32 0.0, %v3888
        %v3895 = vmul.f32 %v3889, 2.0
        %v3896 = vmul.f32 %v3890, 2.0
        %v3897 = vmul.f32 %v3891, 2.0
        %v3898 = vmul.f32 %v3892, 2.0
        %v3899 = vmul.f32 %v3893, 2.0
        %v3900 = vmul.f32 %v3894, 2.0
        %v3901 = vmul.f32 %v3895, 1.442695
        %v3902 = vpow.pop %v3901
        %v3903 = vmul.f32 %v3896, 1.442695
        %v3904 = vpow.pop %v3903
        %v3905 = vmul.f32 %v3897, 1.442695
        %v3906 = vpow.pop %v3905
        %v3907 = vmul.f32 %v3898, 1.442695
        %v3908 = vpow.pop %v3907
        %v3909 = vmul.f32 %v3899, 1.442695
        %v3910 = vpow.pop %v3909
        %v3911 = vmul.f32 %v3900, 1.442695
        %v3912 = vpow.pop %v3911
        %v3913 = vmul.f32 %v3902, %v3298
        %v3914 = vmul.f32 %v3904, %v3317
        %v3915 = vmul.f32 %v3906, %v3299
        %v3916 = vmul.f32 %v3908, %v3318
        %v3917 = vmul.f32 %v3910, %v3300
        %v3918 = vmul.f32 %v3912, %v3319
        %v3925 = vrot.slane %v3913, 4
        %v3926 = vrot.slane %v3915, 4
        %v3927 = vsel %vm1001, %v3925, %v3926
        %v3928 = vrot.slane %v3914, 4
        %v3929 = vrot.slane %v3916, 4
        %v3930 = vsel %vm1001, %v3928, %v3929
        %v3931 = vrot.slane %v3917, 4
        %v3932 = vsel %vm1001, %v3926, %v3931
        %v3933 = vrot.slane %v3918, 4
        %v3934 = vsel %vm1001, %v3929, %v3933
        %v3939 = vadd.f32 %v3783, %v3927
        %v3940 = vadd.f32 %v3784, %v3930
        %v3941 = vadd.f32 %v3785, %v3932
        %v3942 = vadd.f32 %v3786, %v3934
        %v3943 = vmul.f32 %v3913, %v3298
        %v3944 = vmul.f32 %v3914, %v3317
        %v3945 = vmul.f32 %v3915, %v3299
        %v3946 = vmul.f32 %v3916, %v3318
        %v3947 = vmul.f32 %v3917, %v3300
        %v3948 = vmul.f32 %v3918, %v3319
        %v3955 = vrot.slane %v3943, 4
        %v3956 = vrot.slane %v3945, 4
        %v3957 = vsel %vm1001, %v3955, %v3956
        %v3958 = vrot.slane %v3944, 4
        %v3959 = vrot.slane %v3946, 4
        %v3960 = vsel %vm1001, %v3958, %v3959
        %v3961 = vrot.slane %v3947, 4
        %v3962 = vsel %vm1001, %v3956, %v3961
        %v3963 = vrot.slane %v3948, 4
        %v3964 = vsel %vm1001, %v3959, %v3963
        %v3969 = vadd.f32 %v3813, %v3957
        %v3970 = vadd.f32 %v3814, %v3960
        %v3971 = vadd.f32 %v3815, %v3962
        %v3972 = vadd.f32 %v3816, %v3964
        %v3973 = vmul.f32 %v3913, %v3332
        %v3974 = vmul.f32 %v3914, %v3350
        %v3975 = vmul.f32 %v3915, %v3333
        %v3976 = vmul.f32 %v3916, %v3351
        %v3977 = vmul.f32 %v3917, %v3334
        %v3978 = vmul.f32 %v3918, %v3352
        %v3985 = vrot.slane %v3973, 4
        %v3986 = vrot.slane %v3975, 4
        %v3987 = vsel %vm1001, %v3985, %v3986
        %v3988 = vrot.slane %v3974, 4
        %v3989 = vrot.slane %v3976, 4
        %v3990 = vsel %vm1001, %v3988, %v3989
        %v3991 = vrot.slane %v3977, 4
        %v3992 = vsel %vm1001, %v3986, %v3991
        %v3993 = vrot.slane %v3978, 4
        %v3994 = vsel %vm1001, %v3989, %v3993
        %v3999 = vadd.f32 %v3843, %v3987
        %v4000 = vadd.f32 %v3844, %v3990
        %v4001 = vadd.f32 %v3845, %v3992
        %v4002 = vadd.f32 %v3846, %v3994
        %v4003 = vmul.f32 %v3902, %v3332
        %v4004 = vmul.f32 %v3904, %v3350
        %v4005 = vmul.f32 %v3906, %v3333
        %v4006 = vmul.f32 %v3908, %v3351
        %v4007 = vmul.f32 %v3910, %v3334
        %v4008 = vmul.f32 %v3912, %v3352
        %v4015 = vrot.slane %v4003, 4
        %v4016 = vrot.slane %v4005, 4
        %v4017 = vsel %vm1001, %v4015, %v4016
        %v4018 = vrot.slane %v4004, 4
        %v4019 = vrot.slane %v4006, 4
        %v4020 = vsel %vm1001, %v4018, %v4019
        %v4021 = vrot.slane %v4007, 4
        %v4022 = vsel %vm1001, %v4016, %v4021
        %v4023 = vrot.slane %v4008, 4
        %v4024 = vsel %vm1001, %v4019, %v4023
        %v4029 = vadd.f32 %v3873, %v4017
        %v4030 = vadd.f32 %v3874, %v4020
        %v4031 = vadd.f32 %v3875, %v4022
        %v4032 = vadd.f32 %v3876, %v4024
        %4033 = vst [vmem:[%s239] sm:$0xff] %v3939
        %vm4034 = vcmask 97280
        %4035 = vst.msk [vmem:[%s239 + $0x8] sm:$0xff] %vm4034, %v3940
        %4036 = vst [vmem:[%s239 + $0x10] sm:$0xff] %v3941
        %4037 = vst.msk [vmem:[%s239 + $0x18] sm:$0xff] %vm4034, %v3942
        %4038 = vst [vmem:[%s246] sm:$0xff] %v3969
        %4039 = vst.msk [vmem:[%s246 + $0x8] sm:$0xff] %vm4034, %v3970
        %4040 = vst [vmem:[%s246 + $0x10] sm:$0xff] %v3971
        %4041 = vst.msk [vmem:[%s246 + $0x18] sm:$0xff] %vm4034, %v3972
        %4042 = vst [vmem:[%s253] sm:$0xff] %v3999
        %4043 = vst.msk [vmem:[%s253 + $0x8] sm:$0xff] %vm4034, %v4000
        %4044 = vst [vmem:[%s253 + $0x10] sm:$0xff] %v4001
        %4045 = vst.msk [vmem:[%s253 + $0x18] sm:$0xff] %vm4034, %v4002
        %4046 = vst [vmem:[%s260] sm:$0xff] %v4029
        %4047 = vst.msk [vmem:[%s260 + $0x8] sm:$0xff] %vm4034, %v4030
        %4048 = vst [vmem:[%s260 + $0x10] sm:$0xff] %v4031
        %4049 = vst.msk [vmem:[%s260 + $0x18] sm:$0xff] %vm4034, %v4032
        %s4050 = sand.u32 %s86, 1
        %s4051 = scalar_lea.sflag [#allocation3], %s4050
        %s4052 = sand.u32 %s86, 1
        %s4053 = smul.addr %s4052, 32
        %s4054 = scalar_lea.vmem [#allocation2], %s4053
        %s4055 = sand.u32 %s26, 1
        %s4056 = scalar_lea.sflag [#allocation5], %s4055
        %s4057 = sand.u32 %s112, 1
        %s4058 = smul.addr %s4057, 32
        %s4059 = scalar_lea.vmem [#allocation4], %s4058
        %s4060 = sand.u32 %s26, 1
        %s4061 = scalar_lea.sflag [#allocation5], %s4060
        %s4062 = sand.u32 %s138, 1
        %s4063 = smul.addr %s4062, 32
        %s4064 = scalar_lea.vmem [#allocation6], %s4063
        %s4065 = sand.u32 %s164, 1
        %s4066 = scalar_lea.sflag [#allocation8], %s4065
        %s4067 = sand.u32 %s164, 1
        %s4068 = smul.addr %s4067, 32
        %s4069 = scalar_lea.vmem [#allocation7], %s4068
        // Predicated region
        $region29: #{tpu_custom_call.1} parent=27 // pred_check
          %p4070 = pneg %p96
        $region30: #{tpu_custom_call.1} parent=27 // pred_check_branch
          %4072 = sbr.rel (%p4070) target = $region32
        $region31: #{tpu_custom_call.1} parent=27 // pred_region
          %4074 = vsyncadd %s4051, 0
          %s4075 = smul.addr %s26, 4
          %s4076 = smul.addr %s4075, 8
          %s4077 = scalar_lea.hbm %s2, %s4076
          %s4078 = sshll.u32 %s4054, 4
          %s4079 = int_to_ptr.vmem [resolvable:$true] %s4078
          %s4080 = sshll.u32 %s4077, 4
          %s4081 = int_to_ptr.hbm [resolvable:$true] %s4080
          %4086 = dma.vmem_to_hbm [thread:$0]  %s4079, 512, %s4081, %s4051, 256, 256, 16
        $region32: #{tpu_custom_call.1} parent=27 // pred_fallthru
          _
        // Predicated region
        $region33: #{tpu_custom_call.1} parent=27 // pred_check
          %p4087 = pneg %p122
        $region34: #{tpu_custom_call.1} parent=27 // pred_check_branch
          %4089 = sbr.rel (%p4087) target = $region36
        $region35: #{tpu_custom_call.1} parent=27 // pred_region
          %4091 = vsyncadd %s4056, 0
          %s4092 = smul.addr %s26, 4
          %s4093 = smul.addr %s4092, 8
          %s4094 = scalar_lea.hbm %s3, %s4093
          %s4095 = sshll.u32 %s4059, 4
          %s4096 = int_to_ptr.vmem [resolvable:$true] %s4095
          %s4097 = sshll.u32 %s4094, 4
          %s4098 = int_to_ptr.hbm [resolvable:$true] %s4097
          %4103 = dma.vmem_to_hbm [thread:$0]  %s4096, 512, %s4098, %s4056, 256, 256, 16
        $region36: #{tpu_custom_call.1} parent=27 // pred_fallthru
          _
        // Predicated region
        $region37: #{tpu_custom_call.1} parent=27 // pred_check
          %p4104 = pneg %p148
        $region38: #{tpu_custom_call.1} parent=27 // pred_check_branch
          %4106 = sbr.rel (%p4104) target = $region40
        $region39: #{tpu_custom_call.1} parent=27 // pred_region
          %4108 = vsyncadd %s4061, 0
          %s4109 = smul.addr %s26, 4
          %s4110 = smul.addr %s4109, 8
          %s4111 = scalar_lea.hbm %s4, %s4110
          %s4112 = sshll.u32 %s4064, 4
          %s4113 = int_to_ptr.vmem [resolvable:$true] %s4112
          %s4114 = sshll.u32 %s4111, 4
          %s4115 = int_to_ptr.hbm [resolvable:$true] %s4114
          %4120 = dma.vmem_to_hbm [thread:$0]  %s4113, 512, %s4115, %s4061, 256, 256, 16
        $region40: #{tpu_custom_call.1} parent=27 // pred_fallthru
          _
        // Predicated region
        $region41: #{tpu_custom_call.1} parent=27 // pred_check
          %p4121 = pneg %p174
        $region42: #{tpu_custom_call.1} parent=27 // pred_check_branch
          %4123 = sbr.rel (%p4121) target = $region44
        $region43: #{tpu_custom_call.1} parent=27 // pred_region
          %4125 = vsyncadd %s4066, 0
          %s4126 = smul.addr %s26, 4
          %s4127 = smul.addr %s4126, 8
          %s4128 = scalar_lea.hbm %s5, %s4127
          %s4129 = sshll.u32 %s4069, 4
          %s4130 = int_to_ptr.vmem [resolvable:$true] %s4129
          %s4131 = sshll.u32 %s4128, 4
          %s4132 = int_to_ptr.hbm [resolvable:$true] %s4131
          %4137 = dma.vmem_to_hbm [thread:$0]  %s4130, 512, %s4132, %s4066, 256, 256, 16
        $region44: #{tpu_custom_call.1} parent=27 // pred_fallthru
          _
      $region28: #{tpu_custom_call.1} parent=5 // pred_fallthru
        _
      %p4138 = scmp.le.s32.totalorder 2, %s21
      // Predicated region
      $region45: #{tpu_custom_call.1} parent=5 // pred_check
        %p4139 = pneg %p4138
      $region46: #{tpu_custom_call.1} parent=5 // pred_check_branch
        %4141 = sbr.rel (%p4139) target = $region48
      $region47: #{tpu_custom_call.1} parent=5 // pred_region
        %s4142 = ssub.s32 %s21, 2
        // Predicated region
        $region49: #{tpu_custom_call.1} parent=47 // pred_check
          %p4143 = pneg %p102
        $region50: #{tpu_custom_call.1} parent=47 // pred_check_branch
          %4145 = sbr.rel (%p4143) target = $region52
        $region51: #{tpu_custom_call.1} parent=47 // pred_region
          %s4146 = sand.u32 %s87, 1
          %s4147 = scalar_lea.sflag [#allocation3], %s4146
          %s4148 = sand.u32 %s87, 1
          %s4149 = smul.addr %s4148, 32
          %s4150 = scalar_lea.vmem [#allocation2], %s4149
          %4152 = dma.done %s4147, 512
        $region52: #{tpu_custom_call.1} parent=47 // pred_fallthru
          _
        // Predicated region
        $region53: #{tpu_custom_call.1} parent=47 // pred_check
          %p4153 = pneg %p128
        $region54: #{tpu_custom_call.1} parent=47 // pred_check_branch
          %4155 = sbr.rel (%p4153) target = $region56
        $region55: #{tpu_custom_call.1} parent=47 // pred_region
          %s4156 = sand.u32 %s27, 1
          %s4157 = scalar_lea.sflag [#allocation5], %s4156
          %s4158 = sand.u32 %s113, 1
          %s4159 = smul.addr %s4158, 32
          %s4160 = scalar_lea.vmem [#allocation4], %s4159
          %4162 = dma.done %s4157, 512
        $region56: #{tpu_custom_call.1} parent=47 // pred_fallthru
          _
        // Predicated region
        $region57: #{tpu_custom_call.1} parent=47 // pred_check
          %p4163 = pneg %p154
        $region58: #{tpu_custom_call.1} parent=47 // pred_check_branch
          %4165 = sbr.rel (%p4163) target = $region60
        $region59: #{tpu_custom_call.1} parent=47 // pred_region
          %s4166 = sand.u32 %s27, 1
          %s4167 = scalar_lea.sflag [#allocation5], %s4166
          %s4168 = sand.u32 %s139, 1
          %s4169 = smul.addr %s4168, 32
          %s4170 = scalar_lea.vmem [#allocation6], %s4169
          %4172 = dma.done %s4167, 512
        $region60: #{tpu_custom_call.1} parent=47 // pred_fallthru
          _
        // Predicated region
        $region61: #{tpu_custom_call.1} parent=47 // pred_check
          %p4173 = pneg %p180
        $region62: #{tpu_custom_call.1} parent=47 // pred_check_branch
          %4175 = sbr.rel (%p4173) target = $region64
        $region63: #{tpu_custom_call.1} parent=47 // pred_region
          %s4176 = sand.u32 %s165, 1
          %s4177 = scalar_lea.sflag [#allocation8], %s4176
          %s4178 = sand.u32 %s165, 1
          %s4179 = smul.addr %s4178, 32
          %s4180 = scalar_lea.vmem [#allocation7], %s4179
          %4182 = dma.done %s4177, 512
        $region64: #{tpu_custom_call.1} parent=47 // pred_fallthru
          _
      $region48: #{tpu_custom_call.1} parent=5 // pred_fallthru
        _
    $region6: #{tpu_custom_call.1} parent=1 // loop_footer
      %s25 = sadd.s32 1, %s21
    $region7: #{tpu_custom_call.1} parent=1 // loop_footer_branch
      %20 = sbr.rel target = $region3
    $region8: #{tpu_custom_call.1} parent=1 // loop_exit
      _
    %4183 = vsyncpa [#allocation3], 1
    %s4184 = scalar_lea.sflag [#allocation3], 1
    %4185 = vsyncpa %s4184, 1
    %4186 = vsyncpa [#allocation5], 1
    %s4187 = scalar_lea.sflag [#allocation5], 1
    %4188 = vsyncpa %s4187, 1
    %4189 = vsyncpa [#allocation8], 1
    %s4190 = scalar_lea.sflag [#allocation8], 1
    %4191 = vsyncpa %s4190, 1

</llo_original>
